<compile_context>
chip_gen: v5e
topology: v5e:2x2
jax: 0.10.0
libtpu: 0.0.40
codegen_flags: <defaults>
</compile_context>

<pallas_src>
import functools

import jax
import jax.numpy as jnp
from jax.experimental import pallas as pl
from jax.experimental.pallas import tpu as pltpu

V_DIM = 2 * 10 * 10          # 200
CLASS_NUM = 50
IN_DIM = V_DIM + CLASS_NUM   # 250
H_DIM = 500
H2_DIM = 1000
H_PAD = 512                  # 500 -> 512 lanes
H2_PAD = 1024                # 1000 -> 1024 lanes
OUT_PAD = 128                # 1 -> 128 lanes (lane-dense output store)
LEAKY_SLOPE = 0.01           # nn.LeakyReLU default
LN_EPS = 1e-5                # nn.LayerNorm default
MAX_TM = 256                 # batch-tile rows (multiple of 8; MXU-friendly M)


def _round_up(x, m):
    return ((x + m - 1) // m) * m


def _leaky_relu(x):
    return jnp.where(x >= 0, x, LEAKY_SLOPE * x)


def _masked_layer_norm(x, gamma, beta, valid):
    """LayerNorm over the first `valid` lanes of the lane-padded last dim.

    Invariant: padded lanes of `x` are exactly 0 (zero-padded weight columns /
    biases, and LeakyReLU(0) == 0), so the mean needs no mask; the variance
    must mask (0 - mu)^2 on padded lanes.  gamma/beta are zero-padded, which
    forces padded output lanes back to 0 for the next (zero-padded-row) matmul.
    """
    npad = x.shape[-1]
    inv_n = 1.0 / float(valid)
    mu = jnp.sum(x, axis=-1, keepdims=True) * inv_n
    lane = jax.lax.broadcasted_iota(jnp.int32, (1, npad), 1)
    d = jnp.where(lane < valid, x - mu, 0.0)
    var = jnp.sum(d * d, axis=-1, keepdims=True) * inv_n
    return (x - mu) * jax.lax.rsqrt(var + LN_EPS) * gamma + beta


def _disc_kernel(x_ref, lab_ref,
                 w1a_ref, w1b_ref, b1_ref, g1_ref, be1_ref,
                 w2_ref, b2_ref, g2_ref, be2_ref,
                 w3_ref, b3_ref, out_ref):
    # Layer 1: Linear(250 -> 500) with the concat fused as two matmuls,
    # then LeakyReLU + masked LayerNorm(500).
    x = x_ref[...].astype(jnp.bfloat16)
    lab = lab_ref[...].astype(jnp.bfloat16)
    h = (jnp.dot(x, w1a_ref[...], preferred_element_type=jnp.float32)
         + jnp.dot(lab, w1b_ref[...], preferred_element_type=jnp.float32)
         + b1_ref[...])
    h = _masked_layer_norm(_leaky_relu(h), g1_ref[...], be1_ref[...], H_DIM)

    # Layer 2: Linear(500 -> 1000) + LeakyReLU + masked LayerNorm(1000).
    h = jnp.dot(h.astype(jnp.bfloat16), w2_ref[...],
                preferred_element_type=jnp.float32) + b2_ref[...]
    h = _masked_layer_norm(_leaky_relu(h), g2_ref[...], be2_ref[...], H2_DIM)

    # Layer 3: Linear(1000 -> 1) + Sigmoid, computed into 128 padded output
    # lanes so the store is lane-dense; column 0 holds the real output.
    logit = jnp.dot(h.astype(jnp.bfloat16), w3_ref[...],
                    preferred_element_type=jnp.float32) + b3_ref[...]
    out_ref[...] = jax.nn.sigmoid(logit).astype(out_ref.dtype)


def init_params(key):
    """nn.Module-shaped params (uniform +-1/sqrt(fan_in), LN gamma=1/beta=0)."""
    ks = jax.random.split(key, 6)

    def lin(kw, kb, fan_in, fan_out):
        bound = 1.0 / jnp.sqrt(fan_in)
        w = jax.random.uniform(kw, (fan_in, fan_out), jnp.float32, -bound, bound)
        b = jax.random.uniform(kb, (fan_out,), jnp.float32, -bound, bound)
        return w, b

    w1, b1 = lin(ks[0], ks[1], IN_DIM, H_DIM)
    w2, b2 = lin(ks[2], ks[3], H_DIM, H2_DIM)
    w3, b3 = lin(ks[4], ks[5], H2_DIM, 1)
    g1 = jnp.ones((H_DIM,), jnp.float32)
    be1 = jnp.zeros((H_DIM,), jnp.float32)
    g2 = jnp.ones((H2_DIM,), jnp.float32)
    be2 = jnp.zeros((H2_DIM,), jnp.float32)
    return (w1, b1, g1, be1, w2, b2, g2, be2, w3, b3)


def prepare_params(params):
    """One-time prep: lane-pad, split W1 for the fused concat, cast to bf16."""
    w1, b1, g1, be1, w2, b2, g2, be2, w3, b3 = params

    def row_vec(v, n):
        v = jnp.asarray(v, jnp.float32).reshape(1, -1)
        return jnp.pad(v, ((0, 0), (0, n - v.shape[1])))

    w1p = jnp.pad(w1, ((0, 0), (0, H_PAD - H_DIM)))            # (250, 512)
    w1a = w1p[:V_DIM].astype(jnp.bfloat16)                     # (200, 512)
    w1b = w1p[V_DIM:].astype(jnp.bfloat16)                     # (50, 512)
    w2p = jnp.pad(w2, ((0, H_PAD - H_DIM),
                       (0, H2_PAD - H2_DIM))).astype(jnp.bfloat16)   # (512, 1024)
    w3p = jnp.pad(w3, ((0, H2_PAD - H2_DIM),
                       (0, OUT_PAD - 1))).astype(jnp.bfloat16)       # (1024, 128)
    return (w1a, w1b,
            row_vec(b1, H_PAD), row_vec(g1, H_PAD), row_vec(be1, H_PAD),
            w2p,
            row_vec(b2, H2_PAD), row_vec(g2, H2_PAD), row_vec(be2, H2_PAD),
            w3p, row_vec(b3, OUT_PAD))


@functools.partial(jax.jit, static_argnames=("max_tm",))
def discriminator_forward(inputs, label_tensor, prepared, *, max_tm=MAX_TM):
    """inputs: (B, 200) f32, label_tensor: (B, 50) f32 -> (B, 1) f32."""
    B = inputs.shape[0]
    tm = min(max_tm, _round_up(B, 8))            # batch tile (multiple of 8)
    b_pad = _round_up(B, tm)
    grid = (b_pad // tm,)

    inputs_p = jnp.pad(inputs.astype(jnp.float32), ((0, b_pad - B), (0, 0)))
    label_p = jnp.pad(label_tensor.astype(jnp.float32), ((0, b_pad - B), (0, 0)))

    x_spec = pl.BlockSpec((tm, V_DIM), lambda i: (i, 0))
    lab_spec = pl.BlockSpec((tm, CLASS_NUM), lambda i: (i, 0))
    # Params: full-array blocks with a constant index map -> stay resident.
    w_specs = [pl.BlockSpec(w.shape, lambda i: (0, 0)) for w in prepared]

    param_bytes = sum(int(w.size) * w.dtype.itemsize for w in prepared)
    cost = pl.CostEstimate(
        flops=2 * b_pad * (V_DIM * H_PAD + CLASS_NUM * H_PAD
                           + H_PAD * H2_PAD + H2_PAD * OUT_PAD),
        transcendentals=b_pad * (2 + OUT_PAD),
        bytes_accessed=int(inputs_p.size * 4 + label_p.size * 4
                           + param_bytes + b_pad * OUT_PAD * 4),
    )

    out = pl.pallas_call(
        _disc_kernel,
        out_shape=jax.ShapeDtypeStruct((b_pad, OUT_PAD), jnp.float32),
        grid=grid,
        in_specs=[x_spec, lab_spec] + w_specs,
        out_specs=pl.BlockSpec((tm, OUT_PAD), lambda i: (i, 0)),
        compiler_params=pltpu.CompilerParams(
            dimension_semantics=("parallel",)),
        cost_estimate=cost,
    )(inputs_p, label_p, *prepared)
    return out[:B, 0:1]


def _reference(inputs, label_tensor, params, matmul_dtype=jnp.float32):
    """Pure-JAX reference of the PyTorch module (optionally bf16 matmuls)."""
    w1, b1, g1, be1, w2, b2, g2, be2, w3, b3 = params

    def mm(a, w):
        return jnp.dot(a.astype(matmul_dtype), w.astype(matmul_dtype),
                       preferred_element_type=jnp.float32)

    def ln(x, g, b):
        mu = jnp.mean(x, axis=-1, keepdims=True)
        var = jnp.mean((x - mu) ** 2, axis=-1, keepdims=True)
        return (x - mu) * jax.lax.rsqrt(var + LN_EPS) * g + b

    x = jnp.concatenate([inputs, label_tensor], axis=1)
    h = ln(_leaky_relu(mm(x, w1) + b1), g1, be1)
    h = ln(_leaky_relu(mm(h, w2) + b2), g2, be2)
    return jax.nn.sigmoid(mm(h, w3) + b3)


if __name__ == "__main__":
    key = jax.random.PRNGKey(0)
    k_data, k_par = jax.random.split(key)
    params = init_params(k_par)
    prepared = prepare_params(params)          # one-time pad/split/bf16 prep

    # (batch, max batch-tile) cases: single tile, ragged batch, multi-tile grid.
    cases = ((16, MAX_TM), (5, MAX_TM), (24, 8))
    for B, max_tm in cases:
        ki, kl = jax.random.split(jax.random.fold_in(k_data, B))
        inputs = jax.random.normal(ki, (B, V_DIM), jnp.float32)
        label_tensor = jax.random.normal(kl, (B, CLASS_NUM), jnp.float32)

        out = jax.block_until_ready(
            discriminator_forward(inputs, label_tensor, prepared,
                                  max_tm=max_tm))
        assert out.shape == (B, 1), out.shape

        # Tight check vs a reference using the same bf16 matmul operands.
        ref_bf16 = _reference(inputs, label_tensor, params,
                              matmul_dtype=jnp.bfloat16)
        assert jnp.allclose(out, ref_bf16, atol=1e-4, rtol=1e-4), (
            float(jnp.max(jnp.abs(out - ref_bf16))))
        # Loose check vs the full-f32 module semantics (bf16 weight rounding).
        ref_f32 = _reference(inputs, label_tensor, params,
                             matmul_dtype=jnp.float32)
        assert jnp.allclose(out, ref_f32, atol=2e-2, rtol=0.0), (
            float(jnp.max(jnp.abs(out - ref_f32))))

    print("KERNEL_OK")
</pallas_src>

<mosaic_0001>
module attributes {stable_mosaic.version = 11 : i64} {
  func.func @_disc_kernel(%arg0: i32, %arg1: memref<16x200xf32, #tpu.memory_space<vmem>>, %arg2: memref<16x50xf32, #tpu.memory_space<vmem>>, %arg3: memref<200x512xbf16, #tpu.memory_space<vmem>>, %arg4: memref<50x512xbf16, #tpu.memory_space<vmem>>, %arg5: memref<1x512xf32, #tpu.memory_space<vmem>>, %arg6: memref<1x512xf32, #tpu.memory_space<vmem>>, %arg7: memref<1x512xf32, #tpu.memory_space<vmem>>, %arg8: memref<512x1024xbf16, #tpu.memory_space<vmem>>, %arg9: memref<1x1024xf32, #tpu.memory_space<vmem>>, %arg10: memref<1x1024xf32, #tpu.memory_space<vmem>>, %arg11: memref<1x1024xf32, #tpu.memory_space<vmem>>, %arg12: memref<1024x128xbf16, #tpu.memory_space<vmem>>, %arg13: memref<1x128xf32, #tpu.memory_space<vmem>>, %arg14: memref<16x128xf32, #tpu.memory_space<vmem>>) attributes {dimension_semantics = [#tpu.dimension_semantics<parallel>], iteration_bounds = array<i64: 1>, scalar_prefetch = 0 : i64, scratch_operands = 0 : i64, tpu.core_type = #tpu.core_type<tc>, window_params = [{transform_indices = @transform_0, window_bounds = array<i64: 16, 200>}, {transform_indices = @transform_1, window_bounds = array<i64: 16, 50>}, {pipeline_mode = #tpu.pipeline_mode<synchronous>, transform_indices = @transform_2, window_bounds = array<i64: 200, 512>}, {pipeline_mode = #tpu.pipeline_mode<synchronous>, transform_indices = @transform_3, window_bounds = array<i64: 50, 512>}, {pipeline_mode = #tpu.pipeline_mode<synchronous>, transform_indices = @transform_4, window_bounds = array<i64: 1, 512>}, {pipeline_mode = #tpu.pipeline_mode<synchronous>, transform_indices = @transform_5, window_bounds = array<i64: 1, 512>}, {pipeline_mode = #tpu.pipeline_mode<synchronous>, transform_indices = @transform_6, window_bounds = array<i64: 1, 512>}, {pipeline_mode = #tpu.pipeline_mode<synchronous>, transform_indices = @transform_7, window_bounds = array<i64: 512, 1024>}, {pipeline_mode = #tpu.pipeline_mode<synchronous>, transform_indices = @transform_8, window_bounds = array<i64: 1, 1024>}, {pipeline_mode = #tpu.pipeline_mode<synchronous>, transform_indices = @transform_9, window_bounds = array<i64: 1, 1024>}, {pipeline_mode = #tpu.pipeline_mode<synchronous>, transform_indices = @transform_10, window_bounds = array<i64: 1, 1024>}, {pipeline_mode = #tpu.pipeline_mode<synchronous>, transform_indices = @transform_11, window_bounds = array<i64: 1024, 128>}, {pipeline_mode = #tpu.pipeline_mode<synchronous>, transform_indices = @transform_12, window_bounds = array<i64: 1, 128>}, {transform_indices = @transform_13, window_bounds = array<i64: 16, 128>}]} {
    %c0 = arith.constant 0 : index
    %c0_0 = arith.constant 0 : index
    %0 = vector.load %arg1[%c0, %c0_0] : memref<16x200xf32, #tpu.memory_space<vmem>>, vector<16x200xf32>
    %1 = arith.truncf %0 : vector<16x200xf32> to vector<16x200xbf16>
    %c0_1 = arith.constant 0 : index
    %c0_2 = arith.constant 0 : index
    %2 = vector.load %arg2[%c0_1, %c0_2] : memref<16x50xf32, #tpu.memory_space<vmem>>, vector<16x50xf32>
    %3 = arith.truncf %2 : vector<16x50xf32> to vector<16x50xbf16>
    %c0_3 = arith.constant 0 : index
    %c0_4 = arith.constant 0 : index
    %4 = vector.load %arg3[%c0_3, %c0_4] : memref<200x512xbf16, #tpu.memory_space<vmem>>, vector<200x512xbf16>
    %cst = arith.constant dense<0.000000e+00> : vector<16x512xf32>
    %5 = tpu.matmul %1, %4, %cst {dimension_numbers = #tpu.dot_dimension_numbers<[1], [0], [0], [1], [0, 0, 1, 1], [], []>} : vector<16x200xbf16>, vector<200x512xbf16>, vector<16x512xf32> -> vector<16x512xf32>
    %c0_5 = arith.constant 0 : index
    %c0_6 = arith.constant 0 : index
    %6 = vector.load %arg4[%c0_5, %c0_6] : memref<50x512xbf16, #tpu.memory_space<vmem>>, vector<50x512xbf16>
    %cst_7 = arith.constant dense<0.000000e+00> : vector<16x512xf32>
    %7 = tpu.matmul %3, %6, %cst_7 {dimension_numbers = #tpu.dot_dimension_numbers<[1], [0], [0], [1], [0, 0, 1, 1], [], []>} : vector<16x50xbf16>, vector<50x512xbf16>, vector<16x512xf32> -> vector<16x512xf32>
    %8 = arith.addf %5, %7 : vector<16x512xf32>
    %c0_8 = arith.constant 0 : index
    %c0_9 = arith.constant 0 : index
    %9 = vector.load %arg5[%c0_8, %c0_9] : memref<1x512xf32, #tpu.memory_space<vmem>>, vector<1x512xf32>
    %10 = vector.broadcast %9 : vector<1x512xf32> to vector<16x512xf32>
    %11 = arith.addf %8, %10 : vector<16x512xf32>
    %cst_10 = arith.constant 0.000000e+00 : f32
    %12 = vector.broadcast %cst_10 : f32 to vector<16x512xf32>
    %13 = arith.cmpf oge, %11, %12 : vector<16x512xf32>
    %cst_11 = arith.constant 0.00999999977 : f32
    %14 = vector.broadcast %cst_11 : f32 to vector<16x512xf32>
    %15 = arith.mulf %14, %11 : vector<16x512xf32>
    %16 = arith.select %13, %11, %15 : vector<16x512xi1>, vector<16x512xf32>
    %c0_12 = arith.constant 0 : index
    %c0_13 = arith.constant 0 : index
    %17 = vector.load %arg6[%c0_12, %c0_13] : memref<1x512xf32, #tpu.memory_space<vmem>>, vector<1x512xf32>
    %c0_14 = arith.constant 0 : index
    %c0_15 = arith.constant 0 : index
    %18 = vector.load %arg7[%c0_14, %c0_15] : memref<1x512xf32, #tpu.memory_space<vmem>>, vector<1x512xf32>
    %cst_16 = arith.constant dense<0.000000e+00> : vector<16xf32>
    %19 = vector.multi_reduction <add>, %16, %cst_16 [1] : vector<16x512xf32> to vector<16xf32>
    %20 = vector.shape_cast %19 : vector<16xf32> to vector<16x1xf32>
    %cst_17 = arith.constant 2.000000e-03 : f32
    %21 = vector.broadcast %cst_17 : f32 to vector<16x1xf32>
    %22 = arith.mulf %20, %21 : vector<16x1xf32>
    %23 = tpu.iota {dimensions = array<i32: 1>} : vector<1x512xi32>
    %c500_i32 = arith.constant 500 : i32
    %24 = vector.broadcast %c500_i32 : i32 to vector<1x512xi32>
    %25 = arith.cmpi slt, %23, %24 : vector<1x512xi32>
    %26 = vector.broadcast %22 : vector<16x1xf32> to vector<16x512xf32>
    %27 = arith.subf %16, %26 : vector<16x512xf32>
    %cst_18 = arith.constant 0.000000e+00 : f32
    %28 = vector.shape_cast %25 : vector<1x512xi1> to vector<1x512xi1>
    %29 = vector.broadcast %28 : vector<1x512xi1> to vector<16x512xi1>
    %30 = vector.broadcast %cst_18 : f32 to vector<16x512xf32>
    %31 = arith.select %29, %27, %30 : vector<16x512xi1>, vector<16x512xf32>
    %32 = arith.mulf %31, %31 : vector<16x512xf32>
    %cst_19 = arith.constant dense<0.000000e+00> : vector<16xf32>
    %33 = vector.multi_reduction <add>, %32, %cst_19 [1] : vector<16x512xf32> to vector<16xf32>
    %34 = vector.shape_cast %33 : vector<16xf32> to vector<16x1xf32>
    %cst_20 = arith.constant 2.000000e-03 : f32
    %35 = vector.broadcast %cst_20 : f32 to vector<16x1xf32>
    %36 = arith.mulf %34, %35 : vector<16x1xf32>
    %37 = vector.broadcast %22 : vector<16x1xf32> to vector<16x512xf32>
    %38 = arith.subf %16, %37 : vector<16x512xf32>
    %cst_21 = arith.constant 9.99999974E-6 : f32
    %39 = vector.broadcast %cst_21 : f32 to vector<16x1xf32>
    %40 = arith.addf %36, %39 : vector<16x1xf32>
    %41 = math.rsqrt %40 : vector<16x1xf32>
    %42 = vector.broadcast %41 : vector<16x1xf32> to vector<16x512xf32>
    %43 = arith.mulf %38, %42 : vector<16x512xf32>
    %44 = vector.broadcast %17 : vector<1x512xf32> to vector<16x512xf32>
    %45 = arith.mulf %43, %44 : vector<16x512xf32>
    %46 = vector.broadcast %18 : vector<1x512xf32> to vector<16x512xf32>
    %47 = arith.addf %45, %46 : vector<16x512xf32>
    %48 = arith.truncf %47 : vector<16x512xf32> to vector<16x512xbf16>
    %c0_22 = arith.constant 0 : index
    %c0_23 = arith.constant 0 : index
    %49 = vector.load %arg8[%c0_22, %c0_23] : memref<512x1024xbf16, #tpu.memory_space<vmem>>, vector<512x1024xbf16>
    %cst_24 = arith.constant dense<0.000000e+00> : vector<16x1024xf32>
    %50 = tpu.matmul %48, %49, %cst_24 {dimension_numbers = #tpu.dot_dimension_numbers<[1], [0], [0], [1], [0, 0, 1, 1], [], []>} : vector<16x512xbf16>, vector<512x1024xbf16>, vector<16x1024xf32> -> vector<16x1024xf32>
    %c0_25 = arith.constant 0 : index
    %c0_26 = arith.constant 0 : index
    %51 = vector.load %arg9[%c0_25, %c0_26] : memref<1x1024xf32, #tpu.memory_space<vmem>>, vector<1x1024xf32>
    %52 = vector.broadcast %51 : vector<1x1024xf32> to vector<16x1024xf32>
    %53 = arith.addf %50, %52 : vector<16x1024xf32>
    %cst_27 = arith.constant 0.000000e+00 : f32
    %54 = vector.broadcast %cst_27 : f32 to vector<16x1024xf32>
    %55 = arith.cmpf oge, %53, %54 : vector<16x1024xf32>
    %cst_28 = arith.constant 0.00999999977 : f32
    %56 = vector.broadcast %cst_28 : f32 to vector<16x1024xf32>
    %57 = arith.mulf %56, %53 : vector<16x1024xf32>
    %58 = arith.select %55, %53, %57 : vector<16x1024xi1>, vector<16x1024xf32>
    %c0_29 = arith.constant 0 : index
    %c0_30 = arith.constant 0 : index
    %59 = vector.load %arg10[%c0_29, %c0_30] : memref<1x1024xf32, #tpu.memory_space<vmem>>, vector<1x1024xf32>
    %c0_31 = arith.constant 0 : index
    %c0_32 = arith.constant 0 : index
    %60 = vector.load %arg11[%c0_31, %c0_32] : memref<1x1024xf32, #tpu.memory_space<vmem>>, vector<1x1024xf32>
    %cst_33 = arith.constant dense<0.000000e+00> : vector<16xf32>
    %61 = vector.multi_reduction <add>, %58, %cst_33 [1] : vector<16x1024xf32> to vector<16xf32>
    %62 = vector.shape_cast %61 : vector<16xf32> to vector<16x1xf32>
    %cst_34 = arith.constant 1.000000e-03 : f32
    %63 = vector.broadcast %cst_34 : f32 to vector<16x1xf32>
    %64 = arith.mulf %62, %63 : vector<16x1xf32>
    %65 = tpu.iota {dimensions = array<i32: 1>} : vector<1x1024xi32>
    %c1000_i32 = arith.constant 1000 : i32
    %66 = vector.broadcast %c1000_i32 : i32 to vector<1x1024xi32>
    %67 = arith.cmpi slt, %65, %66 : vector<1x1024xi32>
    %68 = vector.broadcast %64 : vector<16x1xf32> to vector<16x1024xf32>
    %69 = arith.subf %58, %68 : vector<16x1024xf32>
    %cst_35 = arith.constant 0.000000e+00 : f32
    %70 = vector.shape_cast %67 : vector<1x1024xi1> to vector<1x1024xi1>
    %71 = vector.broadcast %70 : vector<1x1024xi1> to vector<16x1024xi1>
    %72 = vector.broadcast %cst_35 : f32 to vector<16x1024xf32>
    %73 = arith.select %71, %69, %72 : vector<16x1024xi1>, vector<16x1024xf32>
    %74 = arith.mulf %73, %73 : vector<16x1024xf32>
    %cst_36 = arith.constant dense<0.000000e+00> : vector<16xf32>
    %75 = vector.multi_reduction <add>, %74, %cst_36 [1] : vector<16x1024xf32> to vector<16xf32>
    %76 = vector.shape_cast %75 : vector<16xf32> to vector<16x1xf32>
    %cst_37 = arith.constant 1.000000e-03 : f32
    %77 = vector.broadcast %cst_37 : f32 to vector<16x1xf32>
    %78 = arith.mulf %76, %77 : vector<16x1xf32>
    %79 = vector.broadcast %64 : vector<16x1xf32> to vector<16x1024xf32>
    %80 = arith.subf %58, %79 : vector<16x1024xf32>
    %cst_38 = arith.constant 9.99999974E-6 : f32
    %81 = vector.broadcast %cst_38 : f32 to vector<16x1xf32>
    %82 = arith.addf %78, %81 : vector<16x1xf32>
    %83 = math.rsqrt %82 : vector<16x1xf32>
    %84 = vector.broadcast %83 : vector<16x1xf32> to vector<16x1024xf32>
    %85 = arith.mulf %80, %84 : vector<16x1024xf32>
    %86 = vector.broadcast %59 : vector<1x1024xf32> to vector<16x1024xf32>
    %87 = arith.mulf %85, %86 : vector<16x1024xf32>
    %88 = vector.broadcast %60 : vector<1x1024xf32> to vector<16x1024xf32>
    %89 = arith.addf %87, %88 : vector<16x1024xf32>
    %90 = arith.truncf %89 : vector<16x1024xf32> to vector<16x1024xbf16>
    %c0_39 = arith.constant 0 : index
    %c0_40 = arith.constant 0 : index
    %91 = vector.load %arg12[%c0_39, %c0_40] : memref<1024x128xbf16, #tpu.memory_space<vmem>>, vector<1024x128xbf16>
    %cst_41 = arith.constant dense<0.000000e+00> : vector<16x128xf32>
    %92 = tpu.matmul %90, %91, %cst_41 {dimension_numbers = #tpu.dot_dimension_numbers<[1], [0], [0], [1], [0, 0, 1, 1], [], []>} : vector<16x1024xbf16>, vector<1024x128xbf16>, vector<16x128xf32> -> vector<16x128xf32>
    %c0_42 = arith.constant 0 : index
    %c0_43 = arith.constant 0 : index
    %93 = vector.load %arg13[%c0_42, %c0_43] : memref<1x128xf32, #tpu.memory_space<vmem>>, vector<1x128xf32>
    %94 = vector.broadcast %93 : vector<1x128xf32> to vector<16x128xf32>
    %95 = arith.addf %92, %94 : vector<16x128xf32>
    %96 = arith.negf %95 : vector<16x128xf32>
    %97 = math.exp %96 : vector<16x128xf32>
    %cst_44 = arith.constant 1.000000e+00 : f32
    %98 = vector.broadcast %cst_44 : f32 to vector<16x128xf32>
    %99 = arith.addf %98, %97 : vector<16x128xf32>
    %100 = arith.divf %98, %99 : vector<16x128xf32>
    %c0_45 = arith.constant 0 : index
    %c0_46 = arith.constant 0 : index
    %101 = vector.load %arg14[%c0_45, %c0_46] : memref<16x128xf32, #tpu.memory_space<vmem>>, vector<16x128xf32>
    tpu.vector_store %arg14[%c0_45, %c0_46], %100 {strides = array<i32>} : memref<16x128xf32, #tpu.memory_space<vmem>>, vector<16x128xf32>,
    return
  }
  func.func @transform_0(%arg0: i32) -> (i32, i32) {
    %c0_i32 = arith.constant 0 : i32
    %c0_i32_0 = arith.constant 0 : i32
    return %arg0, %c0_i32 : i32, i32
  }
  func.func @transform_1(%arg0: i32) -> (i32, i32) {
    %c0_i32 = arith.constant 0 : i32
    %c0_i32_0 = arith.constant 0 : i32
    return %arg0, %c0_i32 : i32, i32
  }
  func.func @transform_2(%arg0: i32) -> (i32, i32) {
    %c0_i32 = arith.constant 0 : i32
    %c0_i32_0 = arith.constant 0 : i32
    %c0_i32_1 = arith.constant 0 : i32
    return %c0_i32, %c0_i32_0 : i32, i32
  }
  func.func @transform_3(%arg0: i32) -> (i32, i32) {
    %c0_i32 = arith.constant 0 : i32
    %c0_i32_0 = arith.constant 0 : i32
    %c0_i32_1 = arith.constant 0 : i32
    return %c0_i32, %c0_i32_0 : i32, i32
  }
  func.func @transform_4(%arg0: i32) -> (i32, i32) {
    %c0_i32 = arith.constant 0 : i32
    %c0_i32_0 = arith.constant 0 : i32
    %c0_i32_1 = arith.constant 0 : i32
    return %c0_i32, %c0_i32_0 : i32, i32
  }
  func.func @transform_5(%arg0: i32) -> (i32, i32) {
    %c0_i32 = arith.constant 0 : i32
    %c0_i32_0 = arith.constant 0 : i32
    %c0_i32_1 = arith.constant 0 : i32
    return %c0_i32, %c0_i32_0 : i32, i32
  }
  func.func @transform_6(%arg0: i32) -> (i32, i32) {
    %c0_i32 = arith.constant 0 : i32
    %c0_i32_0 = arith.constant 0 : i32
    %c0_i32_1 = arith.constant 0 : i32
    return %c0_i32, %c0_i32_0 : i32, i32
  }
  func.func @transform_7(%arg0: i32) -> (i32, i32) {
    %c0_i32 = arith.constant 0 : i32
    %c0_i32_0 = arith.constant 0 : i32
    %c0_i32_1 = arith.constant 0 : i32
    return %c0_i32, %c0_i32_0 : i32, i32
  }
  func.func @transform_8(%arg0: i32) -> (i32, i32) {
    %c0_i32 = arith.constant 0 : i32
    %c0_i32_0 = arith.constant 0 : i32
    %c0_i32_1 = arith.constant 0 : i32
    return %c0_i32, %c0_i32_0 : i32, i32
  }
  func.func @transform_9(%arg0: i32) -> (i32, i32) {
    %c0_i32 = arith.constant 0 : i32
    %c0_i32_0 = arith.constant 0 : i32
    %c0_i32_1 = arith.constant 0 : i32
    return %c0_i32, %c0_i32_0 : i32, i32
  }
  func.func @transform_10(%arg0: i32) -> (i32, i32) {
    %c0_i32 = arith.constant 0 : i32
    %c0_i32_0 = arith.constant 0 : i32
    %c0_i32_1 = arith.constant 0 : i32
    return %c0_i32, %c0_i32_0 : i32, i32
  }
  func.func @transform_11(%arg0: i32) -> (i32, i32) {
    %c0_i32 = arith.constant 0 : i32
    %c0_i32_0 = arith.constant 0 : i32
    %c0_i32_1 = arith.constant 0 : i32
    return %c0_i32, %c0_i32_0 : i32, i32
  }
  func.func @transform_12(%arg0: i32) -> (i32, i32) {
    %c0_i32 = arith.constant 0 : i32
    %c0_i32_0 = arith.constant 0 : i32
    %c0_i32_1 = arith.constant 0 : i32
    return %c0_i32, %c0_i32_0 : i32, i32
  }
  func.func @transform_13(%arg0: i32) -> (i32, i32) {
    %c0_i32 = arith.constant 0 : i32
    %c0_i32_0 = arith.constant 0 : i32
    return %arg0, %c0_i32 : i32, i32
  }
}

</mosaic_0001>

<llo_original>
// kernel: discriminator_forward.1
$region0: #{discriminator_forward.1}
  #allocation0 [shape = 'u32[]', space=smem, size = 0x4, offset = 0x4, fixed_abs, tag = 'smem constant byte address 0x4 - core index']
  #allocation1 [shape = 'u32[72,128]{1,0:T(1,128)}', space=vmem, size = 0x9000, scoped, tag = 'internal scratch']
  %s0 = inlined_call_operand.hbm [shape: f32[16,200], index: 0, kind: input, shape index: {}]
  %s1 = inlined_call_operand.hbm [shape: f32[16,50], index: 1, kind: input, shape index: {}]
  %s2 = inlined_call_operand.hbm [shape: bf16[200,512], index: 2, kind: input, shape index: {}]
  %s3 = inlined_call_operand.hbm [shape: bf16[50,512], index: 3, kind: input, shape index: {}]
  %s4 = inlined_call_operand.hbm [shape: f32[1,512], index: 4, kind: input, shape index: {}]
  %s5 = inlined_call_operand.hbm [shape: f32[1,512], index: 5, kind: input, shape index: {}]
  %s6 = inlined_call_operand.hbm [shape: f32[1,512], index: 6, kind: input, shape index: {}]
  %s7 = inlined_call_operand.hbm [shape: bf16[512,1024], index: 7, kind: input, shape index: {}]
  %s8 = inlined_call_operand.hbm [shape: f32[1,1024], index: 8, kind: input, shape index: {}]
  %s9 = inlined_call_operand.vmem [shape: f32[1,1024], index: 9, kind: input, shape index: {}]
  %s10 = inlined_call_operand.hbm [shape: f32[1,1024], index: 10, kind: input, shape index: {}]
  %s11 = inlined_call_operand.hbm [shape: bf16[1024,128], index: 11, kind: input, shape index: {}]
  %s12 = inlined_call_operand.vmem [shape: f32[1,128], index: 12, kind: input, shape index: {}]
  %s13 = inlined_call_operand.vmem [shape: f32[16,128], index: 13, kind: output, shape index: {}]
  %s14 = sld [smem:[#allocation0]]
  $region106: #{discriminator_forward.1} parent=0
    _
  %s16 = ssub.s32 1, %s14
  %s17 = scalar_select 0, %s16, %s14
  $region1: #{discriminator_forward.1} parent=0
    #allocation2 [shape = 'u8[16384]{0}', space=vmem, size = 0x4000, scoped, tag = 'input window, operand 0, single buffered']
    #allocation3 [shape = 's32[1]{0}', space=sflag, size = 0x4, scoped, tag = 'scoped memory for discriminator_forward.1']
    #allocation4 [shape = 'u8[8192]{0}', space=vmem, size = 0x2000, scoped, tag = 'input window, operand 1, single buffered']
    #allocation5 [shape = 's32[1]{0}', space=sflag, size = 0x4, scoped, tag = 'scoped memory for discriminator_forward.1']
    #allocation6 [shape = 'u8[204800]{0}', space=vmem, size = 0x32000, scoped, tag = 'input window, operand 2, single buffered']
    #allocation7 [shape = 'u8[57344]{0}', space=vmem, size = 0xe000, scoped, tag = 'input window, operand 3, single buffered']
    #allocation8 [shape = 's32[1]{0}', space=sflag, size = 0x4, scoped, tag = 'scoped memory for discriminator_forward.1']
    #allocation9 [shape = 'u8[2048]{0}', space=vmem, size = 0x800, scoped, tag = 'input window, operand 4, single buffered']
    #allocation10 [shape = 'u8[2048]{0}', space=vmem, size = 0x800, scoped, tag = 'input window, operand 5, single buffered']
    #allocation11 [shape = 's32[1]{0}', space=sflag, size = 0x4, scoped, tag = 'scoped memory for discriminator_forward.1']
    #allocation12 [shape = 'u8[2048]{0}', space=vmem, size = 0x800, scoped, tag = 'input window, operand 6, single buffered']
    #allocation13 [shape = 'u8[1048576]{0}', space=vmem, size = 0x100000, scoped, tag = 'input window, operand 7, single buffered']
    #allocation14 [shape = 's32[1]{0}', space=sflag, size = 0x4, scoped, tag = 'scoped memory for discriminator_forward.1']
    #allocation15 [shape = 'u8[4096]{0}', space=vmem, size = 0x1000, scoped, tag = 'input window, operand 8, single buffered']
    #allocation16 [shape = 'u8[4096]{0}', space=vmem, size = 0x1000, scoped, tag = 'input window, operand 10, single buffered']
    #allocation17 [shape = 's32[1]{0}', space=sflag, size = 0x4, scoped, tag = 'scoped memory for discriminator_forward.1']
    #allocation18 [shape = 'u8[262144]{0}', space=vmem, size = 0x40000, scoped, tag = 'input window, operand 11, single buffered']
    %18 = vsyncpa [#allocation3], 0
    %19 = vsyncpa [#allocation5], 0
    %20 = vsyncpa [#allocation8], 0
    %21 = vsyncpa [#allocation11], 0
    %22 = vsyncpa [#allocation14], 0
    %23 = vsyncpa [#allocation17], 0
    // Predicated region
    $region2: #{discriminator_forward.1} parent=1 // pred_check
      _
    $region3: #{discriminator_forward.1} parent=1 // pred_check_branch
      %25 = sbr.rel (0) target = $region5
    $region4: #{discriminator_forward.1} parent=1 // pred_region
      %27 = vsyncadd [#allocation3], 0
      %s28 = sshll.u32 %s0, 4
      %s29 = int_to_ptr.hbm [resolvable:$true] %s28
      %s30 = sshll.u32 [#allocation2], 4
      %s31 = int_to_ptr.vmem [resolvable:$true] %s30
      %36 = dma.hbm_to_vmem [thread:$0]  %s29, 512, %s31, [#allocation3], 256, 256, 16
    $region5: #{discriminator_forward.1} parent=1 // pred_fallthru
      _
    // Predicated region
    $region6: #{discriminator_forward.1} parent=1 // pred_check
      _
    $region7: #{discriminator_forward.1} parent=1 // pred_check_branch
      %38 = sbr.rel (0) target = $region9
    $region8: #{discriminator_forward.1} parent=1 // pred_region
      %40 = vsyncadd [#allocation5], 0
      %s41 = sshll.u32 %s1, 4
      %s42 = int_to_ptr.hbm [resolvable:$true] %s41
      %s43 = sshll.u32 [#allocation4], 4
      %s44 = int_to_ptr.vmem [resolvable:$true] %s43
      %49 = dma.hbm_to_vmem [thread:$0]  %s42, 256, %s44, [#allocation5], 128, 128, 8
    $region9: #{discriminator_forward.1} parent=1 // pred_fallthru
      _
    // Predicated region
    $region10: #{discriminator_forward.1} parent=1 // pred_check
      _
    $region11: #{discriminator_forward.1} parent=1 // pred_check_branch
      %51 = sbr.rel (0) target = $region13
    $region12: #{discriminator_forward.1} parent=1 // pred_region
      %53 = vsyncadd [#allocation5], 0
      %s54 = sshll.u32 %s2, 4
      %s55 = int_to_ptr.hbm [resolvable:$true] %s54
      %s56 = sshll.u32 [#allocation6], 4
      %s57 = int_to_ptr.vmem [resolvable:$true] %s56
      %62 = dma.hbm_to_vmem [thread:$0]  %s55, 6400, %s57, [#allocation5], 256, 256, 16
    $region13: #{discriminator_forward.1} parent=1 // pred_fallthru
      _
    // Predicated region
    $region14: #{discriminator_forward.1} parent=1 // pred_check
      _
    $region15: #{discriminator_forward.1} parent=1 // pred_check_branch
      %64 = sbr.rel (0) target = $region17
    $region16: #{discriminator_forward.1} parent=1 // pred_region
      %66 = vsyncadd [#allocation8], 0
      %s67 = sshll.u32 %s3, 4
      %s68 = int_to_ptr.hbm [resolvable:$true] %s67
      %s69 = sshll.u32 [#allocation7], 4
      %s70 = int_to_ptr.vmem [resolvable:$true] %s69
      %75 = dma.hbm_to_vmem [thread:$0]  %s68, 1792, %s70, [#allocation8], 256, 256, 16
    $region17: #{discriminator_forward.1} parent=1 // pred_fallthru
      _
    // Predicated region
    $region18: #{discriminator_forward.1} parent=1 // pred_check
      _
    $region19: #{discriminator_forward.1} parent=1 // pred_check_branch
      %77 = sbr.rel (0) target = $region21
    $region20: #{discriminator_forward.1} parent=1 // pred_region
      %79 = vsyncadd [#allocation8], 0
      %s81 = sshll.u32 %s4, 4
      %s82 = int_to_ptr.hbm [resolvable:$true] %s81
      %s83 = sshll.u32 [#allocation9], 4
      %s84 = int_to_ptr.vmem [resolvable:$true] %s83
      %86 = dma.hbm_to_vmem [thread:$0]  %s82, 64, %s84, [#allocation8]
    $region21: #{discriminator_forward.1} parent=1 // pred_fallthru
      _
    // Predicated region
    $region22: #{discriminator_forward.1} parent=1 // pred_check
      _
    $region23: #{discriminator_forward.1} parent=1 // pred_check_branch
      %88 = sbr.rel (0) target = $region25
    $region24: #{discriminator_forward.1} parent=1 // pred_region
      %90 = vsyncadd [#allocation11], 0
      %s92 = sshll.u32 %s5, 4
      %s93 = int_to_ptr.hbm [resolvable:$true] %s92
      %s94 = sshll.u32 [#allocation10], 4
      %s95 = int_to_ptr.vmem [resolvable:$true] %s94
      %97 = dma.hbm_to_vmem [thread:$0]  %s93, 64, %s95, [#allocation11]
    $region25: #{discriminator_forward.1} parent=1 // pred_fallthru
      _
    // Predicated region
    $region26: #{discriminator_forward.1} parent=1 // pred_check
      _
    $region27: #{discriminator_forward.1} parent=1 // pred_check_branch
      %99 = sbr.rel (0) target = $region29
    $region28: #{discriminator_forward.1} parent=1 // pred_region
      %101 = vsyncadd [#allocation11], 0
      %s103 = sshll.u32 %s6, 4
      %s104 = int_to_ptr.hbm [resolvable:$true] %s103
      %s105 = sshll.u32 [#allocation12], 4
      %s106 = int_to_ptr.vmem [resolvable:$true] %s105
      %108 = dma.hbm_to_vmem [thread:$0]  %s104, 64, %s106, [#allocation11]
    $region29: #{discriminator_forward.1} parent=1 // pred_fallthru
      _
    // Predicated region
    $region30: #{discriminator_forward.1} parent=1 // pred_check
      _
    $region31: #{discriminator_forward.1} parent=1 // pred_check_branch
      %110 = sbr.rel (0) target = $region33
    $region32: #{discriminator_forward.1} parent=1 // pred_region
      %112 = vsyncadd [#allocation14], 0
      %s113 = sshll.u32 %s7, 4
      %s114 = int_to_ptr.hbm [resolvable:$true] %s113
      %s115 = sshll.u32 [#allocation13], 4
      %s116 = int_to_ptr.vmem [resolvable:$true] %s115
      %121 = dma.hbm_to_vmem [thread:$0]  %s114, 32768, %s116, [#allocation14], 512, 512, 32
    $region33: #{discriminator_forward.1} parent=1 // pred_fallthru
      _
    // Predicated region
    $region34: #{discriminator_forward.1} parent=1 // pred_check
      _
    $region35: #{discriminator_forward.1} parent=1 // pred_check_branch
      %123 = sbr.rel (0) target = $region37
    $region36: #{discriminator_forward.1} parent=1 // pred_region
      %125 = vsyncadd [#allocation14], 0
      %s127 = sshll.u32 %s8, 4
      %s128 = int_to_ptr.hbm [resolvable:$true] %s127
      %s129 = sshll.u32 [#allocation15], 4
      %s130 = int_to_ptr.vmem [resolvable:$true] %s129
      %132 = dma.hbm_to_vmem [thread:$0]  %s128, 128, %s130, [#allocation14]
    $region37: #{discriminator_forward.1} parent=1 // pred_fallthru
      _
    // Predicated region
    $region38: #{discriminator_forward.1} parent=1 // pred_check
      _
    $region39: #{discriminator_forward.1} parent=1 // pred_check_branch
      %134 = sbr.rel (0) target = $region41
    $region40: #{discriminator_forward.1} parent=1 // pred_region
      _
    $region41: #{discriminator_forward.1} parent=1 // pred_fallthru
      _
    // Predicated region
    $region42: #{discriminator_forward.1} parent=1 // pred_check
      _
    $region43: #{discriminator_forward.1} parent=1 // pred_check_branch
      %136 = sbr.rel (0) target = $region45
    $region44: #{discriminator_forward.1} parent=1 // pred_region
      %138 = vsyncadd [#allocation17], 0
      %s140 = sshll.u32 %s10, 4
      %s141 = int_to_ptr.hbm [resolvable:$true] %s140
      %s142 = sshll.u32 [#allocation16], 4
      %s143 = int_to_ptr.vmem [resolvable:$true] %s142
      %145 = dma.hbm_to_vmem [thread:$0]  %s141, 128, %s143, [#allocation17]
    $region45: #{discriminator_forward.1} parent=1 // pred_fallthru
      _
    // Predicated region
    $region46: #{discriminator_forward.1} parent=1 // pred_check
      _
    $region47: #{discriminator_forward.1} parent=1 // pred_check_branch
      %147 = sbr.rel (0) target = $region49
    $region48: #{discriminator_forward.1} parent=1 // pred_region
      %149 = vsyncadd [#allocation17], 0
      %s150 = sshll.u32 %s11, 4
      %s151 = int_to_ptr.hbm [resolvable:$true] %s150
      %s152 = sshll.u32 [#allocation18], 4
      %s153 = int_to_ptr.vmem [resolvable:$true] %s152
      %158 = dma.hbm_to_vmem [thread:$0]  %s151, 8192, %s153, [#allocation17], 64, 64, 4
    $region49: #{discriminator_forward.1} parent=1 // pred_fallthru
      _
    // Predicated region
    $region50: #{discriminator_forward.1} parent=1 // pred_check
      _
    $region51: #{discriminator_forward.1} parent=1 // pred_check_branch
      %160 = sbr.rel (0) target = $region53
    $region52: #{discriminator_forward.1} parent=1 // pred_region
      _
    $region53: #{discriminator_forward.1} parent=1 // pred_fallthru
      _
    // Predicated region
    $region54: #{discriminator_forward.1} parent=1 // pred_check
      _
    $region55: #{discriminator_forward.1} parent=1 // pred_check_branch
      %162 = sbr.rel (0) target = $region57
    $region56: #{discriminator_forward.1} parent=1 // pred_region
      %164 = dma.done [#allocation3], 512
    $region57: #{discriminator_forward.1} parent=1 // pred_fallthru
      _
    // Predicated region
    $region58: #{discriminator_forward.1} parent=1 // pred_check
      _
    $region59: #{discriminator_forward.1} parent=1 // pred_check_branch
      %166 = sbr.rel (0) target = $region61
    $region60: #{discriminator_forward.1} parent=1 // pred_region
      %168 = dma.done [#allocation5], 256
    $region61: #{discriminator_forward.1} parent=1 // pred_fallthru
      _
    // Predicated region
    $region62: #{discriminator_forward.1} parent=1 // pred_check
      _
    $region63: #{discriminator_forward.1} parent=1 // pred_check_branch
      %170 = sbr.rel (0) target = $region65
    $region64: #{discriminator_forward.1} parent=1 // pred_region
      %172 = dma.done [#allocation5], 6400
    $region65: #{discriminator_forward.1} parent=1 // pred_fallthru
      _
    // Predicated region
    $region66: #{discriminator_forward.1} parent=1 // pred_check
      _
    $region67: #{discriminator_forward.1} parent=1 // pred_check_branch
      %174 = sbr.rel (0) target = $region69
    $region68: #{discriminator_forward.1} parent=1 // pred_region
      %176 = dma.done [#allocation8], 1792
    $region69: #{discriminator_forward.1} parent=1 // pred_fallthru
      _
    // Predicated region
    $region70: #{discriminator_forward.1} parent=1 // pred_check
      _
    $region71: #{discriminator_forward.1} parent=1 // pred_check_branch
      %178 = sbr.rel (0) target = $region73
    $region72: #{discriminator_forward.1} parent=1 // pred_region
      %180 = dma.done [#allocation8], 64
    $region73: #{discriminator_forward.1} parent=1 // pred_fallthru
      _
    // Predicated region
    $region74: #{discriminator_forward.1} parent=1 // pred_check
      _
    $region75: #{discriminator_forward.1} parent=1 // pred_check_branch
      %182 = sbr.rel (0) target = $region77
    $region76: #{discriminator_forward.1} parent=1 // pred_region
      %184 = dma.done [#allocation11], 64
    $region77: #{discriminator_forward.1} parent=1 // pred_fallthru
      _
    // Predicated region
    $region78: #{discriminator_forward.1} parent=1 // pred_check
      _
    $region79: #{discriminator_forward.1} parent=1 // pred_check_branch
      %186 = sbr.rel (0) target = $region81
    $region80: #{discriminator_forward.1} parent=1 // pred_region
      %188 = dma.done [#allocation11], 64
    $region81: #{discriminator_forward.1} parent=1 // pred_fallthru
      _
    // Predicated region
    $region82: #{discriminator_forward.1} parent=1 // pred_check
      _
    $region83: #{discriminator_forward.1} parent=1 // pred_check_branch
      %190 = sbr.rel (0) target = $region85
    $region84: #{discriminator_forward.1} parent=1 // pred_region
      %192 = dma.done [#allocation14], 32768
    $region85: #{discriminator_forward.1} parent=1 // pred_fallthru
      _
    // Predicated region
    $region86: #{discriminator_forward.1} parent=1 // pred_check
      _
    $region87: #{discriminator_forward.1} parent=1 // pred_check_branch
      %194 = sbr.rel (0) target = $region89
    $region88: #{discriminator_forward.1} parent=1 // pred_region
      %196 = dma.done [#allocation14], 128
    $region89: #{discriminator_forward.1} parent=1 // pred_fallthru
      _
    // Predicated region
    $region90: #{discriminator_forward.1} parent=1 // pred_check
      _
    $region91: #{discriminator_forward.1} parent=1 // pred_check_branch
      %198 = sbr.rel (0) target = $region93
    $region92: #{discriminator_forward.1} parent=1 // pred_region
      %200 = dma.done [#allocation17], 128
    $region93: #{discriminator_forward.1} parent=1 // pred_fallthru
      _
    // Predicated region
    $region94: #{discriminator_forward.1} parent=1 // pred_check
      _
    $region95: #{discriminator_forward.1} parent=1 // pred_check_branch
      %202 = sbr.rel (0) target = $region97
    $region96: #{discriminator_forward.1} parent=1 // pred_region
      %204 = dma.done [#allocation17], 8192
    $region97: #{discriminator_forward.1} parent=1 // pred_fallthru
      _
    %v206 = vld [vmem:[#allocation2] sm:$0xff]
    %v207 = vld [vmem:[#allocation2 + $0x8] sm:$0xff]
    %v208 = vld [vmem:[#allocation2 + $0x10] sm:$0xff]
    %v209 = vld [vmem:[#allocation2 + $0x18] sm:$0xff]
    %v210 = vpack.c.bf16 %v208, %v206
    %v211 = vpack.c.bf16 %v209, %v207
    %v212 = vld [vmem:[#allocation4] sm:$0xff]
    %v213 = vld [vmem:[#allocation4 + $0x8] sm:$0xff]
    %v214 = vpack.c.bf16 %v213, %v212
    %v215 = vld [vmem:[#allocation6] sm:$0xff]
    %v216 = vld [vmem:[#allocation6 + $0x8] sm:$0xff]
    %v217 = vld [vmem:[#allocation6 + $0x10] sm:$0xff]
    %v218 = vld [vmem:[#allocation6 + $0x18] sm:$0xff]
    %v219 = vld [vmem:[#allocation6 + $0x20] sm:$0xff]
    %v220 = vld [vmem:[#allocation6 + $0x28] sm:$0xff]
    %v221 = vld [vmem:[#allocation6 + $0x30] sm:$0xff]
    %v222 = vld [vmem:[#allocation6 + $0x38] sm:$0xff]
    %v223 = vld [vmem:[#allocation6 + $0x40] sm:$0xff]
    %v224 = vld [vmem:[#allocation6 + $0x48] sm:$0xff]
    %v225 = vld [vmem:[#allocation6 + $0x50] sm:$0xff]
    %v226 = vld [vmem:[#allocation6 + $0x58] sm:$0xff]
    %v227 = vld [vmem:[#allocation6 + $0x60] sm:$0xff]
    %v228 = vld [vmem:[#allocation6 + $0x68] sm:$0xff]
    %v229 = vld [vmem:[#allocation6 + $0x70] sm:$0xff]
    %v230 = vld [vmem:[#allocation6 + $0x78] sm:$0xff]
    %v231 = vld [vmem:[#allocation6 + $0x80] sm:$0xff]
    %v232 = vld [vmem:[#allocation6 + $0x88] sm:$0xff]
    %v233 = vld [vmem:[#allocation6 + $0x90] sm:$0xff]
    %v234 = vld [vmem:[#allocation6 + $0x98] sm:$0xff]
    %v235 = vld [vmem:[#allocation6 + $0xa0] sm:$0xff]
    %v236 = vld [vmem:[#allocation6 + $0xa8] sm:$0xff]
    %v237 = vld [vmem:[#allocation6 + $0xb0] sm:$0xff]
    %v238 = vld [vmem:[#allocation6 + $0xb8] sm:$0xff]
    %v239 = vld [vmem:[#allocation6 + $0xc0] sm:$0xff]
    %v240 = vld [vmem:[#allocation6 + $0xc8] sm:$0xff]
    %v241 = vld [vmem:[#allocation6 + $0xd0] sm:$0xff]
    %v242 = vld [vmem:[#allocation6 + $0xd8] sm:$0xff]
    %v243 = vld [vmem:[#allocation6 + $0xe0] sm:$0xff]
    %v244 = vld [vmem:[#allocation6 + $0xe8] sm:$0xff]
    %v245 = vld [vmem:[#allocation6 + $0xf0] sm:$0xff]
    %v246 = vld [vmem:[#allocation6 + $0xf8] sm:$0xff]
    %v247 = vld [vmem:[#allocation6 + $0x100] sm:$0xff]
    %v248 = vld [vmem:[#allocation6 + $0x108] sm:$0xff]
    %v249 = vld [vmem:[#allocation6 + $0x110] sm:$0xff]
    %v250 = vld [vmem:[#allocation6 + $0x118] sm:$0xff]
    %v251 = vld [vmem:[#allocation6 + $0x120] sm:$0xff]
    %v252 = vld [vmem:[#allocation6 + $0x128] sm:$0xff]
    %v253 = vld [vmem:[#allocation6 + $0x130] sm:$0xff]
    %v254 = vld [vmem:[#allocation6 + $0x138] sm:$0xff]
    %v255 = vld [vmem:[#allocation6 + $0x140] sm:$0xff]
    %v256 = vld [vmem:[#allocation6 + $0x148] sm:$0xff]
    %v257 = vld [vmem:[#allocation6 + $0x150] sm:$0xff]
    %v258 = vld [vmem:[#allocation6 + $0x158] sm:$0xff]
    %v259 = vld [vmem:[#allocation6 + $0x160] sm:$0xff]
    %v260 = vld [vmem:[#allocation6 + $0x168] sm:$0xff]
    %v261 = vld [vmem:[#allocation6 + $0x170] sm:$0xff]
    %v262 = vld [vmem:[#allocation6 + $0x178] sm:$0xff]
    %v263 = vld [vmem:[#allocation6 + $0x180] sm:$0xff]
    %v264 = vld [vmem:[#allocation6 + $0x188] sm:$0xff]
    %v265 = vld [vmem:[#allocation7] sm:$0xff]
    %v266 = vld [vmem:[#allocation7 + $0x8] sm:$0xff]
    %v267 = vld [vmem:[#allocation7 + $0x10] sm:$0xff]
    %v268 = vld [vmem:[#allocation7 + $0x18] sm:$0xff]
    %v269 = vld [vmem:[#allocation7 + $0x20] sm:$0xff]
    %v270 = vld [vmem:[#allocation7 + $0x28] sm:$0xff]
    %v271 = vld [vmem:[#allocation7 + $0x30] sm:$0xff]
    %v272 = vld [vmem:[#allocation7 + $0x38] sm:$0xff]
    %v273 = vld [vmem:[#allocation7 + $0x40] sm:$0xff]
    %v274 = vld [vmem:[#allocation7 + $0x48] sm:$0xff]
    %v275 = vld [vmem:[#allocation7 + $0x50] sm:$0xff]
    %v276 = vld [vmem:[#allocation7 + $0x58] sm:$0xff]
    %v277 = vld [vmem:[#allocation7 + $0x60] sm:$0x11]
    %v278 = vld [vmem:[#allocation7 + $0x68] sm:$0x11]
    %v293 = vunpack.c.l.b16 %v265
    %v294 = vunpack.c.h.b16 %v265
    %v295 = vunpack.c.l.b16 %v266
    %v296 = vunpack.c.h.b16 %v266
    %v297 = vunpack.c.l.b16 %v267
    %v298 = vunpack.c.h.b16 %v267
    %v299 = vunpack.c.l.b16 %v268
    %v300 = vunpack.c.h.b16 %v268
    %v301 = vunpack.c.l.b16 %v269
    %v302 = vunpack.c.h.b16 %v269
    %v303 = vunpack.c.l.b16 %v270
    %v304 = vunpack.c.h.b16 %v270
    %v305 = vunpack.c.l.b16 %v271
    %v306 = vunpack.c.h.b16 %v271
    %v307 = vunpack.c.l.b16 %v272
    %v308 = vunpack.c.h.b16 %v272
    %v309 = vunpack.c.l.b16 %v273
    %v310 = vunpack.c.h.b16 %v273
    %v311 = vunpack.c.l.b16 %v274
    %v312 = vunpack.c.h.b16 %v274
    %v313 = vunpack.c.l.b16 %v275
    %v314 = vunpack.c.h.b16 %v275
    %v315 = vunpack.c.l.b16 %v276
    %v316 = vunpack.c.h.b16 %v276
    %v317 = vunpack.c.l.b16 %v277
    %v318 = vunpack.c.h.b16 %v277
    %v319 = vunpack.c.l.b16 %v278
    %v320 = vunpack.c.h.b16 %v278
    %v321 = vpack.c.b16 %v297, %v293
    %v322 = vpack.c.b16 %v298, %v294
    %v323 = vpack.c.b16 %v299, %v295
    %v324 = vpack.c.b16 %v300, %v296
    %v325 = vpack.c.b16 %v305, %v301
    %v326 = vpack.c.b16 %v306, %v302
    %v327 = vpack.c.b16 %v307, %v303
    %v328 = vpack.c.b16 %v308, %v304
    %v329 = vpack.c.b16 %v313, %v309
    %v330 = vpack.c.b16 %v314, %v310
    %v331 = vpack.c.b16 %v315, %v311
    %v332 = vpack.c.b16 %v316, %v312
    %v333 = vpack.c.b16 %v317, %v317
    %v334 = vpack.c.b16 %v318, %v318
    %v335 = vpack.c.b16 %v319, %v319
    %v336 = vpack.c.b16 %v320, %v320
    %vm349 = vcmask 408576
    %v351 = vsel %vm349, %v214, 0
    %vm353 = vcmask 1040384
    %v355 = vsel %vm353, %v333, 0
    %v358 = vsel %vm353, %v334, 0
    %v361 = vsel %vm353, %v335, 0
    %v364 = vsel %vm353, %v336, 0
    %366 = vmatpush.bf16.msra.mxu0 0
    %367 = vmatpush.bf16.msra.mxu0 0
    %368 = vmatpush.bf16.msra.mxu0 0
    %369 = vmatpush.bf16.msra.mxu0 0
    %370 = vmatpush.bf16.msra.mxu0 %v355
    %371 = vmatpush.bf16.msra.mxu0 %v329
    %372 = vmatpush.bf16.msra.mxu0 %v325
    %373 = vmatpush.bf16.msra.mxu0 %v321
    %374 = vmatmul.bf16.gmra.mxu0 %v351
    %v375 = vpop.f32.mrf.mxu0
    %v376 = vadd.f32 0.0, %v375
    %v377 = vpop.f32.mrf.mxu0
    %v378 = vadd.f32 0.0, %v377
    %379 = vdwg.mxu0
    %380 = vmatpush.bf16.msra.mxu0 0
    %381 = vmatpush.bf16.msra.mxu0 0
    %382 = vmatpush.bf16.msra.mxu0 0
    %383 = vmatpush.bf16.msra.mxu0 0
    %384 = vmatpush.bf16.msra.mxu0 %v358
    %385 = vmatpush.bf16.msra.mxu0 %v330
    %386 = vmatpush.bf16.msra.mxu0 %v326
    %387 = vmatpush.bf16.msra.mxu0 %v322
    %388 = vmatmul.bf16.gmra.mxu0 %v351
    %v389 = vpop.f32.mrf.mxu0
    %v390 = vadd.f32 0.0, %v389
    %v391 = vpop.f32.mrf.mxu0
    %v392 = vadd.f32 0.0, %v391
    %393 = vdwg.mxu0
    %394 = vmatpush.bf16.msra.mxu0 0
    %395 = vmatpush.bf16.msra.mxu0 0
    %396 = vmatpush.bf16.msra.mxu0 0
    %397 = vmatpush.bf16.msra.mxu0 0
    %398 = vmatpush.bf16.msra.mxu0 %v361
    %399 = vmatpush.bf16.msra.mxu0 %v331
    %400 = vmatpush.bf16.msra.mxu0 %v327
    %401 = vmatpush.bf16.msra.mxu0 %v323
    %402 = vmatmul.bf16.gmra.mxu0 %v351
    %v403 = vpop.f32.mrf.mxu0
    %v404 = vadd.f32 0.0, %v403
    %v405 = vpop.f32.mrf.mxu0
    %v406 = vadd.f32 0.0, %v405
    %407 = vdwg.mxu0
    %408 = vmatpush.bf16.msra.mxu0 0
    %409 = vmatpush.bf16.msra.mxu0 0
    %410 = vmatpush.bf16.msra.mxu0 0
    %411 = vmatpush.bf16.msra.mxu0 0
    %412 = vmatpush.bf16.msra.mxu0 %v364
    %413 = vmatpush.bf16.msra.mxu0 %v332
    %414 = vmatpush.bf16.msra.mxu0 %v328
    %415 = vmatpush.bf16.msra.mxu0 %v324
    %416 = vmatmul.bf16.gmra.mxu0 %v351
    %v417 = vpop.f32.mrf.mxu0
    %v418 = vadd.f32 0.0, %v417
    %v419 = vpop.f32.mrf.mxu0
    %v420 = vadd.f32 0.0, %v419
    %421 = vdwg.mxu0
    %v472 = vunpack.c.l.b16 %v215
    %v473 = vunpack.c.h.b16 %v215
    %v474 = vunpack.c.l.b16 %v216
    %v475 = vunpack.c.h.b16 %v216
    %v476 = vunpack.c.l.b16 %v217
    %v477 = vunpack.c.h.b16 %v217
    %v478 = vunpack.c.l.b16 %v218
    %v479 = vunpack.c.h.b16 %v218
    %v480 = vunpack.c.l.b16 %v219
    %v481 = vunpack.c.h.b16 %v219
    %v482 = vunpack.c.l.b16 %v220
    %v483 = vunpack.c.h.b16 %v220
    %v484 = vunpack.c.l.b16 %v221
    %v485 = vunpack.c.h.b16 %v221
    %v486 = vunpack.c.l.b16 %v222
    %v487 = vunpack.c.h.b16 %v222
    %v488 = vunpack.c.l.b16 %v223
    %v489 = vunpack.c.h.b16 %v223
    %v490 = vunpack.c.l.b16 %v224
    %v491 = vunpack.c.h.b16 %v224
    %v492 = vunpack.c.l.b16 %v225
    %v493 = vunpack.c.h.b16 %v225
    %v494 = vunpack.c.l.b16 %v226
    %v495 = vunpack.c.h.b16 %v226
    %v496 = vunpack.c.l.b16 %v227
    %v497 = vunpack.c.h.b16 %v227
    %v498 = vunpack.c.l.b16 %v228
    %v499 = vunpack.c.h.b16 %v228
    %v500 = vunpack.c.l.b16 %v229
    %v501 = vunpack.c.h.b16 %v229
    %v502 = vunpack.c.l.b16 %v230
    %v503 = vunpack.c.h.b16 %v230
    %v504 = vunpack.c.l.b16 %v231
    %v505 = vunpack.c.h.b16 %v231
    %v506 = vunpack.c.l.b16 %v232
    %v507 = vunpack.c.h.b16 %v232
    %v508 = vunpack.c.l.b16 %v233
    %v509 = vunpack.c.h.b16 %v233
    %v510 = vunpack.c.l.b16 %v234
    %v511 = vunpack.c.h.b16 %v234
    %v512 = vunpack.c.l.b16 %v235
    %v513 = vunpack.c.h.b16 %v235
    %v514 = vunpack.c.l.b16 %v236
    %v515 = vunpack.c.h.b16 %v236
    %v516 = vunpack.c.l.b16 %v237
    %v517 = vunpack.c.h.b16 %v237
    %v518 = vunpack.c.l.b16 %v238
    %v519 = vunpack.c.h.b16 %v238
    %v520 = vunpack.c.l.b16 %v239
    %v521 = vunpack.c.h.b16 %v239
    %v522 = vunpack.c.l.b16 %v240
    %v523 = vunpack.c.h.b16 %v240
    %v524 = vunpack.c.l.b16 %v241
    %v525 = vunpack.c.h.b16 %v241
    %v526 = vunpack.c.l.b16 %v242
    %v527 = vunpack.c.h.b16 %v242
    %v528 = vunpack.c.l.b16 %v243
    %v529 = vunpack.c.h.b16 %v243
    %v530 = vunpack.c.l.b16 %v244
    %v531 = vunpack.c.h.b16 %v244
    %v532 = vunpack.c.l.b16 %v245
    %v533 = vunpack.c.h.b16 %v245
    %v534 = vunpack.c.l.b16 %v246
    %v535 = vunpack.c.h.b16 %v246
    %v536 = vunpack.c.l.b16 %v247
    %v537 = vunpack.c.h.b16 %v247
    %v538 = vunpack.c.l.b16 %v248
    %v539 = vunpack.c.h.b16 %v248
    %v540 = vunpack.c.l.b16 %v249
    %v541 = vunpack.c.h.b16 %v249
    %v542 = vunpack.c.l.b16 %v250
    %v543 = vunpack.c.h.b16 %v250
    %v544 = vunpack.c.l.b16 %v251
    %v545 = vunpack.c.h.b16 %v251
    %v546 = vunpack.c.l.b16 %v252
    %v547 = vunpack.c.h.b16 %v252
    %v548 = vunpack.c.l.b16 %v253
    %v549 = vunpack.c.h.b16 %v253
    %v550 = vunpack.c.l.b16 %v254
    %v551 = vunpack.c.h.b16 %v254
    %v552 = vunpack.c.l.b16 %v255
    %v553 = vunpack.c.h.b16 %v255
    %v554 = vunpack.c.l.b16 %v256
    %v555 = vunpack.c.h.b16 %v256
    %v556 = vunpack.c.l.b16 %v257
    %v557 = vunpack.c.h.b16 %v257
    %v558 = vunpack.c.l.b16 %v258
    %v559 = vunpack.c.h.b16 %v258
    %v560 = vunpack.c.l.b16 %v259
    %v561 = vunpack.c.h.b16 %v259
    %v562 = vunpack.c.l.b16 %v260
    %v563 = vunpack.c.h.b16 %v260
    %v564 = vunpack.c.l.b16 %v261
    %v565 = vunpack.c.h.b16 %v261
    %v566 = vunpack.c.l.b16 %v262
    %v567 = vunpack.c.h.b16 %v262
    %v568 = vunpack.c.l.b16 %v263
    %v569 = vunpack.c.h.b16 %v263
    %v570 = vunpack.c.l.b16 %v264
    %v571 = vunpack.c.h.b16 %v264
    %v572 = vpack.c.b16 %v476, %v472
    %v573 = vpack.c.b16 %v477, %v473
    %v574 = vpack.c.b16 %v478, %v474
    %v575 = vpack.c.b16 %v479, %v475
    %v576 = vpack.c.b16 %v484, %v480
    %v577 = vpack.c.b16 %v485, %v481
    %v578 = vpack.c.b16 %v486, %v482
    %v579 = vpack.c.b16 %v487, %v483
    %v580 = vpack.c.b16 %v492, %v488
    %v581 = vpack.c.b16 %v493, %v489
    %v582 = vpack.c.b16 %v494, %v490
    %v583 = vpack.c.b16 %v495, %v491
    %v584 = vpack.c.b16 %v500, %v496
    %v585 = vpack.c.b16 %v501, %v497
    %v586 = vpack.c.b16 %v502, %v498
    %v587 = vpack.c.b16 %v503, %v499
    %v588 = vpack.c.b16 %v508, %v504
    %v589 = vpack.c.b16 %v509, %v505
    %v590 = vpack.c.b16 %v510, %v506
    %v591 = vpack.c.b16 %v511, %v507
    %v592 = vpack.c.b16 %v516, %v512
    %v593 = vpack.c.b16 %v517, %v513
    %v594 = vpack.c.b16 %v518, %v514
    %v595 = vpack.c.b16 %v519, %v515
    %v596 = vpack.c.b16 %v524, %v520
    %v597 = vpack.c.b16 %v525, %v521
    %v598 = vpack.c.b16 %v526, %v522
    %v599 = vpack.c.b16 %v527, %v523
    %v600 = vpack.c.b16 %v532, %v528
    %v601 = vpack.c.b16 %v533, %v529
    %v602 = vpack.c.b16 %v534, %v530
    %v603 = vpack.c.b16 %v535, %v531
    %v604 = vpack.c.b16 %v540, %v536
    %v605 = vpack.c.b16 %v541, %v537
    %v606 = vpack.c.b16 %v542, %v538
    %v607 = vpack.c.b16 %v543, %v539
    %v608 = vpack.c.b16 %v548, %v544
    %v609 = vpack.c.b16 %v549, %v545
    %v610 = vpack.c.b16 %v550, %v546
    %v611 = vpack.c.b16 %v551, %v547
    %v612 = vpack.c.b16 %v556, %v552
    %v613 = vpack.c.b16 %v557, %v553
    %v614 = vpack.c.b16 %v558, %v554
    %v615 = vpack.c.b16 %v559, %v555
    %v616 = vpack.c.b16 %v564, %v560
    %v617 = vpack.c.b16 %v565, %v561
    %v618 = vpack.c.b16 %v566, %v562
    %v619 = vpack.c.b16 %v567, %v563
    %v620 = vpack.c.b16 %v568, %v568
    %v621 = vpack.c.b16 %v569, %v569
    %v622 = vpack.c.b16 %v570, %v570
    %v623 = vpack.c.b16 %v571, %v571
    %vm672 = vcmask 588800
    %v674 = vsel %vm672, %v211, 0
    %vm676 = vcmask 1043456
    %v678 = vsel %vm676, %v620, 0
    %v681 = vsel %vm676, %v621, 0
    %v684 = vsel %vm676, %v622, 0
    %v687 = vsel %vm676, %v623, 0
    %689 = vmatpush.bf16.msra.mxu0 %v600
    %690 = vmatpush.bf16.msra.mxu0 %v596
    %691 = vmatpush.bf16.msra.mxu0 %v592
    %692 = vmatpush.bf16.msra.mxu0 %v588
    %693 = vmatpush.bf16.msra.mxu0 %v584
    %694 = vmatpush.bf16.msra.mxu0 %v580
    %695 = vmatpush.bf16.msra.mxu0 %v576
    %696 = vmatpush.bf16.msra.mxu0 %v572
    %697 = vmatmul.bf16.gmra.mxu0 %v210
    %v698 = vpop.f32.mrf.mxu0
    %v699 = vadd.f32 %v376, %v698
    %v700 = vpop.f32.mrf.mxu0
    %v701 = vadd.f32 %v378, %v700
    %702 = vdwg.mxu0
    %703 = vmatpush.bf16.msra.mxu0 0
    %704 = vmatpush.bf16.msra.mxu0 0
    %705 = vmatpush.bf16.msra.mxu0 0
    %706 = vmatpush.bf16.msra.mxu0 %v678
    %707 = vmatpush.bf16.msra.mxu0 %v616
    %708 = vmatpush.bf16.msra.mxu0 %v612
    %709 = vmatpush.bf16.msra.mxu0 %v608
    %710 = vmatpush.bf16.msra.mxu0 %v604
    %711 = vmatmul.bf16.gmra.mxu0 %v674
    %v712 = vpop.f32.mrf.mxu0
    %v713 = vadd.f32 %v699, %v712
    %v714 = vpop.f32.mrf.mxu0
    %v715 = vadd.f32 %v701, %v714
    %716 = vdwg.mxu0
    %717 = vmatpush.bf16.msra.mxu0 %v601
    %718 = vmatpush.bf16.msra.mxu0 %v597
    %719 = vmatpush.bf16.msra.mxu0 %v593
    %720 = vmatpush.bf16.msra.mxu0 %v589
    %721 = vmatpush.bf16.msra.mxu0 %v585
    %722 = vmatpush.bf16.msra.mxu0 %v581
    %723 = vmatpush.bf16.msra.mxu0 %v577
    %724 = vmatpush.bf16.msra.mxu0 %v573
    %725 = vmatmul.bf16.gmra.mxu0 %v210
    %v726 = vpop.f32.mrf.mxu0
    %v727 = vadd.f32 %v390, %v726
    %v728 = vpop.f32.mrf.mxu0
    %v729 = vadd.f32 %v392, %v728
    %730 = vdwg.mxu0
    %731 = vmatpush.bf16.msra.mxu0 0
    %732 = vmatpush.bf16.msra.mxu0 0
    %733 = vmatpush.bf16.msra.mxu0 0
    %734 = vmatpush.bf16.msra.mxu0 %v681
    %735 = vmatpush.bf16.msra.mxu0 %v617
    %736 = vmatpush.bf16.msra.mxu0 %v613
    %737 = vmatpush.bf16.msra.mxu0 %v609
    %738 = vmatpush.bf16.msra.mxu0 %v605
    %739 = vmatmul.bf16.gmra.mxu0 %v674
    %v740 = vpop.f32.mrf.mxu0
    %v741 = vadd.f32 %v727, %v740
    %v742 = vpop.f32.mrf.mxu0
    %v743 = vadd.f32 %v729, %v742
    %744 = vdwg.mxu0
    %745 = vmatpush.bf16.msra.mxu0 %v602
    %746 = vmatpush.bf16.msra.mxu0 %v598
    %747 = vmatpush.bf16.msra.mxu0 %v594
    %748 = vmatpush.bf16.msra.mxu0 %v590
    %749 = vmatpush.bf16.msra.mxu0 %v586
    %750 = vmatpush.bf16.msra.mxu0 %v582
    %751 = vmatpush.bf16.msra.mxu0 %v578
    %752 = vmatpush.bf16.msra.mxu0 %v574
    %753 = vmatmul.bf16.gmra.mxu0 %v210
    %v754 = vpop.f32.mrf.mxu0
    %v755 = vadd.f32 %v404, %v754
    %v756 = vpop.f32.mrf.mxu0
    %v757 = vadd.f32 %v406, %v756
    %758 = vdwg.mxu0
    %759 = vmatpush.bf16.msra.mxu0 0
    %760 = vmatpush.bf16.msra.mxu0 0
    %761 = vmatpush.bf16.msra.mxu0 0
    %762 = vmatpush.bf16.msra.mxu0 %v684
    %763 = vmatpush.bf16.msra.mxu0 %v618
    %764 = vmatpush.bf16.msra.mxu0 %v614
    %765 = vmatpush.bf16.msra.mxu0 %v610
    %766 = vmatpush.bf16.msra.mxu0 %v606
    %767 = vmatmul.bf16.gmra.mxu0 %v674
    %v768 = vpop.f32.mrf.mxu0
    %v769 = vadd.f32 %v755, %v768
    %v770 = vpop.f32.mrf.mxu0
    %v771 = vadd.f32 %v757, %v770
    %772 = vdwg.mxu0
    %773 = vmatpush.bf16.msra.mxu0 %v603
    %774 = vmatpush.bf16.msra.mxu0 %v599
    %775 = vmatpush.bf16.msra.mxu0 %v595
    %776 = vmatpush.bf16.msra.mxu0 %v591
    %777 = vmatpush.bf16.msra.mxu0 %v587
    %778 = vmatpush.bf16.msra.mxu0 %v583
    %779 = vmatpush.bf16.msra.mxu0 %v579
    %780 = vmatpush.bf16.msra.mxu0 %v575
    %781 = vmatmul.bf16.gmra.mxu0 %v210
    %v782 = vpop.f32.mrf.mxu0
    %v783 = vadd.f32 %v418, %v782
    %v784 = vpop.f32.mrf.mxu0
    %v785 = vadd.f32 %v420, %v784
    %786 = vdwg.mxu0
    %787 = vmatpush.bf16.msra.mxu0 0
    %788 = vmatpush.bf16.msra.mxu0 0
    %789 = vmatpush.bf16.msra.mxu0 0
    %790 = vmatpush.bf16.msra.mxu0 %v687
    %791 = vmatpush.bf16.msra.mxu0 %v619
    %792 = vmatpush.bf16.msra.mxu0 %v615
    %793 = vmatpush.bf16.msra.mxu0 %v611
    %794 = vmatpush.bf16.msra.mxu0 %v607
    %795 = vmatmul.bf16.gmra.mxu0 %v674
    %v796 = vpop.f32.mrf.mxu0
    %v797 = vadd.f32 %v783, %v796
    %v798 = vpop.f32.mrf.mxu0
    %v799 = vadd.f32 %v785, %v798
    %800 = vdwg.mxu0
    %v801 = vld [vmem:[#allocation9] sm:$0xf]
    %v803 = vperm.slane %v801, 0
    %v804 = vperm.slane %v801, 1
    %v805 = vperm.slane %v801, 2
    %v806 = vperm.slane %v801, 3
    %v811 = vadd.f32 %v713, %v803
    %v812 = vadd.f32 %v741, %v804
    %v813 = vadd.f32 %v769, %v805
    %v814 = vadd.f32 %v797, %v806
    %v815 = vadd.f32 %v715, %v803
    %v816 = vadd.f32 %v743, %v804
    %v817 = vadd.f32 %v771, %v805
    %v818 = vadd.f32 %v799, %v806
    %vm819 = vcmp.ge.f32.partialorder %v811, 0.0
    %vm820 = vcmp.ge.f32.partialorder %v812, 0.0
    %vm821 = vcmp.ge.f32.partialorder %v813, 0.0
    %vm822 = vcmp.ge.f32.partialorder %v814, 0.0
    %vm823 = vcmp.ge.f32.partialorder %v815, 0.0
    %vm824 = vcmp.ge.f32.partialorder %v816, 0.0
    %vm825 = vcmp.ge.f32.partialorder %v817, 0.0
    %vm826 = vcmp.ge.f32.partialorder %v818, 0.0
    %v827 = vmul.f32 %v811, 0.01
    %v828 = vmul.f32 %v812, 0.01
    %v829 = vmul.f32 %v813, 0.01
    %v830 = vmul.f32 %v814, 0.01
    %v831 = vmul.f32 %v815, 0.01
    %v832 = vmul.f32 %v816, 0.01
    %v833 = vmul.f32 %v817, 0.01
    %v834 = vmul.f32 %v818, 0.01
    %v835 = vsel %vm819, %v811, %v827
    %v836 = vsel %vm820, %v812, %v828
    %v837 = vsel %vm821, %v813, %v829
    %v838 = vsel %vm822, %v814, %v830
    %v839 = vsel %vm823, %v815, %v831
    %v840 = vsel %vm824, %v816, %v832
    %v841 = vsel %vm825, %v817, %v833
    %v842 = vsel %vm826, %v818, %v834
    %v843 = vld [vmem:[#allocation10] sm:$0xf]
    %v844 = vld [vmem:[#allocation12] sm:$0xf]
    %v845 = vadd.f32 %v835, %v836
    %v846 = vadd.f32 %v845, %v837
    %v847 = vadd.f32 %v846, %v838
    %848 = vadd.xlane.f32.xlu0 %v847
    %v849 = vpop.xlane.xlu0 %848
    %v850 = vadd.f32 %v839, %v840
    %v851 = vadd.f32 %v850, %v841
    %v852 = vadd.f32 %v851, %v842
    %853 = vadd.xlane.f32.xlu0 %v852
    %v854 = vpop.xlane.xlu0 %853
    %v855 = vmul.f32 %v849, 0.002
    %v856 = vmul.f32 %v854, 0.002
    %v857 = vlaneseq
    %v858 = vand.u32 %v857, 127
    %v859 = vadd.s32 %v858, 128
    %v860 = vadd.s32 %v858, 256
    %v861 = vadd.s32 %v858, 384
    %vm862 = vcmp.lt.s32.totalorder %v858, 500
    %vm863 = vcmp.lt.s32.totalorder %v859, 500
    %vm864 = vcmp.lt.s32.totalorder %v860, 500
    %vm865 = vcmp.lt.s32.totalorder %v861, 500
    %v866 = vsub.f32 %v835, %v855
    %v867 = vsub.f32 %v836, %v855
    %v868 = vsub.f32 %v837, %v855
    %v869 = vsub.f32 %v838, %v855
    %v870 = vsub.f32 %v839, %v856
    %v871 = vsub.f32 %v840, %v856
    %v872 = vsub.f32 %v841, %v856
    %v873 = vsub.f32 %v842, %v856
    %v874 = vsel %vm862, 1, 0
    %v875 = vsel %vm863, 1, 0
    %v876 = vsel %vm864, 1, 0
    %v877 = vsel %vm865, 1, 0
    %vm878 = vcmp.eq.s32.totalorder %v874, 1
    %vm879 = vcmp.eq.s32.totalorder %v875, 1
    %vm880 = vcmp.eq.s32.totalorder %v876, 1
    %vm881 = vcmp.eq.s32.totalorder %v877, 1
    %v882 = vsel %vm878, %v866, 0.0
    %v883 = vsel %vm879, %v867, 0.0
    %v884 = vsel %vm880, %v868, 0.0
    %v885 = vsel %vm881, %v869, 0.0
    %v886 = vsel %vm878, %v870, 0.0
    %v887 = vsel %vm879, %v871, 0.0
    %v888 = vsel %vm880, %v872, 0.0
    %v889 = vsel %vm881, %v873, 0.0
    %v890 = vmul.f32 %v882, %v882
    %v891 = vmul.f32 %v883, %v883
    %v892 = vmul.f32 %v884, %v884
    %v893 = vmul.f32 %v885, %v885
    %v894 = vmul.f32 %v886, %v886
    %v895 = vmul.f32 %v887, %v887
    %v896 = vmul.f32 %v888, %v888
    %v897 = vmul.f32 %v889, %v889
    %v898 = vadd.f32 %v890, %v891
    %v899 = vadd.f32 %v898, %v892
    %v900 = vadd.f32 %v899, %v893
    %901 = vadd.xlane.f32.xlu0 %v900
    %v902 = vpop.xlane.xlu0 %901
    %v903 = vadd.f32 %v894, %v895
    %v904 = vadd.f32 %v903, %v896
    %v905 = vadd.f32 %v904, %v897
    %906 = vadd.xlane.f32.xlu0 %v905
    %v907 = vpop.xlane.xlu0 %906
    %v908 = vmul.f32 %v902, 0.002
    %v909 = vmul.f32 %v907, 0.002
    %v910 = vadd.f32 %v908, 1e-05
    %v911 = vadd.f32 %v909, 1e-05
    %v912 = vrsqrt.pop %v910
    %v913 = vmul.f32 %v912, %v910
    %v914 = vmul.f32 %v913, %v912
    %v915 = vmul.f32 0.5, %v914
    %v916 = vsub.f32 1.5, %v915
    %v917 = vmul.f32 %v912, %v916
    %vm918 = vweird.f32 %v910
    %vm919 = vweird.f32 %v912
    %vm920 = vmor %vm918, %vm919
    %v921 = vsel %vm920, %v912, %v917
    %v922 = vrsqrt.pop %v911
    %v923 = vmul.f32 %v922, %v911
    %v924 = vmul.f32 %v923, %v922
    %v925 = vmul.f32 0.5, %v924
    %v926 = vsub.f32 1.5, %v925
    %v927 = vmul.f32 %v922, %v926
    %vm928 = vweird.f32 %v911
    %vm929 = vweird.f32 %v922
    %vm930 = vmor %vm928, %vm929
    %v931 = vsel %vm930, %v922, %v927
    %v932 = vmul.f32 %v866, %v921
    %v933 = vmul.f32 %v867, %v921
    %v934 = vmul.f32 %v868, %v921
    %v935 = vmul.f32 %v869, %v921
    %v936 = vmul.f32 %v870, %v931
    %v937 = vmul.f32 %v871, %v931
    %v938 = vmul.f32 %v872, %v931
    %v939 = vmul.f32 %v873, %v931
    %v941 = vperm.slane %v843, 0
    %v942 = vperm.slane %v843, 1
    %v943 = vperm.slane %v843, 2
    %v944 = vperm.slane %v843, 3
    %v949 = vmul.f32 %v932, %v941
    %v950 = vmul.f32 %v933, %v942
    %v951 = vmul.f32 %v934, %v943
    %v952 = vmul.f32 %v935, %v944
    %v953 = vmul.f32 %v936, %v941
    %v954 = vmul.f32 %v937, %v942
    %v955 = vmul.f32 %v938, %v943
    %v956 = vmul.f32 %v939, %v944
    %v958 = vperm.slane %v844, 0
    %v959 = vperm.slane %v844, 1
    %v960 = vperm.slane %v844, 2
    %v961 = vperm.slane %v844, 3
    %v966 = vadd.f32 %v949, %v958
    %v967 = vadd.f32 %v950, %v959
    %v968 = vadd.f32 %v951, %v960
    %v969 = vadd.f32 %v952, %v961
    %v970 = vadd.f32 %v953, %v958
    %v971 = vadd.f32 %v954, %v959
    %v972 = vadd.f32 %v955, %v960
    %v973 = vadd.f32 %v956, %v961
    %v974 = vpack.c.bf16 %v970, %v966
    %v975 = vpack.c.bf16 %v971, %v967
    %v976 = vpack.c.bf16 %v972, %v968
    %v977 = vpack.c.bf16 %v973, %v969
    %v978 = vld [vmem:[#allocation13] sm:$0xff]
    %v979 = vld [vmem:[#allocation13 + $0x8] sm:$0xff]
    %v980 = vld [vmem:[#allocation13 + $0x10] sm:$0xff]
    %v981 = vld [vmem:[#allocation13 + $0x18] sm:$0xff]
    %v982 = vld [vmem:[#allocation13 + $0x20] sm:$0xff]
    %v983 = vld [vmem:[#allocation13 + $0x28] sm:$0xff]
    %v984 = vld [vmem:[#allocation13 + $0x30] sm:$0xff]
    %v985 = vld [vmem:[#allocation13 + $0x38] sm:$0xff]
    %v986 = vld [vmem:[#allocation13 + $0x40] sm:$0xff]
    %v987 = vld [vmem:[#allocation13 + $0x48] sm:$0xff]
    %v988 = vld [vmem:[#allocation13 + $0x50] sm:$0xff]
    %v989 = vld [vmem:[#allocation13 + $0x58] sm:$0xff]
    %v990 = vld [vmem:[#allocation13 + $0x60] sm:$0xff]
    %v991 = vld [vmem:[#allocation13 + $0x68] sm:$0xff]
    %v992 = vld [vmem:[#allocation13 + $0x70] sm:$0xff]
    %v993 = vld [vmem:[#allocation13 + $0x78] sm:$0xff]
    %v994 = vld [vmem:[#allocation13 + $0x80] sm:$0xff]
    %v995 = vld [vmem:[#allocation13 + $0x88] sm:$0xff]
    %v996 = vld [vmem:[#allocation13 + $0x90] sm:$0xff]
    %v997 = vld [vmem:[#allocation13 + $0x98] sm:$0xff]
    %v998 = vld [vmem:[#allocation13 + $0xa0] sm:$0xff]
    %v999 = vld [vmem:[#allocation13 + $0xa8] sm:$0xff]
    %v1000 = vld [vmem:[#allocation13 + $0xb0] sm:$0xff]
    %v1001 = vld [vmem:[#allocation13 + $0xb8] sm:$0xff]
    %v1002 = vld [vmem:[#allocation13 + $0xc0] sm:$0xff]
    %v1003 = vld [vmem:[#allocation13 + $0xc8] sm:$0xff]
    %v1004 = vld [vmem:[#allocation13 + $0xd0] sm:$0xff]
    %v1005 = vld [vmem:[#allocation13 + $0xd8] sm:$0xff]
    %v1006 = vld [vmem:[#allocation13 + $0xe0] sm:$0xff]
    %v1007 = vld [vmem:[#allocation13 + $0xe8] sm:$0xff]
    %v1008 = vld [vmem:[#allocation13 + $0xf0] sm:$0xff]
    %v1009 = vld [vmem:[#allocation13 + $0xf8] sm:$0xff]
    %v1010 = vld [vmem:[#allocation13 + $0x100] sm:$0xff]
    %v1011 = vld [vmem:[#allocation13 + $0x108] sm:$0xff]
    %v1012 = vld [vmem:[#allocation13 + $0x110] sm:$0xff]
    %v1013 = vld [vmem:[#allocation13 + $0x118] sm:$0xff]
    %v1014 = vld [vmem:[#allocation13 + $0x120] sm:$0xff]
    %v1015 = vld [vmem:[#allocation13 + $0x128] sm:$0xff]
    %v1016 = vld [vmem:[#allocation13 + $0x130] sm:$0xff]
    %v1017 = vld [vmem:[#allocation13 + $0x138] sm:$0xff]
    %v1018 = vld [vmem:[#allocation13 + $0x140] sm:$0xff]
    %v1019 = vld [vmem:[#allocation13 + $0x148] sm:$0xff]
    %v1020 = vld [vmem:[#allocation13 + $0x150] sm:$0xff]
    %v1021 = vld [vmem:[#allocation13 + $0x158] sm:$0xff]
    %v1022 = vld [vmem:[#allocation13 + $0x160] sm:$0xff]
    %v1023 = vld [vmem:[#allocation13 + $0x168] sm:$0xff]
    %v1024 = vld [vmem:[#allocation13 + $0x170] sm:$0xff]
    %v1025 = vld [vmem:[#allocation13 + $0x178] sm:$0xff]
    %v1026 = vld [vmem:[#allocation13 + $0x180] sm:$0xff]
    %v1027 = vld [vmem:[#allocation13 + $0x188] sm:$0xff]
    %v1028 = vld [vmem:[#allocation13 + $0x190] sm:$0xff]
    %v1029 = vld [vmem:[#allocation13 + $0x198] sm:$0xff]
    %v1030 = vld [vmem:[#allocation13 + $0x1a0] sm:$0xff]
    %v1031 = vld [vmem:[#allocation13 + $0x1a8] sm:$0xff]
    %v1032 = vld [vmem:[#allocation13 + $0x1b0] sm:$0xff]
    %v1033 = vld [vmem:[#allocation13 + $0x1b8] sm:$0xff]
    %v1034 = vld [vmem:[#allocation13 + $0x1c0] sm:$0xff]
    %v1035 = vld [vmem:[#allocation13 + $0x1c8] sm:$0xff]
    %v1036 = vld [vmem:[#allocation13 + $0x1d0] sm:$0xff]
    %v1037 = vld [vmem:[#allocation13 + $0x1d8] sm:$0xff]
    %v1038 = vld [vmem:[#allocation13 + $0x1e0] sm:$0xff]
    %v1039 = vld [vmem:[#allocation13 + $0x1e8] sm:$0xff]
    %v1040 = vld [vmem:[#allocation13 + $0x1f0] sm:$0xff]
    %v1041 = vld [vmem:[#allocation13 + $0x1f8] sm:$0xff]
    %v1042 = vld [vmem:[#allocation13 + $0x200] sm:$0xff]
    %v1043 = vld [vmem:[#allocation13 + $0x208] sm:$0xff]
    %v1044 = vld [vmem:[#allocation13 + $0x210] sm:$0xff]
    %v1045 = vld [vmem:[#allocation13 + $0x218] sm:$0xff]
    %v1046 = vld [vmem:[#allocation13 + $0x220] sm:$0xff]
    %v1047 = vld [vmem:[#allocation13 + $0x228] sm:$0xff]
    %v1048 = vld [vmem:[#allocation13 + $0x230] sm:$0xff]
    %v1049 = vld [vmem:[#allocation13 + $0x238] sm:$0xff]
    %v1050 = vld [vmem:[#allocation13 + $0x240] sm:$0xff]
    %v1051 = vld [vmem:[#allocation13 + $0x248] sm:$0xff]
    %v1052 = vld [vmem:[#allocation13 + $0x250] sm:$0xff]
    %v1053 = vld [vmem:[#allocation13 + $0x258] sm:$0xff]
    %v1054 = vld [vmem:[#allocation13 + $0x260] sm:$0xff]
    %v1055 = vld [vmem:[#allocation13 + $0x268] sm:$0xff]
    %v1056 = vld [vmem:[#allocation13 + $0x270] sm:$0xff]
    %v1057 = vld [vmem:[#allocation13 + $0x278] sm:$0xff]
    %v1058 = vld [vmem:[#allocation13 + $0x280] sm:$0xff]
    %v1059 = vld [vmem:[#allocation13 + $0x288] sm:$0xff]
    %v1060 = vld [vmem:[#allocation13 + $0x290] sm:$0xff]
    %v1061 = vld [vmem:[#allocation13 + $0x298] sm:$0xff]
    %v1062 = vld [vmem:[#allocation13 + $0x2a0] sm:$0xff]
    %v1063 = vld [vmem:[#allocation13 + $0x2a8] sm:$0xff]
    %v1064 = vld [vmem:[#allocation13 + $0x2b0] sm:$0xff]
    %v1065 = vld [vmem:[#allocation13 + $0x2b8] sm:$0xff]
    %v1066 = vld [vmem:[#allocation13 + $0x2c0] sm:$0xff]
    %v1067 = vld [vmem:[#allocation13 + $0x2c8] sm:$0xff]
    %v1068 = vld [vmem:[#allocation13 + $0x2d0] sm:$0xff]
    %v1069 = vld [vmem:[#allocation13 + $0x2d8] sm:$0xff]
    %v1070 = vld [vmem:[#allocation13 + $0x2e0] sm:$0xff]
    %v1071 = vld [vmem:[#allocation13 + $0x2e8] sm:$0xff]
    %v1072 = vld [vmem:[#allocation13 + $0x2f0] sm:$0xff]
    %v1073 = vld [vmem:[#allocation13 + $0x2f8] sm:$0xff]
    %v1074 = vld [vmem:[#allocation13 + $0x300] sm:$0xff]
    %v1075 = vld [vmem:[#allocation13 + $0x308] sm:$0xff]
    %v1076 = vld [vmem:[#allocation13 + $0x310] sm:$0xff]
    %v1077 = vld [vmem:[#allocation13 + $0x318] sm:$0xff]
    %v1078 = vld [vmem:[#allocation13 + $0x320] sm:$0xff]
    %v1079 = vld [vmem:[#allocation13 + $0x328] sm:$0xff]
    %v1080 = vld [vmem:[#allocation13 + $0x330] sm:$0xff]
    %v1081 = vld [vmem:[#allocation13 + $0x338] sm:$0xff]
    %v1082 = vld [vmem:[#allocation13 + $0x340] sm:$0xff]
    %v1083 = vld [vmem:[#allocation13 + $0x348] sm:$0xff]
    %v1084 = vld [vmem:[#allocation13 + $0x350] sm:$0xff]
    %v1085 = vld [vmem:[#allocation13 + $0x358] sm:$0xff]
    %v1086 = vld [vmem:[#allocation13 + $0x360] sm:$0xff]
    %v1087 = vld [vmem:[#allocation13 + $0x368] sm:$0xff]
    %v1088 = vld [vmem:[#allocation13 + $0x370] sm:$0xff]
    %v1089 = vld [vmem:[#allocation13 + $0x378] sm:$0xff]
    %v1090 = vld [vmem:[#allocation13 + $0x380] sm:$0xff]
    %v1091 = vld [vmem:[#allocation13 + $0x388] sm:$0xff]
    %v1092 = vld [vmem:[#allocation13 + $0x390] sm:$0xff]
    %v1093 = vld [vmem:[#allocation13 + $0x398] sm:$0xff]
    %v1094 = vld [vmem:[#allocation13 + $0x3a0] sm:$0xff]
    %v1095 = vld [vmem:[#allocation13 + $0x3a8] sm:$0xff]
    %v1096 = vld [vmem:[#allocation13 + $0x3b0] sm:$0xff]
    %v1097 = vld [vmem:[#allocation13 + $0x3b8] sm:$0xff]
    %v1098 = vld [vmem:[#allocation13 + $0x3c0] sm:$0xff]
    %v1099 = vld [vmem:[#allocation13 + $0x3c8] sm:$0xff]
    %v1100 = vld [vmem:[#allocation13 + $0x3d0] sm:$0xff]
    %v1101 = vld [vmem:[#allocation13 + $0x3d8] sm:$0xff]
    %v1102 = vld [vmem:[#allocation13 + $0x3e0] sm:$0xff]
    %v1103 = vld [vmem:[#allocation13 + $0x3e8] sm:$0xff]
    %v1104 = vld [vmem:[#allocation13 + $0x3f0] sm:$0xff]
    %v1105 = vld [vmem:[#allocation13 + $0x3f8] sm:$0xff]
    %v1106 = vld [vmem:[#allocation13 + $0x400] sm:$0xff]
    %v1107 = vld [vmem:[#allocation13 + $0x408] sm:$0xff]
    %v1108 = vld [vmem:[#allocation13 + $0x410] sm:$0xff]
    %v1109 = vld [vmem:[#allocation13 + $0x418] sm:$0xff]
    %v1110 = vld [vmem:[#allocation13 + $0x420] sm:$0xff]
    %v1111 = vld [vmem:[#allocation13 + $0x428] sm:$0xff]
    %v1112 = vld [vmem:[#allocation13 + $0x430] sm:$0xff]
    %v1113 = vld [vmem:[#allocation13 + $0x438] sm:$0xff]
    %v1114 = vld [vmem:[#allocation13 + $0x440] sm:$0xff]
    %v1115 = vld [vmem:[#allocation13 + $0x448] sm:$0xff]
    %v1116 = vld [vmem:[#allocation13 + $0x450] sm:$0xff]
    %v1117 = vld [vmem:[#allocation13 + $0x458] sm:$0xff]
    %v1118 = vld [vmem:[#allocation13 + $0x460] sm:$0xff]
    %v1119 = vld [vmem:[#allocation13 + $0x468] sm:$0xff]
    %v1120 = vld [vmem:[#allocation13 + $0x470] sm:$0xff]
    %v1121 = vld [vmem:[#allocation13 + $0x478] sm:$0xff]
    %v1122 = vld [vmem:[#allocation13 + $0x480] sm:$0xff]
    %v1123 = vld [vmem:[#allocation13 + $0x488] sm:$0xff]
    %v1124 = vld [vmem:[#allocation13 + $0x490] sm:$0xff]
    %v1125 = vld [vmem:[#allocation13 + $0x498] sm:$0xff]
    %v1126 = vld [vmem:[#allocation13 + $0x4a0] sm:$0xff]
    %v1127 = vld [vmem:[#allocation13 + $0x4a8] sm:$0xff]
    %v1128 = vld [vmem:[#allocation13 + $0x4b0] sm:$0xff]
    %v1129 = vld [vmem:[#allocation13 + $0x4b8] sm:$0xff]
    %v1130 = vld [vmem:[#allocation13 + $0x4c0] sm:$0xff]
    %v1131 = vld [vmem:[#allocation13 + $0x4c8] sm:$0xff]
    %v1132 = vld [vmem:[#allocation13 + $0x4d0] sm:$0xff]
    %v1133 = vld [vmem:[#allocation13 + $0x4d8] sm:$0xff]
    %v1134 = vld [vmem:[#allocation13 + $0x4e0] sm:$0xff]
    %v1135 = vld [vmem:[#allocation13 + $0x4e8] sm:$0xff]
    %v1136 = vld [vmem:[#allocation13 + $0x4f0] sm:$0xff]
    %v1137 = vld [vmem:[#allocation13 + $0x4f8] sm:$0xff]
    %v1138 = vld [vmem:[#allocation13 + $0x500] sm:$0xff]
    %v1139 = vld [vmem:[#allocation13 + $0x508] sm:$0xff]
    %v1140 = vld [vmem:[#allocation13 + $0x510] sm:$0xff]
    %v1141 = vld [vmem:[#allocation13 + $0x518] sm:$0xff]
    %v1142 = vld [vmem:[#allocation13 + $0x520] sm:$0xff]
    %v1143 = vld [vmem:[#allocation13 + $0x528] sm:$0xff]
    %v1144 = vld [vmem:[#allocation13 + $0x530] sm:$0xff]
    %v1145 = vld [vmem:[#allocation13 + $0x538] sm:$0xff]
    %v1146 = vld [vmem:[#allocation13 + $0x540] sm:$0xff]
    %v1147 = vld [vmem:[#allocation13 + $0x548] sm:$0xff]
    %v1148 = vld [vmem:[#allocation13 + $0x550] sm:$0xff]
    %v1149 = vld [vmem:[#allocation13 + $0x558] sm:$0xff]
    %v1150 = vld [vmem:[#allocation13 + $0x560] sm:$0xff]
    %v1151 = vld [vmem:[#allocation13 + $0x568] sm:$0xff]
    %v1152 = vld [vmem:[#allocation13 + $0x570] sm:$0xff]
    %v1153 = vld [vmem:[#allocation13 + $0x578] sm:$0xff]
    %v1154 = vld [vmem:[#allocation13 + $0x580] sm:$0xff]
    %v1155 = vld [vmem:[#allocation13 + $0x588] sm:$0xff]
    %v1156 = vld [vmem:[#allocation13 + $0x590] sm:$0xff]
    %v1157 = vld [vmem:[#allocation13 + $0x598] sm:$0xff]
    %v1158 = vld [vmem:[#allocation13 + $0x5a0] sm:$0xff]
    %v1159 = vld [vmem:[#allocation13 + $0x5a8] sm:$0xff]
    %v1160 = vld [vmem:[#allocation13 + $0x5b0] sm:$0xff]
    %v1161 = vld [vmem:[#allocation13 + $0x5b8] sm:$0xff]
    %v1162 = vld [vmem:[#allocation13 + $0x5c0] sm:$0xff]
    %v1163 = vld [vmem:[#allocation13 + $0x5c8] sm:$0xff]
    %v1164 = vld [vmem:[#allocation13 + $0x5d0] sm:$0xff]
    %v1165 = vld [vmem:[#allocation13 + $0x5d8] sm:$0xff]
    %v1166 = vld [vmem:[#allocation13 + $0x5e0] sm:$0xff]
    %v1167 = vld [vmem:[#allocation13 + $0x5e8] sm:$0xff]
    %v1168 = vld [vmem:[#allocation13 + $0x5f0] sm:$0xff]
    %v1169 = vld [vmem:[#allocation13 + $0x5f8] sm:$0xff]
    %v1170 = vld [vmem:[#allocation13 + $0x600] sm:$0xff]
    %v1171 = vld [vmem:[#allocation13 + $0x608] sm:$0xff]
    %v1172 = vld [vmem:[#allocation13 + $0x610] sm:$0xff]
    %v1173 = vld [vmem:[#allocation13 + $0x618] sm:$0xff]
    %v1174 = vld [vmem:[#allocation13 + $0x620] sm:$0xff]
    %v1175 = vld [vmem:[#allocation13 + $0x628] sm:$0xff]
    %v1176 = vld [vmem:[#allocation13 + $0x630] sm:$0xff]
    %v1177 = vld [vmem:[#allocation13 + $0x638] sm:$0xff]
    %v1178 = vld [vmem:[#allocation13 + $0x640] sm:$0xff]
    %v1179 = vld [vmem:[#allocation13 + $0x648] sm:$0xff]
    %v1180 = vld [vmem:[#allocation13 + $0x650] sm:$0xff]
    %v1181 = vld [vmem:[#allocation13 + $0x658] sm:$0xff]
    %v1182 = vld [vmem:[#allocation13 + $0x660] sm:$0xff]
    %v1183 = vld [vmem:[#allocation13 + $0x668] sm:$0xff]
    %v1184 = vld [vmem:[#allocation13 + $0x670] sm:$0xff]
    %v1185 = vld [vmem:[#allocation13 + $0x678] sm:$0xff]
    %v1186 = vld [vmem:[#allocation13 + $0x680] sm:$0xff]
    %v1187 = vld [vmem:[#allocation13 + $0x688] sm:$0xff]
    %v1188 = vld [vmem:[#allocation13 + $0x690] sm:$0xff]
    %v1189 = vld [vmem:[#allocation13 + $0x698] sm:$0xff]
    %v1190 = vld [vmem:[#allocation13 + $0x6a0] sm:$0xff]
    %v1191 = vld [vmem:[#allocation13 + $0x6a8] sm:$0xff]
    %v1192 = vld [vmem:[#allocation13 + $0x6b0] sm:$0xff]
    %v1193 = vld [vmem:[#allocation13 + $0x6b8] sm:$0xff]
    %v1194 = vld [vmem:[#allocation13 + $0x6c0] sm:$0xff]
    %v1195 = vld [vmem:[#allocation13 + $0x6c8] sm:$0xff]
    %v1196 = vld [vmem:[#allocation13 + $0x6d0] sm:$0xff]
    %v1197 = vld [vmem:[#allocation13 + $0x6d8] sm:$0xff]
    %v1198 = vld [vmem:[#allocation13 + $0x6e0] sm:$0xff]
    %v1199 = vld [vmem:[#allocation13 + $0x6e8] sm:$0xff]
    %v1200 = vld [vmem:[#allocation13 + $0x6f0] sm:$0xff]
    %v1201 = vld [vmem:[#allocation13 + $0x6f8] sm:$0xff]
    %v1202 = vld [vmem:[#allocation13 + $0x700] sm:$0xff]
    %v1203 = vld [vmem:[#allocation13 + $0x708] sm:$0xff]
    %v1204 = vld [vmem:[#allocation13 + $0x710] sm:$0xff]
    %v1205 = vld [vmem:[#allocation13 + $0x718] sm:$0xff]
    %v1206 = vld [vmem:[#allocation13 + $0x720] sm:$0xff]
    %v1207 = vld [vmem:[#allocation13 + $0x728] sm:$0xff]
    %v1208 = vld [vmem:[#allocation13 + $0x730] sm:$0xff]
    %v1209 = vld [vmem:[#allocation13 + $0x738] sm:$0xff]
    %v1210 = vld [vmem:[#allocation13 + $0x740] sm:$0xff]
    %v1211 = vld [vmem:[#allocation13 + $0x748] sm:$0xff]
    %v1212 = vld [vmem:[#allocation13 + $0x750] sm:$0xff]
    %v1213 = vld [vmem:[#allocation13 + $0x758] sm:$0xff]
    %v1214 = vld [vmem:[#allocation13 + $0x760] sm:$0xff]
    %v1215 = vld [vmem:[#allocation13 + $0x768] sm:$0xff]
    %v1216 = vld [vmem:[#allocation13 + $0x770] sm:$0xff]
    %v1217 = vld [vmem:[#allocation13 + $0x778] sm:$0xff]
    %v1218 = vld [vmem:[#allocation13 + $0x780] sm:$0xff]
    %v1219 = vld [vmem:[#allocation13 + $0x788] sm:$0xff]
    %v1220 = vld [vmem:[#allocation13 + $0x790] sm:$0xff]
    %v1221 = vld [vmem:[#allocation13 + $0x798] sm:$0xff]
    %v1222 = vld [vmem:[#allocation13 + $0x7a0] sm:$0xff]
    %v1223 = vld [vmem:[#allocation13 + $0x7a8] sm:$0xff]
    %v1224 = vld [vmem:[#allocation13 + $0x7b0] sm:$0xff]
    %v1225 = vld [vmem:[#allocation13 + $0x7b8] sm:$0xff]
    %v1226 = vld [vmem:[#allocation13 + $0x7c0] sm:$0xff]
    %v1227 = vld [vmem:[#allocation13 + $0x7c8] sm:$0xff]
    %v1228 = vld [vmem:[#allocation13 + $0x7d0] sm:$0xff]
    %v1229 = vld [vmem:[#allocation13 + $0x7d8] sm:$0xff]
    %v1230 = vld [vmem:[#allocation13 + $0x7e0] sm:$0xff]
    %v1231 = vld [vmem:[#allocation13 + $0x7e8] sm:$0xff]
    %v1232 = vld [vmem:[#allocation13 + $0x7f0] sm:$0xff]
    %v1233 = vld [vmem:[#allocation13 + $0x7f8] sm:$0xff]
    %v1234 = vld [vmem:[#allocation15] sm:$0xff]
    %v1236 = vperm.slane %v1234, 0
    %v1237 = vperm.slane %v1234, 1
    %v1238 = vperm.slane %v1234, 2
    %v1239 = vperm.slane %v1234, 3
    %v1240 = vperm.slane %v1234, 4
    %v1241 = vperm.slane %v1234, 5
    %v1242 = vperm.slane %v1234, 6
    %v1243 = vperm.slane %v1234, 7
    %v1508 = vunpack.c.l.b16 %v978
    %v1509 = vunpack.c.h.b16 %v978
    %v1510 = vunpack.c.l.b16 %v979
    %v1511 = vunpack.c.h.b16 %v979
    %v1512 = vunpack.c.l.b16 %v980
    %v1513 = vunpack.c.h.b16 %v980
    %v1514 = vunpack.c.l.b16 %v981
    %v1515 = vunpack.c.h.b16 %v981
    %v1516 = vunpack.c.l.b16 %v982
    %v1517 = vunpack.c.h.b16 %v982
    %v1518 = vunpack.c.l.b16 %v983
    %v1519 = vunpack.c.h.b16 %v983
    %v1520 = vunpack.c.l.b16 %v984
    %v1521 = vunpack.c.h.b16 %v984
    %v1522 = vunpack.c.l.b16 %v985
    %v1523 = vunpack.c.h.b16 %v985
    %v1524 = vunpack.c.l.b16 %v986
    %v1525 = vunpack.c.h.b16 %v986
    %v1526 = vunpack.c.l.b16 %v987
    %v1527 = vunpack.c.h.b16 %v987
    %v1528 = vunpack.c.l.b16 %v988
    %v1529 = vunpack.c.h.b16 %v988
    %v1530 = vunpack.c.l.b16 %v989
    %v1531 = vunpack.c.h.b16 %v989
    %v1532 = vunpack.c.l.b16 %v990
    %v1533 = vunpack.c.h.b16 %v990
    %v1534 = vunpack.c.l.b16 %v991
    %v1535 = vunpack.c.h.b16 %v991
    %v1536 = vunpack.c.l.b16 %v992
    %v1537 = vunpack.c.h.b16 %v992
    %v1538 = vunpack.c.l.b16 %v993
    %v1539 = vunpack.c.h.b16 %v993
    %v1540 = vunpack.c.l.b16 %v994
    %v1541 = vunpack.c.h.b16 %v994
    %v1542 = vunpack.c.l.b16 %v995
    %v1543 = vunpack.c.h.b16 %v995
    %v1544 = vunpack.c.l.b16 %v996
    %v1545 = vunpack.c.h.b16 %v996
    %v1546 = vunpack.c.l.b16 %v997
    %v1547 = vunpack.c.h.b16 %v997
    %v1548 = vunpack.c.l.b16 %v998
    %v1549 = vunpack.c.h.b16 %v998
    %v1550 = vunpack.c.l.b16 %v999
    %v1551 = vunpack.c.h.b16 %v999
    %v1552 = vunpack.c.l.b16 %v1000
    %v1553 = vunpack.c.h.b16 %v1000
    %v1554 = vunpack.c.l.b16 %v1001
    %v1555 = vunpack.c.h.b16 %v1001
    %v1556 = vunpack.c.l.b16 %v1002
    %v1557 = vunpack.c.h.b16 %v1002
    %v1558 = vunpack.c.l.b16 %v1003
    %v1559 = vunpack.c.h.b16 %v1003
    %v1560 = vunpack.c.l.b16 %v1004
    %v1561 = vunpack.c.h.b16 %v1004
    %v1562 = vunpack.c.l.b16 %v1005
    %v1563 = vunpack.c.h.b16 %v1005
    %v1564 = vunpack.c.l.b16 %v1006
    %v1565 = vunpack.c.h.b16 %v1006
    %v1566 = vunpack.c.l.b16 %v1007
    %v1567 = vunpack.c.h.b16 %v1007
    %v1568 = vunpack.c.l.b16 %v1008
    %v1569 = vunpack.c.h.b16 %v1008
    %v1570 = vunpack.c.l.b16 %v1009
    %v1571 = vunpack.c.h.b16 %v1009
    %v1572 = vunpack.c.l.b16 %v1010
    %v1573 = vunpack.c.h.b16 %v1010
    %v1574 = vunpack.c.l.b16 %v1011
    %v1575 = vunpack.c.h.b16 %v1011
    %v1576 = vunpack.c.l.b16 %v1012
    %v1577 = vunpack.c.h.b16 %v1012
    %v1578 = vunpack.c.l.b16 %v1013
    %v1579 = vunpack.c.h.b16 %v1013
    %v1580 = vunpack.c.l.b16 %v1014
    %v1581 = vunpack.c.h.b16 %v1014
    %v1582 = vunpack.c.l.b16 %v1015
    %v1583 = vunpack.c.h.b16 %v1015
    %v1584 = vunpack.c.l.b16 %v1016
    %v1585 = vunpack.c.h.b16 %v1016
    %v1586 = vunpack.c.l.b16 %v1017
    %v1587 = vunpack.c.h.b16 %v1017
    %v1588 = vunpack.c.l.b16 %v1018
    %v1589 = vunpack.c.h.b16 %v1018
    %v1590 = vunpack.c.l.b16 %v1019
    %v1591 = vunpack.c.h.b16 %v1019
    %v1592 = vunpack.c.l.b16 %v1020
    %v1593 = vunpack.c.h.b16 %v1020
    %v1594 = vunpack.c.l.b16 %v1021
    %v1595 = vunpack.c.h.b16 %v1021
    %v1596 = vunpack.c.l.b16 %v1022
    %v1597 = vunpack.c.h.b16 %v1022
    %v1598 = vunpack.c.l.b16 %v1023
    %v1599 = vunpack.c.h.b16 %v1023
    %v1600 = vunpack.c.l.b16 %v1024
    %v1601 = vunpack.c.h.b16 %v1024
    %v1602 = vunpack.c.l.b16 %v1025
    %v1603 = vunpack.c.h.b16 %v1025
    %v1604 = vunpack.c.l.b16 %v1026
    %v1605 = vunpack.c.h.b16 %v1026
    %v1606 = vunpack.c.l.b16 %v1027
    %v1607 = vunpack.c.h.b16 %v1027
    %v1608 = vunpack.c.l.b16 %v1028
    %v1609 = vunpack.c.h.b16 %v1028
    %v1610 = vunpack.c.l.b16 %v1029
    %v1611 = vunpack.c.h.b16 %v1029
    %v1612 = vunpack.c.l.b16 %v1030
    %v1613 = vunpack.c.h.b16 %v1030
    %v1614 = vunpack.c.l.b16 %v1031
    %v1615 = vunpack.c.h.b16 %v1031
    %v1616 = vunpack.c.l.b16 %v1032
    %v1617 = vunpack.c.h.b16 %v1032
    %v1618 = vunpack.c.l.b16 %v1033
    %v1619 = vunpack.c.h.b16 %v1033
    %v1620 = vunpack.c.l.b16 %v1034
    %v1621 = vunpack.c.h.b16 %v1034
    %v1622 = vunpack.c.l.b16 %v1035
    %v1623 = vunpack.c.h.b16 %v1035
    %v1624 = vunpack.c.l.b16 %v1036
    %v1625 = vunpack.c.h.b16 %v1036
    %v1626 = vunpack.c.l.b16 %v1037
    %v1627 = vunpack.c.h.b16 %v1037
    %v1628 = vunpack.c.l.b16 %v1038
    %v1629 = vunpack.c.h.b16 %v1038
    %v1630 = vunpack.c.l.b16 %v1039
    %v1631 = vunpack.c.h.b16 %v1039
    %v1632 = vunpack.c.l.b16 %v1040
    %v1633 = vunpack.c.h.b16 %v1040
    %v1634 = vunpack.c.l.b16 %v1041
    %v1635 = vunpack.c.h.b16 %v1041
    %v1636 = vunpack.c.l.b16 %v1042
    %v1637 = vunpack.c.h.b16 %v1042
    %v1638 = vunpack.c.l.b16 %v1043
    %v1639 = vunpack.c.h.b16 %v1043
    %v1640 = vunpack.c.l.b16 %v1044
    %v1641 = vunpack.c.h.b16 %v1044
    %v1642 = vunpack.c.l.b16 %v1045
    %v1643 = vunpack.c.h.b16 %v1045
    %v1644 = vunpack.c.l.b16 %v1046
    %v1645 = vunpack.c.h.b16 %v1046
    %v1646 = vunpack.c.l.b16 %v1047
    %v1647 = vunpack.c.h.b16 %v1047
    %v1648 = vunpack.c.l.b16 %v1048
    %v1649 = vunpack.c.h.b16 %v1048
    %v1650 = vunpack.c.l.b16 %v1049
    %v1651 = vunpack.c.h.b16 %v1049
    %v1652 = vunpack.c.l.b16 %v1050
    %v1653 = vunpack.c.h.b16 %v1050
    %v1654 = vunpack.c.l.b16 %v1051
    %v1655 = vunpack.c.h.b16 %v1051
    %v1656 = vunpack.c.l.b16 %v1052
    %v1657 = vunpack.c.h.b16 %v1052
    %v1658 = vunpack.c.l.b16 %v1053
    %v1659 = vunpack.c.h.b16 %v1053
    %v1660 = vunpack.c.l.b16 %v1054
    %v1661 = vunpack.c.h.b16 %v1054
    %v1662 = vunpack.c.l.b16 %v1055
    %v1663 = vunpack.c.h.b16 %v1055
    %v1664 = vunpack.c.l.b16 %v1056
    %v1665 = vunpack.c.h.b16 %v1056
    %v1666 = vunpack.c.l.b16 %v1057
    %v1667 = vunpack.c.h.b16 %v1057
    %v1668 = vunpack.c.l.b16 %v1058
    %v1669 = vunpack.c.h.b16 %v1058
    %v1670 = vunpack.c.l.b16 %v1059
    %v1671 = vunpack.c.h.b16 %v1059
    %v1672 = vunpack.c.l.b16 %v1060
    %v1673 = vunpack.c.h.b16 %v1060
    %v1674 = vunpack.c.l.b16 %v1061
    %v1675 = vunpack.c.h.b16 %v1061
    %v1676 = vunpack.c.l.b16 %v1062
    %v1677 = vunpack.c.h.b16 %v1062
    %v1678 = vunpack.c.l.b16 %v1063
    %v1679 = vunpack.c.h.b16 %v1063
    %v1680 = vunpack.c.l.b16 %v1064
    %v1681 = vunpack.c.h.b16 %v1064
    %v1682 = vunpack.c.l.b16 %v1065
    %v1683 = vunpack.c.h.b16 %v1065
    %v1684 = vunpack.c.l.b16 %v1066
    %v1685 = vunpack.c.h.b16 %v1066
    %v1686 = vunpack.c.l.b16 %v1067
    %v1687 = vunpack.c.h.b16 %v1067
    %v1688 = vunpack.c.l.b16 %v1068
    %v1689 = vunpack.c.h.b16 %v1068
    %v1690 = vunpack.c.l.b16 %v1069
    %v1691 = vunpack.c.h.b16 %v1069
    %v1692 = vunpack.c.l.b16 %v1070
    %v1693 = vunpack.c.h.b16 %v1070
    %v1694 = vunpack.c.l.b16 %v1071
    %v1695 = vunpack.c.h.b16 %v1071
    %v1696 = vunpack.c.l.b16 %v1072
    %v1697 = vunpack.c.h.b16 %v1072
    %v1698 = vunpack.c.l.b16 %v1073
    %v1699 = vunpack.c.h.b16 %v1073
    %v1700 = vunpack.c.l.b16 %v1074
    %v1701 = vunpack.c.h.b16 %v1074
    %v1702 = vunpack.c.l.b16 %v1075
    %v1703 = vunpack.c.h.b16 %v1075
    %v1704 = vunpack.c.l.b16 %v1076
    %v1705 = vunpack.c.h.b16 %v1076
    %v1706 = vunpack.c.l.b16 %v1077
    %v1707 = vunpack.c.h.b16 %v1077
    %v1708 = vunpack.c.l.b16 %v1078
    %v1709 = vunpack.c.h.b16 %v1078
    %v1710 = vunpack.c.l.b16 %v1079
    %v1711 = vunpack.c.h.b16 %v1079
    %v1712 = vunpack.c.l.b16 %v1080
    %v1713 = vunpack.c.h.b16 %v1080
    %v1714 = vunpack.c.l.b16 %v1081
    %v1715 = vunpack.c.h.b16 %v1081
    %v1716 = vunpack.c.l.b16 %v1082
    %v1717 = vunpack.c.h.b16 %v1082
    %v1718 = vunpack.c.l.b16 %v1083
    %v1719 = vunpack.c.h.b16 %v1083
    %v1720 = vunpack.c.l.b16 %v1084
    %v1721 = vunpack.c.h.b16 %v1084
    %v1722 = vunpack.c.l.b16 %v1085
    %v1723 = vunpack.c.h.b16 %v1085
    %v1724 = vunpack.c.l.b16 %v1086
    %v1725 = vunpack.c.h.b16 %v1086
    %v1726 = vunpack.c.l.b16 %v1087
    %v1727 = vunpack.c.h.b16 %v1087
    %v1728 = vunpack.c.l.b16 %v1088
    %v1729 = vunpack.c.h.b16 %v1088
    %v1730 = vunpack.c.l.b16 %v1089
    %v1731 = vunpack.c.h.b16 %v1089
    %v1732 = vunpack.c.l.b16 %v1090
    %v1733 = vunpack.c.h.b16 %v1090
    %v1734 = vunpack.c.l.b16 %v1091
    %v1735 = vunpack.c.h.b16 %v1091
    %v1736 = vunpack.c.l.b16 %v1092
    %v1737 = vunpack.c.h.b16 %v1092
    %v1738 = vunpack.c.l.b16 %v1093
    %v1739 = vunpack.c.h.b16 %v1093
    %v1740 = vunpack.c.l.b16 %v1094
    %v1741 = vunpack.c.h.b16 %v1094
    %v1742 = vunpack.c.l.b16 %v1095
    %v1743 = vunpack.c.h.b16 %v1095
    %v1744 = vunpack.c.l.b16 %v1096
    %v1745 = vunpack.c.h.b16 %v1096
    %v1746 = vunpack.c.l.b16 %v1097
    %v1747 = vunpack.c.h.b16 %v1097
    %v1748 = vunpack.c.l.b16 %v1098
    %v1749 = vunpack.c.h.b16 %v1098
    %v1750 = vunpack.c.l.b16 %v1099
    %v1751 = vunpack.c.h.b16 %v1099
    %v1752 = vunpack.c.l.b16 %v1100
    %v1753 = vunpack.c.h.b16 %v1100
    %v1754 = vunpack.c.l.b16 %v1101
    %v1755 = vunpack.c.h.b16 %v1101
    %v1756 = vunpack.c.l.b16 %v1102
    %v1757 = vunpack.c.h.b16 %v1102
    %v1758 = vunpack.c.l.b16 %v1103
    %v1759 = vunpack.c.h.b16 %v1103
    %v1760 = vunpack.c.l.b16 %v1104
    %v1761 = vunpack.c.h.b16 %v1104
    %v1762 = vunpack.c.l.b16 %v1105
    %v1763 = vunpack.c.h.b16 %v1105
    %v1764 = vunpack.c.l.b16 %v1106
    %v1765 = vunpack.c.h.b16 %v1106
    %v1766 = vunpack.c.l.b16 %v1107
    %v1767 = vunpack.c.h.b16 %v1107
    %v1768 = vunpack.c.l.b16 %v1108
    %v1769 = vunpack.c.h.b16 %v1108
    %v1770 = vunpack.c.l.b16 %v1109
    %v1771 = vunpack.c.h.b16 %v1109
    %v1772 = vunpack.c.l.b16 %v1110
    %v1773 = vunpack.c.h.b16 %v1110
    %v1774 = vunpack.c.l.b16 %v1111
    %v1775 = vunpack.c.h.b16 %v1111
    %v1776 = vunpack.c.l.b16 %v1112
    %v1777 = vunpack.c.h.b16 %v1112
    %v1778 = vunpack.c.l.b16 %v1113
    %v1779 = vunpack.c.h.b16 %v1113
    %v1780 = vunpack.c.l.b16 %v1114
    %v1781 = vunpack.c.h.b16 %v1114
    %v1782 = vunpack.c.l.b16 %v1115
    %v1783 = vunpack.c.h.b16 %v1115
    %v1784 = vunpack.c.l.b16 %v1116
    %v1785 = vunpack.c.h.b16 %v1116
    %v1786 = vunpack.c.l.b16 %v1117
    %v1787 = vunpack.c.h.b16 %v1117
    %v1788 = vunpack.c.l.b16 %v1118
    %v1789 = vunpack.c.h.b16 %v1118
    %v1790 = vunpack.c.l.b16 %v1119
    %v1791 = vunpack.c.h.b16 %v1119
    %v1792 = vunpack.c.l.b16 %v1120
    %v1793 = vunpack.c.h.b16 %v1120
    %v1794 = vunpack.c.l.b16 %v1121
    %v1795 = vunpack.c.h.b16 %v1121
    %v1796 = vunpack.c.l.b16 %v1122
    %v1797 = vunpack.c.h.b16 %v1122
    %v1798 = vunpack.c.l.b16 %v1123
    %v1799 = vunpack.c.h.b16 %v1123
    %v1800 = vunpack.c.l.b16 %v1124
    %v1801 = vunpack.c.h.b16 %v1124
    %v1802 = vunpack.c.l.b16 %v1125
    %v1803 = vunpack.c.h.b16 %v1125
    %v1804 = vunpack.c.l.b16 %v1126
    %v1805 = vunpack.c.h.b16 %v1126
    %v1806 = vunpack.c.l.b16 %v1127
    %v1807 = vunpack.c.h.b16 %v1127
    %v1808 = vunpack.c.l.b16 %v1128
    %v1809 = vunpack.c.h.b16 %v1128
    %v1810 = vunpack.c.l.b16 %v1129
    %v1811 = vunpack.c.h.b16 %v1129
    %v1812 = vunpack.c.l.b16 %v1130
    %v1813 = vunpack.c.h.b16 %v1130
    %v1814 = vunpack.c.l.b16 %v1131
    %v1815 = vunpack.c.h.b16 %v1131
    %v1816 = vunpack.c.l.b16 %v1132
    %v1817 = vunpack.c.h.b16 %v1132
    %v1818 = vunpack.c.l.b16 %v1133
    %v1819 = vunpack.c.h.b16 %v1133
    %v1820 = vunpack.c.l.b16 %v1134
    %v1821 = vunpack.c.h.b16 %v1134
    %v1822 = vunpack.c.l.b16 %v1135
    %v1823 = vunpack.c.h.b16 %v1135
    %v1824 = vunpack.c.l.b16 %v1136
    %v1825 = vunpack.c.h.b16 %v1136
    %v1826 = vunpack.c.l.b16 %v1137
    %v1827 = vunpack.c.h.b16 %v1137
    %v1828 = vunpack.c.l.b16 %v1138
    %v1829 = vunpack.c.h.b16 %v1138
    %v1830 = vunpack.c.l.b16 %v1139
    %v1831 = vunpack.c.h.b16 %v1139
    %v1832 = vunpack.c.l.b16 %v1140
    %v1833 = vunpack.c.h.b16 %v1140
    %v1834 = vunpack.c.l.b16 %v1141
    %v1835 = vunpack.c.h.b16 %v1141
    %v1836 = vunpack.c.l.b16 %v1142
    %v1837 = vunpack.c.h.b16 %v1142
    %v1838 = vunpack.c.l.b16 %v1143
    %v1839 = vunpack.c.h.b16 %v1143
    %v1840 = vunpack.c.l.b16 %v1144
    %v1841 = vunpack.c.h.b16 %v1144
    %v1842 = vunpack.c.l.b16 %v1145
    %v1843 = vunpack.c.h.b16 %v1145
    %v1844 = vunpack.c.l.b16 %v1146
    %v1845 = vunpack.c.h.b16 %v1146
    %v1846 = vunpack.c.l.b16 %v1147
    %v1847 = vunpack.c.h.b16 %v1147
    %v1848 = vunpack.c.l.b16 %v1148
    %v1849 = vunpack.c.h.b16 %v1148
    %v1850 = vunpack.c.l.b16 %v1149
    %v1851 = vunpack.c.h.b16 %v1149
    %v1852 = vunpack.c.l.b16 %v1150
    %v1853 = vunpack.c.h.b16 %v1150
    %v1854 = vunpack.c.l.b16 %v1151
    %v1855 = vunpack.c.h.b16 %v1151
    %v1856 = vunpack.c.l.b16 %v1152
    %v1857 = vunpack.c.h.b16 %v1152
    %v1858 = vunpack.c.l.b16 %v1153
    %v1859 = vunpack.c.h.b16 %v1153
    %v1860 = vunpack.c.l.b16 %v1154
    %v1861 = vunpack.c.h.b16 %v1154
    %v1862 = vunpack.c.l.b16 %v1155
    %v1863 = vunpack.c.h.b16 %v1155
    %v1864 = vunpack.c.l.b16 %v1156
    %v1865 = vunpack.c.h.b16 %v1156
    %v1866 = vunpack.c.l.b16 %v1157
    %v1867 = vunpack.c.h.b16 %v1157
    %v1868 = vunpack.c.l.b16 %v1158
    %v1869 = vunpack.c.h.b16 %v1158
    %v1870 = vunpack.c.l.b16 %v1159
    %v1871 = vunpack.c.h.b16 %v1159
    %v1872 = vunpack.c.l.b16 %v1160
    %v1873 = vunpack.c.h.b16 %v1160
    %v1874 = vunpack.c.l.b16 %v1161
    %v1875 = vunpack.c.h.b16 %v1161
    %v1876 = vunpack.c.l.b16 %v1162
    %v1877 = vunpack.c.h.b16 %v1162
    %v1878 = vunpack.c.l.b16 %v1163
    %v1879 = vunpack.c.h.b16 %v1163
    %v1880 = vunpack.c.l.b16 %v1164
    %v1881 = vunpack.c.h.b16 %v1164
    %v1882 = vunpack.c.l.b16 %v1165
    %v1883 = vunpack.c.h.b16 %v1165
    %v1884 = vunpack.c.l.b16 %v1166
    %v1885 = vunpack.c.h.b16 %v1166
    %v1886 = vunpack.c.l.b16 %v1167
    %v1887 = vunpack.c.h.b16 %v1167
    %v1888 = vunpack.c.l.b16 %v1168
    %v1889 = vunpack.c.h.b16 %v1168
    %v1890 = vunpack.c.l.b16 %v1169
    %v1891 = vunpack.c.h.b16 %v1169
    %v1892 = vunpack.c.l.b16 %v1170
    %v1893 = vunpack.c.h.b16 %v1170
    %v1894 = vunpack.c.l.b16 %v1171
    %v1895 = vunpack.c.h.b16 %v1171
    %v1896 = vunpack.c.l.b16 %v1172
    %v1897 = vunpack.c.h.b16 %v1172
    %v1898 = vunpack.c.l.b16 %v1173
    %v1899 = vunpack.c.h.b16 %v1173
    %v1900 = vunpack.c.l.b16 %v1174
    %v1901 = vunpack.c.h.b16 %v1174
    %v1902 = vunpack.c.l.b16 %v1175
    %v1903 = vunpack.c.h.b16 %v1175
    %v1904 = vunpack.c.l.b16 %v1176
    %v1905 = vunpack.c.h.b16 %v1176
    %v1906 = vunpack.c.l.b16 %v1177
    %v1907 = vunpack.c.h.b16 %v1177
    %v1908 = vunpack.c.l.b16 %v1178
    %v1909 = vunpack.c.h.b16 %v1178
    %v1910 = vunpack.c.l.b16 %v1179
    %v1911 = vunpack.c.h.b16 %v1179
    %v1912 = vunpack.c.l.b16 %v1180
    %v1913 = vunpack.c.h.b16 %v1180
    %v1914 = vunpack.c.l.b16 %v1181
    %v1915 = vunpack.c.h.b16 %v1181
    %v1916 = vunpack.c.l.b16 %v1182
    %v1917 = vunpack.c.h.b16 %v1182
    %v1918 = vunpack.c.l.b16 %v1183
    %v1919 = vunpack.c.h.b16 %v1183
    %v1920 = vunpack.c.l.b16 %v1184
    %v1921 = vunpack.c.h.b16 %v1184
    %v1922 = vunpack.c.l.b16 %v1185
    %v1923 = vunpack.c.h.b16 %v1185
    %v1924 = vunpack.c.l.b16 %v1186
    %v1925 = vunpack.c.h.b16 %v1186
    %v1926 = vunpack.c.l.b16 %v1187
    %v1927 = vunpack.c.h.b16 %v1187
    %v1928 = vunpack.c.l.b16 %v1188
    %v1929 = vunpack.c.h.b16 %v1188
    %v1930 = vunpack.c.l.b16 %v1189
    %v1931 = vunpack.c.h.b16 %v1189
    %v1932 = vunpack.c.l.b16 %v1190
    %v1933 = vunpack.c.h.b16 %v1190
    %v1934 = vunpack.c.l.b16 %v1191
    %v1935 = vunpack.c.h.b16 %v1191
    %v1936 = vunpack.c.l.b16 %v1192
    %v1937 = vunpack.c.h.b16 %v1192
    %v1938 = vunpack.c.l.b16 %v1193
    %v1939 = vunpack.c.h.b16 %v1193
    %v1940 = vunpack.c.l.b16 %v1194
    %v1941 = vunpack.c.h.b16 %v1194
    %v1942 = vunpack.c.l.b16 %v1195
    %v1943 = vunpack.c.h.b16 %v1195
    %v1944 = vunpack.c.l.b16 %v1196
    %v1945 = vunpack.c.h.b16 %v1196
    %v1946 = vunpack.c.l.b16 %v1197
    %v1947 = vunpack.c.h.b16 %v1197
    %v1948 = vunpack.c.l.b16 %v1198
    %v1949 = vunpack.c.h.b16 %v1198
    %v1950 = vunpack.c.l.b16 %v1199
    %v1951 = vunpack.c.h.b16 %v1199
    %v1952 = vunpack.c.l.b16 %v1200
    %v1953 = vunpack.c.h.b16 %v1200
    %v1954 = vunpack.c.l.b16 %v1201
    %v1955 = vunpack.c.h.b16 %v1201
    %v1956 = vunpack.c.l.b16 %v1202
    %v1957 = vunpack.c.h.b16 %v1202
    %v1958 = vunpack.c.l.b16 %v1203
    %v1959 = vunpack.c.h.b16 %v1203
    %v1960 = vunpack.c.l.b16 %v1204
    %v1961 = vunpack.c.h.b16 %v1204
    %v1962 = vunpack.c.l.b16 %v1205
    %v1963 = vunpack.c.h.b16 %v1205
    %v1964 = vunpack.c.l.b16 %v1206
    %v1965 = vunpack.c.h.b16 %v1206
    %v1966 = vunpack.c.l.b16 %v1207
    %v1967 = vunpack.c.h.b16 %v1207
    %v1968 = vunpack.c.l.b16 %v1208
    %v1969 = vunpack.c.h.b16 %v1208
    %v1970 = vunpack.c.l.b16 %v1209
    %v1971 = vunpack.c.h.b16 %v1209
    %v1972 = vunpack.c.l.b16 %v1210
    %v1973 = vunpack.c.h.b16 %v1210
    %v1974 = vunpack.c.l.b16 %v1211
    %v1975 = vunpack.c.h.b16 %v1211
    %v1976 = vunpack.c.l.b16 %v1212
    %v1977 = vunpack.c.h.b16 %v1212
    %v1978 = vunpack.c.l.b16 %v1213
    %v1979 = vunpack.c.h.b16 %v1213
    %v1980 = vunpack.c.l.b16 %v1214
    %v1981 = vunpack.c.h.b16 %v1214
    %v1982 = vunpack.c.l.b16 %v1215
    %v1983 = vunpack.c.h.b16 %v1215
    %v1984 = vunpack.c.l.b16 %v1216
    %v1985 = vunpack.c.h.b16 %v1216
    %v1986 = vunpack.c.l.b16 %v1217
    %v1987 = vunpack.c.h.b16 %v1217
    %v1988 = vunpack.c.l.b16 %v1218
    %v1989 = vunpack.c.h.b16 %v1218
    %v1990 = vunpack.c.l.b16 %v1219
    %v1991 = vunpack.c.h.b16 %v1219
    %v1992 = vunpack.c.l.b16 %v1220
    %v1993 = vunpack.c.h.b16 %v1220
    %v1994 = vunpack.c.l.b16 %v1221
    %v1995 = vunpack.c.h.b16 %v1221
    %v1996 = vunpack.c.l.b16 %v1222
    %v1997 = vunpack.c.h.b16 %v1222
    %v1998 = vunpack.c.l.b16 %v1223
    %v1999 = vunpack.c.h.b16 %v1223
    %v2000 = vunpack.c.l.b16 %v1224
    %v2001 = vunpack.c.h.b16 %v1224
    %v2002 = vunpack.c.l.b16 %v1225
    %v2003 = vunpack.c.h.b16 %v1225
    %v2004 = vunpack.c.l.b16 %v1226
    %v2005 = vunpack.c.h.b16 %v1226
    %v2006 = vunpack.c.l.b16 %v1227
    %v2007 = vunpack.c.h.b16 %v1227
    %v2008 = vunpack.c.l.b16 %v1228
    %v2009 = vunpack.c.h.b16 %v1228
    %v2010 = vunpack.c.l.b16 %v1229
    %v2011 = vunpack.c.h.b16 %v1229
    %v2012 = vunpack.c.l.b16 %v1230
    %v2013 = vunpack.c.h.b16 %v1230
    %v2014 = vunpack.c.l.b16 %v1231
    %v2015 = vunpack.c.h.b16 %v1231
    %v2016 = vunpack.c.l.b16 %v1232
    %v2017 = vunpack.c.h.b16 %v1232
    %v2018 = vunpack.c.l.b16 %v1233
    %v2019 = vunpack.c.h.b16 %v1233
    %v2020 = vpack.c.b16 %v1516, %v1508
    %v2021 = vpack.c.b16 %v1517, %v1509
    %v2022 = vpack.c.b16 %v1518, %v1510
    %v2023 = vpack.c.b16 %v1519, %v1511
    %v2024 = vpack.c.b16 %v1520, %v1512
    %v2025 = vpack.c.b16 %v1521, %v1513
    %v2026 = vpack.c.b16 %v1522, %v1514
    %v2027 = vpack.c.b16 %v1523, %v1515
    %v2028 = vpack.c.b16 %v1532, %v1524
    %v2029 = vpack.c.b16 %v1533, %v1525
    %v2030 = vpack.c.b16 %v1534, %v1526
    %v2031 = vpack.c.b16 %v1535, %v1527
    %v2032 = vpack.c.b16 %v1536, %v1528
    %v2033 = vpack.c.b16 %v1537, %v1529
    %v2034 = vpack.c.b16 %v1538, %v1530
    %v2035 = vpack.c.b16 %v1539, %v1531
    %v2036 = vpack.c.b16 %v1548, %v1540
    %v2037 = vpack.c.b16 %v1549, %v1541
    %v2038 = vpack.c.b16 %v1550, %v1542
    %v2039 = vpack.c.b16 %v1551, %v1543
    %v2040 = vpack.c.b16 %v1552, %v1544
    %v2041 = vpack.c.b16 %v1553, %v1545
    %v2042 = vpack.c.b16 %v1554, %v1546
    %v2043 = vpack.c.b16 %v1555, %v1547
    %v2044 = vpack.c.b16 %v1564, %v1556
    %v2045 = vpack.c.b16 %v1565, %v1557
    %v2046 = vpack.c.b16 %v1566, %v1558
    %v2047 = vpack.c.b16 %v1567, %v1559
    %v2048 = vpack.c.b16 %v1568, %v1560
    %v2049 = vpack.c.b16 %v1569, %v1561
    %v2050 = vpack.c.b16 %v1570, %v1562
    %v2051 = vpack.c.b16 %v1571, %v1563
    %v2052 = vpack.c.b16 %v1580, %v1572
    %v2053 = vpack.c.b16 %v1581, %v1573
    %v2054 = vpack.c.b16 %v1582, %v1574
    %v2055 = vpack.c.b16 %v1583, %v1575
    %v2056 = vpack.c.b16 %v1584, %v1576
    %v2057 = vpack.c.b16 %v1585, %v1577
    %v2058 = vpack.c.b16 %v1586, %v1578
    %v2059 = vpack.c.b16 %v1587, %v1579
    %v2060 = vpack.c.b16 %v1596, %v1588
    %v2061 = vpack.c.b16 %v1597, %v1589
    %v2062 = vpack.c.b16 %v1598, %v1590
    %v2063 = vpack.c.b16 %v1599, %v1591
    %v2064 = vpack.c.b16 %v1600, %v1592
    %v2065 = vpack.c.b16 %v1601, %v1593
    %v2066 = vpack.c.b16 %v1602, %v1594
    %v2067 = vpack.c.b16 %v1603, %v1595
    %v2068 = vpack.c.b16 %v1612, %v1604
    %v2069 = vpack.c.b16 %v1613, %v1605
    %v2070 = vpack.c.b16 %v1614, %v1606
    %v2071 = vpack.c.b16 %v1615, %v1607
    %v2072 = vpack.c.b16 %v1616, %v1608
    %v2073 = vpack.c.b16 %v1617, %v1609
    %v2074 = vpack.c.b16 %v1618, %v1610
    %v2075 = vpack.c.b16 %v1619, %v1611
    %v2076 = vpack.c.b16 %v1628, %v1620
    %v2077 = vpack.c.b16 %v1629, %v1621
    %v2078 = vpack.c.b16 %v1630, %v1622
    %v2079 = vpack.c.b16 %v1631, %v1623
    %v2080 = vpack.c.b16 %v1632, %v1624
    %v2081 = vpack.c.b16 %v1633, %v1625
    %v2082 = vpack.c.b16 %v1634, %v1626
    %v2083 = vpack.c.b16 %v1635, %v1627
    %v2084 = vpack.c.b16 %v1644, %v1636
    %v2085 = vpack.c.b16 %v1645, %v1637
    %v2086 = vpack.c.b16 %v1646, %v1638
    %v2087 = vpack.c.b16 %v1647, %v1639
    %v2088 = vpack.c.b16 %v1648, %v1640
    %v2089 = vpack.c.b16 %v1649, %v1641
    %v2090 = vpack.c.b16 %v1650, %v1642
    %v2091 = vpack.c.b16 %v1651, %v1643
    %v2092 = vpack.c.b16 %v1660, %v1652
    %v2093 = vpack.c.b16 %v1661, %v1653
    %v2094 = vpack.c.b16 %v1662, %v1654
    %v2095 = vpack.c.b16 %v1663, %v1655
    %v2096 = vpack.c.b16 %v1664, %v1656
    %v2097 = vpack.c.b16 %v1665, %v1657
    %v2098 = vpack.c.b16 %v1666, %v1658
    %v2099 = vpack.c.b16 %v1667, %v1659
    %v2100 = vpack.c.b16 %v1676, %v1668
    %v2101 = vpack.c.b16 %v1677, %v1669
    %v2102 = vpack.c.b16 %v1678, %v1670
    %v2103 = vpack.c.b16 %v1679, %v1671
    %v2104 = vpack.c.b16 %v1680, %v1672
    %v2105 = vpack.c.b16 %v1681, %v1673
    %v2106 = vpack.c.b16 %v1682, %v1674
    %v2107 = vpack.c.b16 %v1683, %v1675
    %v2108 = vpack.c.b16 %v1692, %v1684
    %v2109 = vpack.c.b16 %v1693, %v1685
    %v2110 = vpack.c.b16 %v1694, %v1686
    %v2111 = vpack.c.b16 %v1695, %v1687
    %v2112 = vpack.c.b16 %v1696, %v1688
    %v2113 = vpack.c.b16 %v1697, %v1689
    %v2114 = vpack.c.b16 %v1698, %v1690
    %v2115 = vpack.c.b16 %v1699, %v1691
    %v2116 = vpack.c.b16 %v1708, %v1700
    %v2117 = vpack.c.b16 %v1709, %v1701
    %v2118 = vpack.c.b16 %v1710, %v1702
    %v2119 = vpack.c.b16 %v1711, %v1703
    %v2120 = vpack.c.b16 %v1712, %v1704
    %v2121 = vpack.c.b16 %v1713, %v1705
    %v2122 = vpack.c.b16 %v1714, %v1706
    %v2123 = vpack.c.b16 %v1715, %v1707
    %v2124 = vpack.c.b16 %v1724, %v1716
    %v2125 = vpack.c.b16 %v1725, %v1717
    %v2126 = vpack.c.b16 %v1726, %v1718
    %v2127 = vpack.c.b16 %v1727, %v1719
    %v2128 = vpack.c.b16 %v1728, %v1720
    %v2129 = vpack.c.b16 %v1729, %v1721
    %v2130 = vpack.c.b16 %v1730, %v1722
    %v2131 = vpack.c.b16 %v1731, %v1723
    %v2132 = vpack.c.b16 %v1740, %v1732
    %v2133 = vpack.c.b16 %v1741, %v1733
    %v2134 = vpack.c.b16 %v1742, %v1734
    %v2135 = vpack.c.b16 %v1743, %v1735
    %v2136 = vpack.c.b16 %v1744, %v1736
    %v2137 = vpack.c.b16 %v1745, %v1737
    %v2138 = vpack.c.b16 %v1746, %v1738
    %v2139 = vpack.c.b16 %v1747, %v1739
    %v2140 = vpack.c.b16 %v1756, %v1748
    %v2141 = vpack.c.b16 %v1757, %v1749
    %v2142 = vpack.c.b16 %v1758, %v1750
    %v2143 = vpack.c.b16 %v1759, %v1751
    %v2144 = vpack.c.b16 %v1760, %v1752
    %v2145 = vpack.c.b16 %v1761, %v1753
    %v2146 = vpack.c.b16 %v1762, %v1754
    %v2147 = vpack.c.b16 %v1763, %v1755
    %v2148 = vpack.c.b16 %v1772, %v1764
    %v2149 = vpack.c.b16 %v1773, %v1765
    %v2150 = vpack.c.b16 %v1774, %v1766
    %v2151 = vpack.c.b16 %v1775, %v1767
    %v2152 = vpack.c.b16 %v1776, %v1768
    %v2153 = vpack.c.b16 %v1777, %v1769
    %v2154 = vpack.c.b16 %v1778, %v1770
    %v2155 = vpack.c.b16 %v1779, %v1771
    %v2156 = vpack.c.b16 %v1788, %v1780
    %v2157 = vpack.c.b16 %v1789, %v1781
    %v2158 = vpack.c.b16 %v1790, %v1782
    %v2159 = vpack.c.b16 %v1791, %v1783
    %v2160 = vpack.c.b16 %v1792, %v1784
    %v2161 = vpack.c.b16 %v1793, %v1785
    %v2162 = vpack.c.b16 %v1794, %v1786
    %v2163 = vpack.c.b16 %v1795, %v1787
    %v2164 = vpack.c.b16 %v1804, %v1796
    %v2165 = vpack.c.b16 %v1805, %v1797
    %v2166 = vpack.c.b16 %v1806, %v1798
    %v2167 = vpack.c.b16 %v1807, %v1799
    %v2168 = vpack.c.b16 %v1808, %v1800
    %v2169 = vpack.c.b16 %v1809, %v1801
    %v2170 = vpack.c.b16 %v1810, %v1802
    %v2171 = vpack.c.b16 %v1811, %v1803
    %v2172 = vpack.c.b16 %v1820, %v1812
    %v2173 = vpack.c.b16 %v1821, %v1813
    %v2174 = vpack.c.b16 %v1822, %v1814
    %v2175 = vpack.c.b16 %v1823, %v1815
    %v2176 = vpack.c.b16 %v1824, %v1816
    %v2177 = vpack.c.b16 %v1825, %v1817
    %v2178 = vpack.c.b16 %v1826, %v1818
    %v2179 = vpack.c.b16 %v1827, %v1819
    %v2180 = vpack.c.b16 %v1836, %v1828
    %v2181 = vpack.c.b16 %v1837, %v1829
    %v2182 = vpack.c.b16 %v1838, %v1830
    %v2183 = vpack.c.b16 %v1839, %v1831
    %v2184 = vpack.c.b16 %v1840, %v1832
    %v2185 = vpack.c.b16 %v1841, %v1833
    %v2186 = vpack.c.b16 %v1842, %v1834
    %v2187 = vpack.c.b16 %v1843, %v1835
    %v2188 = vpack.c.b16 %v1852, %v1844
    %v2189 = vpack.c.b16 %v1853, %v1845
    %v2190 = vpack.c.b16 %v1854, %v1846
    %v2191 = vpack.c.b16 %v1855, %v1847
    %v2192 = vpack.c.b16 %v1856, %v1848
    %v2193 = vpack.c.b16 %v1857, %v1849
    %v2194 = vpack.c.b16 %v1858, %v1850
    %v2195 = vpack.c.b16 %v1859, %v1851
    %v2196 = vpack.c.b16 %v1868, %v1860
    %v2197 = vpack.c.b16 %v1869, %v1861
    %v2198 = vpack.c.b16 %v1870, %v1862
    %v2199 = vpack.c.b16 %v1871, %v1863
    %v2200 = vpack.c.b16 %v1872, %v1864
    %v2201 = vpack.c.b16 %v1873, %v1865
    %v2202 = vpack.c.b16 %v1874, %v1866
    %v2203 = vpack.c.b16 %v1875, %v1867
    %v2204 = vpack.c.b16 %v1884, %v1876
    %v2205 = vpack.c.b16 %v1885, %v1877
    %v2206 = vpack.c.b16 %v1886, %v1878
    %v2207 = vpack.c.b16 %v1887, %v1879
    %v2208 = vpack.c.b16 %v1888, %v1880
    %v2209 = vpack.c.b16 %v1889, %v1881
    %v2210 = vpack.c.b16 %v1890, %v1882
    %v2211 = vpack.c.b16 %v1891, %v1883
    %v2212 = vpack.c.b16 %v1900, %v1892
    %v2213 = vpack.c.b16 %v1901, %v1893
    %v2214 = vpack.c.b16 %v1902, %v1894
    %v2215 = vpack.c.b16 %v1903, %v1895
    %v2216 = vpack.c.b16 %v1904, %v1896
    %v2217 = vpack.c.b16 %v1905, %v1897
    %v2218 = vpack.c.b16 %v1906, %v1898
    %v2219 = vpack.c.b16 %v1907, %v1899
    %v2220 = vpack.c.b16 %v1916, %v1908
    %v2221 = vpack.c.b16 %v1917, %v1909
    %v2222 = vpack.c.b16 %v1918, %v1910
    %v2223 = vpack.c.b16 %v1919, %v1911
    %v2224 = vpack.c.b16 %v1920, %v1912
    %v2225 = vpack.c.b16 %v1921, %v1913
    %v2226 = vpack.c.b16 %v1922, %v1914
    %v2227 = vpack.c.b16 %v1923, %v1915
    %v2228 = vpack.c.b16 %v1932, %v1924
    %v2229 = vpack.c.b16 %v1933, %v1925
    %v2230 = vpack.c.b16 %v1934, %v1926
    %v2231 = vpack.c.b16 %v1935, %v1927
    %v2232 = vpack.c.b16 %v1936, %v1928
    %v2233 = vpack.c.b16 %v1937, %v1929
    %v2234 = vpack.c.b16 %v1938, %v1930
    %v2235 = vpack.c.b16 %v1939, %v1931
    %v2236 = vpack.c.b16 %v1948, %v1940
    %v2237 = vpack.c.b16 %v1949, %v1941
    %v2238 = vpack.c.b16 %v1950, %v1942
    %v2239 = vpack.c.b16 %v1951, %v1943
    %v2240 = vpack.c.b16 %v1952, %v1944
    %v2241 = vpack.c.b16 %v1953, %v1945
    %v2242 = vpack.c.b16 %v1954, %v1946
    %v2243 = vpack.c.b16 %v1955, %v1947
    %v2244 = vpack.c.b16 %v1964, %v1956
    %v2245 = vpack.c.b16 %v1965, %v1957
    %v2246 = vpack.c.b16 %v1966, %v1958
    %v2247 = vpack.c.b16 %v1967, %v1959
    %v2248 = vpack.c.b16 %v1968, %v1960
    %v2249 = vpack.c.b16 %v1969, %v1961
    %v2250 = vpack.c.b16 %v1970, %v1962
    %v2251 = vpack.c.b16 %v1971, %v1963
    %v2252 = vpack.c.b16 %v1980, %v1972
    %v2253 = vpack.c.b16 %v1981, %v1973
    %v2254 = vpack.c.b16 %v1982, %v1974
    %v2255 = vpack.c.b16 %v1983, %v1975
    %v2256 = vpack.c.b16 %v1984, %v1976
    %v2257 = vpack.c.b16 %v1985, %v1977
    %v2258 = vpack.c.b16 %v1986, %v1978
    %v2259 = vpack.c.b16 %v1987, %v1979
    %v2260 = vpack.c.b16 %v1996, %v1988
    %v2261 = vpack.c.b16 %v1997, %v1989
    %v2262 = vpack.c.b16 %v1998, %v1990
    %v2263 = vpack.c.b16 %v1999, %v1991
    %v2264 = vpack.c.b16 %v2000, %v1992
    %v2265 = vpack.c.b16 %v2001, %v1993
    %v2266 = vpack.c.b16 %v2002, %v1994
    %v2267 = vpack.c.b16 %v2003, %v1995
    %v2268 = vpack.c.b16 %v2012, %v2004
    %v2269 = vpack.c.b16 %v2013, %v2005
    %v2270 = vpack.c.b16 %v2014, %v2006
    %v2271 = vpack.c.b16 %v2015, %v2007
    %v2272 = vpack.c.b16 %v2016, %v2008
    %v2273 = vpack.c.b16 %v2017, %v2009
    %v2274 = vpack.c.b16 %v2018, %v2010
    %v2275 = vpack.c.b16 %v2019, %v2011
    %2532 = vmatpush.bf16.msra.mxu0 %v2076
    %2533 = vmatpush.bf16.msra.mxu0 %v2068
    %2534 = vmatpush.bf16.msra.mxu0 %v2060
    %2535 = vmatpush.bf16.msra.mxu0 %v2052
    %2536 = vmatpush.bf16.msra.mxu0 %v2044
    %2537 = vmatpush.bf16.msra.mxu0 %v2036
    %2538 = vmatpush.bf16.msra.mxu0 %v2028
    %2539 = vmatpush.bf16.msra.mxu0 %v2020
    %2540 = vmatmul.bf16.gmra.mxu0 %v974
    %v2541 = vpop.f32.mrf.mxu0
    %v2542 = vadd.f32 %v1236, %v2541
    %v2543 = vpop.f32.mrf.mxu0
    %v2544 = vadd.f32 %v1236, %v2543
    %2545 = vdwg.mxu0
    %2546 = vmatpush.bf16.msra.mxu0 %v2140
    %2547 = vmatpush.bf16.msra.mxu0 %v2132
    %2548 = vmatpush.bf16.msra.mxu0 %v2124
    %2549 = vmatpush.bf16.msra.mxu0 %v2116
    %2550 = vmatpush.bf16.msra.mxu0 %v2108
    %2551 = vmatpush.bf16.msra.mxu0 %v2100
    %2552 = vmatpush.bf16.msra.mxu0 %v2092
    %2553 = vmatpush.bf16.msra.mxu0 %v2084
    %2554 = vmatmul.bf16.gmra.mxu0 %v975
    %v2555 = vpop.f32.mrf.mxu0
    %v2556 = vadd.f32 %v2542, %v2555
    %v2557 = vpop.f32.mrf.mxu0
    %v2558 = vadd.f32 %v2544, %v2557
    %2559 = vdwg.mxu0
    %2560 = vmatpush.bf16.msra.mxu0 %v2204
    %2561 = vmatpush.bf16.msra.mxu0 %v2196
    %2562 = vmatpush.bf16.msra.mxu0 %v2188
    %2563 = vmatpush.bf16.msra.mxu0 %v2180
    %2564 = vmatpush.bf16.msra.mxu0 %v2172
    %2565 = vmatpush.bf16.msra.mxu0 %v2164
    %2566 = vmatpush.bf16.msra.mxu0 %v2156
    %2567 = vmatpush.bf16.msra.mxu0 %v2148
    %2568 = vmatmul.bf16.gmra.mxu0 %v976
    %v2569 = vpop.f32.mrf.mxu0
    %v2570 = vadd.f32 %v2556, %v2569
    %v2571 = vpop.f32.mrf.mxu0
    %v2572 = vadd.f32 %v2558, %v2571
    %2573 = vdwg.mxu0
    %2574 = vmatpush.bf16.msra.mxu0 %v2268
    %2575 = vmatpush.bf16.msra.mxu0 %v2260
    %2576 = vmatpush.bf16.msra.mxu0 %v2252
    %2577 = vmatpush.bf16.msra.mxu0 %v2244
    %2578 = vmatpush.bf16.msra.mxu0 %v2236
    %2579 = vmatpush.bf16.msra.mxu0 %v2228
    %2580 = vmatpush.bf16.msra.mxu0 %v2220
    %2581 = vmatpush.bf16.msra.mxu0 %v2212
    %2582 = vmatmul.bf16.gmra.mxu0 %v977
    %v2583 = vpop.f32.mrf.mxu0
    %v2584 = vadd.f32 %v2570, %v2583
    %v2585 = vpop.f32.mrf.mxu0
    %v2586 = vadd.f32 %v2572, %v2585
    %2587 = vdwg.mxu0
    %2588 = vmatpush.bf16.msra.mxu0 %v2077
    %2589 = vmatpush.bf16.msra.mxu0 %v2069
    %2590 = vmatpush.bf16.msra.mxu0 %v2061
    %2591 = vmatpush.bf16.msra.mxu0 %v2053
    %2592 = vmatpush.bf16.msra.mxu0 %v2045
    %2593 = vmatpush.bf16.msra.mxu0 %v2037
    %2594 = vmatpush.bf16.msra.mxu0 %v2029
    %2595 = vmatpush.bf16.msra.mxu0 %v2021
    %2596 = vmatmul.bf16.gmra.mxu0 %v974
    %v2597 = vpop.f32.mrf.mxu0
    %v2598 = vadd.f32 %v1237, %v2597
    %v2599 = vpop.f32.mrf.mxu0
    %v2600 = vadd.f32 %v1237, %v2599
    %2601 = vdwg.mxu0
    %2602 = vmatpush.bf16.msra.mxu0 %v2141
    %2603 = vmatpush.bf16.msra.mxu0 %v2133
    %2604 = vmatpush.bf16.msra.mxu0 %v2125
    %2605 = vmatpush.bf16.msra.mxu0 %v2117
    %2606 = vmatpush.bf16.msra.mxu0 %v2109
    %2607 = vmatpush.bf16.msra.mxu0 %v2101
    %2608 = vmatpush.bf16.msra.mxu0 %v2093
    %2609 = vmatpush.bf16.msra.mxu0 %v2085
    %2610 = vmatmul.bf16.gmra.mxu0 %v975
    %v2611 = vpop.f32.mrf.mxu0
    %v2612 = vadd.f32 %v2598, %v2611
    %v2613 = vpop.f32.mrf.mxu0
    %v2614 = vadd.f32 %v2600, %v2613
    %2615 = vdwg.mxu0
    %2616 = vmatpush.bf16.msra.mxu0 %v2205
    %2617 = vmatpush.bf16.msra.mxu0 %v2197
    %2618 = vmatpush.bf16.msra.mxu0 %v2189
    %2619 = vmatpush.bf16.msra.mxu0 %v2181
    %2620 = vmatpush.bf16.msra.mxu0 %v2173
    %2621 = vmatpush.bf16.msra.mxu0 %v2165
    %2622 = vmatpush.bf16.msra.mxu0 %v2157
    %2623 = vmatpush.bf16.msra.mxu0 %v2149
    %2624 = vmatmul.bf16.gmra.mxu0 %v976
    %v2625 = vpop.f32.mrf.mxu0
    %v2626 = vadd.f32 %v2612, %v2625
    %v2627 = vpop.f32.mrf.mxu0
    %v2628 = vadd.f32 %v2614, %v2627
    %2629 = vdwg.mxu0
    %2630 = vmatpush.bf16.msra.mxu0 %v2269
    %2631 = vmatpush.bf16.msra.mxu0 %v2261
    %2632 = vmatpush.bf16.msra.mxu0 %v2253
    %2633 = vmatpush.bf16.msra.mxu0 %v2245
    %2634 = vmatpush.bf16.msra.mxu0 %v2237
    %2635 = vmatpush.bf16.msra.mxu0 %v2229
    %2636 = vmatpush.bf16.msra.mxu0 %v2221
    %2637 = vmatpush.bf16.msra.mxu0 %v2213
    %2638 = vmatmul.bf16.gmra.mxu0 %v977
    %v2639 = vpop.f32.mrf.mxu0
    %v2640 = vadd.f32 %v2626, %v2639
    %v2641 = vpop.f32.mrf.mxu0
    %v2642 = vadd.f32 %v2628, %v2641
    %2643 = vdwg.mxu0
    %2644 = vmatpush.bf16.msra.mxu0 %v2078
    %2645 = vmatpush.bf16.msra.mxu0 %v2070
    %2646 = vmatpush.bf16.msra.mxu0 %v2062
    %2647 = vmatpush.bf16.msra.mxu0 %v2054
    %2648 = vmatpush.bf16.msra.mxu0 %v2046
    %2649 = vmatpush.bf16.msra.mxu0 %v2038
    %2650 = vmatpush.bf16.msra.mxu0 %v2030
    %2651 = vmatpush.bf16.msra.mxu0 %v2022
    %2652 = vmatmul.bf16.gmra.mxu0 %v974
    %v2653 = vpop.f32.mrf.mxu0
    %v2654 = vadd.f32 %v1238, %v2653
    %v2655 = vpop.f32.mrf.mxu0
    %v2656 = vadd.f32 %v1238, %v2655
    %2657 = vdwg.mxu0
    %2658 = vmatpush.bf16.msra.mxu0 %v2142
    %2659 = vmatpush.bf16.msra.mxu0 %v2134
    %2660 = vmatpush.bf16.msra.mxu0 %v2126
    %2661 = vmatpush.bf16.msra.mxu0 %v2118
    %2662 = vmatpush.bf16.msra.mxu0 %v2110
    %2663 = vmatpush.bf16.msra.mxu0 %v2102
    %2664 = vmatpush.bf16.msra.mxu0 %v2094
    %2665 = vmatpush.bf16.msra.mxu0 %v2086
    %2666 = vmatmul.bf16.gmra.mxu0 %v975
    %v2667 = vpop.f32.mrf.mxu0
    %v2668 = vadd.f32 %v2654, %v2667
    %v2669 = vpop.f32.mrf.mxu0
    %v2670 = vadd.f32 %v2656, %v2669
    %2671 = vdwg.mxu0
    %2672 = vmatpush.bf16.msra.mxu0 %v2206
    %2673 = vmatpush.bf16.msra.mxu0 %v2198
    %2674 = vmatpush.bf16.msra.mxu0 %v2190
    %2675 = vmatpush.bf16.msra.mxu0 %v2182
    %2676 = vmatpush.bf16.msra.mxu0 %v2174
    %2677 = vmatpush.bf16.msra.mxu0 %v2166
    %2678 = vmatpush.bf16.msra.mxu0 %v2158
    %2679 = vmatpush.bf16.msra.mxu0 %v2150
    %2680 = vmatmul.bf16.gmra.mxu0 %v976
    %v2681 = vpop.f32.mrf.mxu0
    %v2682 = vadd.f32 %v2668, %v2681
    %v2683 = vpop.f32.mrf.mxu0
    %v2684 = vadd.f32 %v2670, %v2683
    %2685 = vdwg.mxu0
    %2686 = vmatpush.bf16.msra.mxu0 %v2270
    %2687 = vmatpush.bf16.msra.mxu0 %v2262
    %2688 = vmatpush.bf16.msra.mxu0 %v2254
    %2689 = vmatpush.bf16.msra.mxu0 %v2246
    %2690 = vmatpush.bf16.msra.mxu0 %v2238
    %2691 = vmatpush.bf16.msra.mxu0 %v2230
    %2692 = vmatpush.bf16.msra.mxu0 %v2222
    %2693 = vmatpush.bf16.msra.mxu0 %v2214
    %2694 = vmatmul.bf16.gmra.mxu0 %v977
    %v2695 = vpop.f32.mrf.mxu0
    %v2696 = vadd.f32 %v2682, %v2695
    %v2697 = vpop.f32.mrf.mxu0
    %v2698 = vadd.f32 %v2684, %v2697
    %2699 = vdwg.mxu0
    %2700 = vmatpush.bf16.msra.mxu0 %v2079
    %2701 = vmatpush.bf16.msra.mxu0 %v2071
    %2702 = vmatpush.bf16.msra.mxu0 %v2063
    %2703 = vmatpush.bf16.msra.mxu0 %v2055
    %2704 = vmatpush.bf16.msra.mxu0 %v2047
    %2705 = vmatpush.bf16.msra.mxu0 %v2039
    %2706 = vmatpush.bf16.msra.mxu0 %v2031
    %2707 = vmatpush.bf16.msra.mxu0 %v2023
    %2708 = vmatmul.bf16.gmra.mxu0 %v974
    %v2709 = vpop.f32.mrf.mxu0
    %v2710 = vadd.f32 %v1239, %v2709
    %v2711 = vpop.f32.mrf.mxu0
    %v2712 = vadd.f32 %v1239, %v2711
    %2713 = vdwg.mxu0
    %2714 = vmatpush.bf16.msra.mxu0 %v2143
    %2715 = vmatpush.bf16.msra.mxu0 %v2135
    %2716 = vmatpush.bf16.msra.mxu0 %v2127
    %2717 = vmatpush.bf16.msra.mxu0 %v2119
    %2718 = vmatpush.bf16.msra.mxu0 %v2111
    %2719 = vmatpush.bf16.msra.mxu0 %v2103
    %2720 = vmatpush.bf16.msra.mxu0 %v2095
    %2721 = vmatpush.bf16.msra.mxu0 %v2087
    %2722 = vmatmul.bf16.gmra.mxu0 %v975
    %v2723 = vpop.f32.mrf.mxu0
    %v2724 = vadd.f32 %v2710, %v2723
    %v2725 = vpop.f32.mrf.mxu0
    %v2726 = vadd.f32 %v2712, %v2725
    %2727 = vdwg.mxu0
    %2728 = vmatpush.bf16.msra.mxu0 %v2207
    %2729 = vmatpush.bf16.msra.mxu0 %v2199
    %2730 = vmatpush.bf16.msra.mxu0 %v2191
    %2731 = vmatpush.bf16.msra.mxu0 %v2183
    %2732 = vmatpush.bf16.msra.mxu0 %v2175
    %2733 = vmatpush.bf16.msra.mxu0 %v2167
    %2734 = vmatpush.bf16.msra.mxu0 %v2159
    %2735 = vmatpush.bf16.msra.mxu0 %v2151
    %2736 = vmatmul.bf16.gmra.mxu0 %v976
    %v2737 = vpop.f32.mrf.mxu0
    %v2738 = vadd.f32 %v2724, %v2737
    %v2739 = vpop.f32.mrf.mxu0
    %v2740 = vadd.f32 %v2726, %v2739
    %2741 = vdwg.mxu0
    %2742 = vmatpush.bf16.msra.mxu0 %v2271
    %2743 = vmatpush.bf16.msra.mxu0 %v2263
    %2744 = vmatpush.bf16.msra.mxu0 %v2255
    %2745 = vmatpush.bf16.msra.mxu0 %v2247
    %2746 = vmatpush.bf16.msra.mxu0 %v2239
    %2747 = vmatpush.bf16.msra.mxu0 %v2231
    %2748 = vmatpush.bf16.msra.mxu0 %v2223
    %2749 = vmatpush.bf16.msra.mxu0 %v2215
    %2750 = vmatmul.bf16.gmra.mxu0 %v977
    %v2751 = vpop.f32.mrf.mxu0
    %v2752 = vadd.f32 %v2738, %v2751
    %v2753 = vpop.f32.mrf.mxu0
    %v2754 = vadd.f32 %v2740, %v2753
    %2755 = vdwg.mxu0
    %2756 = vmatpush.bf16.msra.mxu0 %v2080
    %2757 = vmatpush.bf16.msra.mxu0 %v2072
    %2758 = vmatpush.bf16.msra.mxu0 %v2064
    %2759 = vmatpush.bf16.msra.mxu0 %v2056
    %2760 = vmatpush.bf16.msra.mxu0 %v2048
    %2761 = vmatpush.bf16.msra.mxu0 %v2040
    %2762 = vmatpush.bf16.msra.mxu0 %v2032
    %2763 = vmatpush.bf16.msra.mxu0 %v2024
    %2764 = vmatmul.bf16.gmra.mxu0 %v974
    %v2765 = vpop.f32.mrf.mxu0
    %v2766 = vadd.f32 %v1240, %v2765
    %v2767 = vpop.f32.mrf.mxu0
    %v2768 = vadd.f32 %v1240, %v2767
    %2769 = vdwg.mxu0
    %2770 = vmatpush.bf16.msra.mxu0 %v2144
    %2771 = vmatpush.bf16.msra.mxu0 %v2136
    %2772 = vmatpush.bf16.msra.mxu0 %v2128
    %2773 = vmatpush.bf16.msra.mxu0 %v2120
    %2774 = vmatpush.bf16.msra.mxu0 %v2112
    %2775 = vmatpush.bf16.msra.mxu0 %v2104
    %2776 = vmatpush.bf16.msra.mxu0 %v2096
    %2777 = vmatpush.bf16.msra.mxu0 %v2088
    %2778 = vmatmul.bf16.gmra.mxu0 %v975
    %v2779 = vpop.f32.mrf.mxu0
    %v2780 = vadd.f32 %v2766, %v2779
    %v2781 = vpop.f32.mrf.mxu0
    %v2782 = vadd.f32 %v2768, %v2781
    %2783 = vdwg.mxu0
    %2784 = vmatpush.bf16.msra.mxu0 %v2208
    %2785 = vmatpush.bf16.msra.mxu0 %v2200
    %2786 = vmatpush.bf16.msra.mxu0 %v2192
    %2787 = vmatpush.bf16.msra.mxu0 %v2184
    %2788 = vmatpush.bf16.msra.mxu0 %v2176
    %2789 = vmatpush.bf16.msra.mxu0 %v2168
    %2790 = vmatpush.bf16.msra.mxu0 %v2160
    %2791 = vmatpush.bf16.msra.mxu0 %v2152
    %2792 = vmatmul.bf16.gmra.mxu0 %v976
    %v2793 = vpop.f32.mrf.mxu0
    %v2794 = vadd.f32 %v2780, %v2793
    %v2795 = vpop.f32.mrf.mxu0
    %v2796 = vadd.f32 %v2782, %v2795
    %2797 = vdwg.mxu0
    %2798 = vmatpush.bf16.msra.mxu0 %v2272
    %2799 = vmatpush.bf16.msra.mxu0 %v2264
    %2800 = vmatpush.bf16.msra.mxu0 %v2256
    %2801 = vmatpush.bf16.msra.mxu0 %v2248
    %2802 = vmatpush.bf16.msra.mxu0 %v2240
    %2803 = vmatpush.bf16.msra.mxu0 %v2232
    %2804 = vmatpush.bf16.msra.mxu0 %v2224
    %2805 = vmatpush.bf16.msra.mxu0 %v2216
    %2806 = vmatmul.bf16.gmra.mxu0 %v977
    %v2807 = vpop.f32.mrf.mxu0
    %v2808 = vadd.f32 %v2794, %v2807
    %v2809 = vpop.f32.mrf.mxu0
    %v2810 = vadd.f32 %v2796, %v2809
    %2811 = vdwg.mxu0
    %2812 = vmatpush.bf16.msra.mxu0 %v2081
    %2813 = vmatpush.bf16.msra.mxu0 %v2073
    %2814 = vmatpush.bf16.msra.mxu0 %v2065
    %2815 = vmatpush.bf16.msra.mxu0 %v2057
    %2816 = vmatpush.bf16.msra.mxu0 %v2049
    %2817 = vmatpush.bf16.msra.mxu0 %v2041
    %2818 = vmatpush.bf16.msra.mxu0 %v2033
    %2819 = vmatpush.bf16.msra.mxu0 %v2025
    %2820 = vmatmul.bf16.gmra.mxu0 %v974
    %v2821 = vpop.f32.mrf.mxu0
    %v2822 = vadd.f32 %v1241, %v2821
    %v2823 = vpop.f32.mrf.mxu0
    %v2824 = vadd.f32 %v1241, %v2823
    %2825 = vdwg.mxu0
    %2826 = vmatpush.bf16.msra.mxu0 %v2145
    %2827 = vmatpush.bf16.msra.mxu0 %v2137
    %2828 = vmatpush.bf16.msra.mxu0 %v2129
    %2829 = vmatpush.bf16.msra.mxu0 %v2121
    %2830 = vmatpush.bf16.msra.mxu0 %v2113
    %2831 = vmatpush.bf16.msra.mxu0 %v2105
    %2832 = vmatpush.bf16.msra.mxu0 %v2097
    %2833 = vmatpush.bf16.msra.mxu0 %v2089
    %2834 = vmatmul.bf16.gmra.mxu0 %v975
    %v2835 = vpop.f32.mrf.mxu0
    %v2836 = vadd.f32 %v2822, %v2835
    %v2837 = vpop.f32.mrf.mxu0
    %v2838 = vadd.f32 %v2824, %v2837
    %2839 = vdwg.mxu0
    %2840 = vmatpush.bf16.msra.mxu0 %v2209
    %2841 = vmatpush.bf16.msra.mxu0 %v2201
    %2842 = vmatpush.bf16.msra.mxu0 %v2193
    %2843 = vmatpush.bf16.msra.mxu0 %v2185
    %2844 = vmatpush.bf16.msra.mxu0 %v2177
    %2845 = vmatpush.bf16.msra.mxu0 %v2169
    %2846 = vmatpush.bf16.msra.mxu0 %v2161
    %2847 = vmatpush.bf16.msra.mxu0 %v2153
    %2848 = vmatmul.bf16.gmra.mxu0 %v976
    %v2849 = vpop.f32.mrf.mxu0
    %v2850 = vadd.f32 %v2836, %v2849
    %v2851 = vpop.f32.mrf.mxu0
    %v2852 = vadd.f32 %v2838, %v2851
    %2853 = vdwg.mxu0
    %2854 = vmatpush.bf16.msra.mxu0 %v2273
    %2855 = vmatpush.bf16.msra.mxu0 %v2265
    %2856 = vmatpush.bf16.msra.mxu0 %v2257
    %2857 = vmatpush.bf16.msra.mxu0 %v2249
    %2858 = vmatpush.bf16.msra.mxu0 %v2241
    %2859 = vmatpush.bf16.msra.mxu0 %v2233
    %2860 = vmatpush.bf16.msra.mxu0 %v2225
    %2861 = vmatpush.bf16.msra.mxu0 %v2217
    %2862 = vmatmul.bf16.gmra.mxu0 %v977
    %v2863 = vpop.f32.mrf.mxu0
    %v2864 = vadd.f32 %v2850, %v2863
    %v2865 = vpop.f32.mrf.mxu0
    %v2866 = vadd.f32 %v2852, %v2865
    %2867 = vdwg.mxu0
    %2868 = vmatpush.bf16.msra.mxu0 %v2082
    %2869 = vmatpush.bf16.msra.mxu0 %v2074
    %2870 = vmatpush.bf16.msra.mxu0 %v2066
    %2871 = vmatpush.bf16.msra.mxu0 %v2058
    %2872 = vmatpush.bf16.msra.mxu0 %v2050
    %2873 = vmatpush.bf16.msra.mxu0 %v2042
    %2874 = vmatpush.bf16.msra.mxu0 %v2034
    %2875 = vmatpush.bf16.msra.mxu0 %v2026
    %2876 = vmatmul.bf16.gmra.mxu0 %v974
    %v2877 = vpop.f32.mrf.mxu0
    %v2878 = vadd.f32 %v1242, %v2877
    %v2879 = vpop.f32.mrf.mxu0
    %v2880 = vadd.f32 %v1242, %v2879
    %2881 = vdwg.mxu0
    %2882 = vmatpush.bf16.msra.mxu0 %v2146
    %2883 = vmatpush.bf16.msra.mxu0 %v2138
    %2884 = vmatpush.bf16.msra.mxu0 %v2130
    %2885 = vmatpush.bf16.msra.mxu0 %v2122
    %2886 = vmatpush.bf16.msra.mxu0 %v2114
    %2887 = vmatpush.bf16.msra.mxu0 %v2106
    %2888 = vmatpush.bf16.msra.mxu0 %v2098
    %2889 = vmatpush.bf16.msra.mxu0 %v2090
    %2890 = vmatmul.bf16.gmra.mxu0 %v975
    %v2891 = vpop.f32.mrf.mxu0
    %v2892 = vadd.f32 %v2878, %v2891
    %v2893 = vpop.f32.mrf.mxu0
    %v2894 = vadd.f32 %v2880, %v2893
    %2895 = vdwg.mxu0
    %2896 = vmatpush.bf16.msra.mxu0 %v2210
    %2897 = vmatpush.bf16.msra.mxu0 %v2202
    %2898 = vmatpush.bf16.msra.mxu0 %v2194
    %2899 = vmatpush.bf16.msra.mxu0 %v2186
    %2900 = vmatpush.bf16.msra.mxu0 %v2178
    %2901 = vmatpush.bf16.msra.mxu0 %v2170
    %2902 = vmatpush.bf16.msra.mxu0 %v2162
    %2903 = vmatpush.bf16.msra.mxu0 %v2154
    %2904 = vmatmul.bf16.gmra.mxu0 %v976
    %v2905 = vpop.f32.mrf.mxu0
    %v2906 = vadd.f32 %v2892, %v2905
    %v2907 = vpop.f32.mrf.mxu0
    %v2908 = vadd.f32 %v2894, %v2907
    %2909 = vdwg.mxu0
    %2910 = vmatpush.bf16.msra.mxu0 %v2274
    %2911 = vmatpush.bf16.msra.mxu0 %v2266
    %2912 = vmatpush.bf16.msra.mxu0 %v2258
    %2913 = vmatpush.bf16.msra.mxu0 %v2250
    %2914 = vmatpush.bf16.msra.mxu0 %v2242
    %2915 = vmatpush.bf16.msra.mxu0 %v2234
    %2916 = vmatpush.bf16.msra.mxu0 %v2226
    %2917 = vmatpush.bf16.msra.mxu0 %v2218
    %2918 = vmatmul.bf16.gmra.mxu0 %v977
    %v2919 = vpop.f32.mrf.mxu0
    %v2920 = vadd.f32 %v2906, %v2919
    %v2921 = vpop.f32.mrf.mxu0
    %v2922 = vadd.f32 %v2908, %v2921
    %2923 = vdwg.mxu0
    %2924 = vmatpush.bf16.msra.mxu0 %v2083
    %2925 = vmatpush.bf16.msra.mxu0 %v2075
    %2926 = vmatpush.bf16.msra.mxu0 %v2067
    %2927 = vmatpush.bf16.msra.mxu0 %v2059
    %2928 = vmatpush.bf16.msra.mxu0 %v2051
    %2929 = vmatpush.bf16.msra.mxu0 %v2043
    %2930 = vmatpush.bf16.msra.mxu0 %v2035
    %2931 = vmatpush.bf16.msra.mxu0 %v2027
    %2932 = vmatmul.bf16.gmra.mxu0 %v974
    %v2933 = vpop.f32.mrf.mxu0
    %v2934 = vadd.f32 %v1243, %v2933
    %v2935 = vpop.f32.mrf.mxu0
    %v2936 = vadd.f32 %v1243, %v2935
    %2937 = vdwg.mxu0
    %2938 = vmatpush.bf16.msra.mxu0 %v2147
    %2939 = vmatpush.bf16.msra.mxu0 %v2139
    %2940 = vmatpush.bf16.msra.mxu0 %v2131
    %2941 = vmatpush.bf16.msra.mxu0 %v2123
    %2942 = vmatpush.bf16.msra.mxu0 %v2115
    %2943 = vmatpush.bf16.msra.mxu0 %v2107
    %2944 = vmatpush.bf16.msra.mxu0 %v2099
    %2945 = vmatpush.bf16.msra.mxu0 %v2091
    %2946 = vmatmul.bf16.gmra.mxu0 %v975
    %v2947 = vpop.f32.mrf.mxu0
    %v2948 = vadd.f32 %v2934, %v2947
    %v2949 = vpop.f32.mrf.mxu0
    %v2950 = vadd.f32 %v2936, %v2949
    %2951 = vdwg.mxu0
    %2952 = vmatpush.bf16.msra.mxu0 %v2211
    %2953 = vmatpush.bf16.msra.mxu0 %v2203
    %2954 = vmatpush.bf16.msra.mxu0 %v2195
    %2955 = vmatpush.bf16.msra.mxu0 %v2187
    %2956 = vmatpush.bf16.msra.mxu0 %v2179
    %2957 = vmatpush.bf16.msra.mxu0 %v2171
    %2958 = vmatpush.bf16.msra.mxu0 %v2163
    %2959 = vmatpush.bf16.msra.mxu0 %v2155
    %2960 = vmatmul.bf16.gmra.mxu0 %v976
    %v2961 = vpop.f32.mrf.mxu0
    %v2962 = vadd.f32 %v2948, %v2961
    %v2963 = vpop.f32.mrf.mxu0
    %v2964 = vadd.f32 %v2950, %v2963
    %2965 = vdwg.mxu0
    %2966 = vmatpush.bf16.msra.mxu0 %v2275
    %2967 = vmatpush.bf16.msra.mxu0 %v2267
    %2968 = vmatpush.bf16.msra.mxu0 %v2259
    %2969 = vmatpush.bf16.msra.mxu0 %v2251
    %2970 = vmatpush.bf16.msra.mxu0 %v2243
    %2971 = vmatpush.bf16.msra.mxu0 %v2235
    %2972 = vmatpush.bf16.msra.mxu0 %v2227
    %2973 = vmatpush.bf16.msra.mxu0 %v2219
    %2974 = vmatmul.bf16.gmra.mxu0 %v977
    %v2975 = vpop.f32.mrf.mxu0
    %v2976 = vadd.f32 %v2962, %v2975
    %v2977 = vpop.f32.mrf.mxu0
    %v2978 = vadd.f32 %v2964, %v2977
    %2979 = vdwg.mxu0
    %vm2980 = vcmp.ge.f32.partialorder %v2584, 0.0
    %vm2981 = vcmp.ge.f32.partialorder %v2640, 0.0
    %vm2982 = vcmp.ge.f32.partialorder %v2696, 0.0
    %vm2983 = vcmp.ge.f32.partialorder %v2752, 0.0
    %vm2984 = vcmp.ge.f32.partialorder %v2808, 0.0
    %vm2985 = vcmp.ge.f32.partialorder %v2864, 0.0
    %vm2986 = vcmp.ge.f32.partialorder %v2920, 0.0
    %vm2987 = vcmp.ge.f32.partialorder %v2976, 0.0
    %vm2988 = vcmp.ge.f32.partialorder %v2586, 0.0
    %vm2989 = vcmp.ge.f32.partialorder %v2642, 0.0
    %vm2990 = vcmp.ge.f32.partialorder %v2698, 0.0
    %vm2991 = vcmp.ge.f32.partialorder %v2754, 0.0
    %vm2992 = vcmp.ge.f32.partialorder %v2810, 0.0
    %vm2993 = vcmp.ge.f32.partialorder %v2866, 0.0
    %vm2994 = vcmp.ge.f32.partialorder %v2922, 0.0
    %vm2995 = vcmp.ge.f32.partialorder %v2978, 0.0
    %v2996 = vmul.f32 %v2584, 0.01
    %v2997 = vmul.f32 %v2640, 0.01
    %v2998 = vmul.f32 %v2696, 0.01
    %v2999 = vmul.f32 %v2752, 0.01
    %v3000 = vmul.f32 %v2808, 0.01
    %v3001 = vmul.f32 %v2864, 0.01
    %v3002 = vmul.f32 %v2920, 0.01
    %v3003 = vmul.f32 %v2976, 0.01
    %v3004 = vmul.f32 %v2586, 0.01
    %v3005 = vmul.f32 %v2642, 0.01
    %v3006 = vmul.f32 %v2698, 0.01
    %v3007 = vmul.f32 %v2754, 0.01
    %v3008 = vmul.f32 %v2810, 0.01
    %v3009 = vmul.f32 %v2866, 0.01
    %v3010 = vmul.f32 %v2922, 0.01
    %v3011 = vmul.f32 %v2978, 0.01
    %v3012 = vsel %vm2980, %v2584, %v2996
    %v3013 = vsel %vm2981, %v2640, %v2997
    %v3014 = vsel %vm2982, %v2696, %v2998
    %v3015 = vsel %vm2983, %v2752, %v2999
    %v3016 = vsel %vm2984, %v2808, %v3000
    %v3017 = vsel %vm2985, %v2864, %v3001
    %v3018 = vsel %vm2986, %v2920, %v3002
    %v3019 = vsel %vm2987, %v2976, %v3003
    %v3020 = vsel %vm2988, %v2586, %v3004
    %v3021 = vsel %vm2989, %v2642, %v3005
    %v3022 = vsel %vm2990, %v2698, %v3006
    %v3023 = vsel %vm2991, %v2754, %v3007
    %v3024 = vsel %vm2992, %v2810, %v3008
    %v3025 = vsel %vm2993, %v2866, %v3009
    %v3026 = vsel %vm2994, %v2922, %v3010
    %v3027 = vsel %vm2995, %v2978, %v3011
    %v3028 = vld [vmem:[%s9] sm:$0xff]
    %v3029 = vld [vmem:[#allocation16] sm:$0xff]
    %v3030 = vadd.f32 %v3012, %v3013
    %v3031 = vadd.f32 %v3030, %v3014
    %v3032 = vadd.f32 %v3031, %v3015
    %v3033 = vadd.f32 %v3032, %v3016
    %v3034 = vadd.f32 %v3033, %v3017
    %v3035 = vadd.f32 %v3034, %v3018
    %v3036 = vadd.f32 %v3035, %v3019
    %3037 = vadd.xlane.f32.xlu0 %v3036
    %v3038 = vpop.xlane.xlu0 %3037
    %v3039 = vadd.f32 %v3020, %v3021
    %v3040 = vadd.f32 %v3039, %v3022
    %v3041 = vadd.f32 %v3040, %v3023
    %v3042 = vadd.f32 %v3041, %v3024
    %v3043 = vadd.f32 %v3042, %v3025
    %v3044 = vadd.f32 %v3043, %v3026
    %v3045 = vadd.f32 %v3044, %v3027
    %3046 = vadd.xlane.f32.xlu0 %v3045
    %v3047 = vpop.xlane.xlu0 %3046
    %v3048 = vmul.f32 %v3038, 0.001
    %v3049 = vmul.f32 %v3047, 0.001
    %v3050 = vadd.s32 %v858, 512
    %v3051 = vadd.s32 %v858, 640
    %v3052 = vadd.s32 %v858, 768
    %v3053 = vadd.s32 %v858, 896
    %vm3054 = vcmp.lt.s32.totalorder %v858, 1000
    %vm3055 = vcmp.lt.s32.totalorder %v859, 1000
    %vm3056 = vcmp.lt.s32.totalorder %v860, 1000
    %vm3057 = vcmp.lt.s32.totalorder %v861, 1000
    %vm3058 = vcmp.lt.s32.totalorder %v3050, 1000
    %vm3059 = vcmp.lt.s32.totalorder %v3051, 1000
    %vm3060 = vcmp.lt.s32.totalorder %v3052, 1000
    %vm3061 = vcmp.lt.s32.totalorder %v3053, 1000
    %v3062 = vsub.f32 %v3012, %v3048
    %v3063 = vsub.f32 %v3013, %v3048
    %v3064 = vsub.f32 %v3014, %v3048
    %v3065 = vsub.f32 %v3015, %v3048
    %v3066 = vsub.f32 %v3016, %v3048
    %v3067 = vsub.f32 %v3017, %v3048
    %v3068 = vsub.f32 %v3018, %v3048
    %v3069 = vsub.f32 %v3019, %v3048
    %v3070 = vsub.f32 %v3020, %v3049
    %v3071 = vsub.f32 %v3021, %v3049
    %v3072 = vsub.f32 %v3022, %v3049
    %v3073 = vsub.f32 %v3023, %v3049
    %v3074 = vsub.f32 %v3024, %v3049
    %v3075 = vsub.f32 %v3025, %v3049
    %v3076 = vsub.f32 %v3026, %v3049
    %v3077 = vsub.f32 %v3027, %v3049
    %v3078 = vsel %vm3054, 1, 0
    %v3079 = vsel %vm3055, 1, 0
    %v3080 = vsel %vm3056, 1, 0
    %v3081 = vsel %vm3057, 1, 0
    %v3082 = vsel %vm3058, 1, 0
    %v3083 = vsel %vm3059, 1, 0
    %v3084 = vsel %vm3060, 1, 0
    %v3085 = vsel %vm3061, 1, 0
    %vm3086 = vcmp.eq.s32.totalorder %v3078, 1
    %vm3087 = vcmp.eq.s32.totalorder %v3079, 1
    %vm3088 = vcmp.eq.s32.totalorder %v3080, 1
    %vm3089 = vcmp.eq.s32.totalorder %v3081, 1
    %vm3090 = vcmp.eq.s32.totalorder %v3082, 1
    %vm3091 = vcmp.eq.s32.totalorder %v3083, 1
    %vm3092 = vcmp.eq.s32.totalorder %v3084, 1
    %vm3093 = vcmp.eq.s32.totalorder %v3085, 1
    %v3094 = vsel %vm3086, %v3062, 0.0
    %v3095 = vsel %vm3087, %v3063, 0.0
    %v3096 = vsel %vm3088, %v3064, 0.0
    %v3097 = vsel %vm3089, %v3065, 0.0
    %v3098 = vsel %vm3090, %v3066, 0.0
    %v3099 = vsel %vm3091, %v3067, 0.0
    %v3100 = vsel %vm3092, %v3068, 0.0
    %v3101 = vsel %vm3093, %v3069, 0.0
    %v3102 = vsel %vm3086, %v3070, 0.0
    %v3103 = vsel %vm3087, %v3071, 0.0
    %v3104 = vsel %vm3088, %v3072, 0.0
    %v3105 = vsel %vm3089, %v3073, 0.0
    %v3106 = vsel %vm3090, %v3074, 0.0
    %v3107 = vsel %vm3091, %v3075, 0.0
    %v3108 = vsel %vm3092, %v3076, 0.0
    %v3109 = vsel %vm3093, %v3077, 0.0
    %v3110 = vmul.f32 %v3094, %v3094
    %v3111 = vmul.f32 %v3095, %v3095
    %v3112 = vmul.f32 %v3096, %v3096
    %v3113 = vmul.f32 %v3097, %v3097
    %v3114 = vmul.f32 %v3098, %v3098
    %v3115 = vmul.f32 %v3099, %v3099
    %v3116 = vmul.f32 %v3100, %v3100
    %v3117 = vmul.f32 %v3101, %v3101
    %v3118 = vmul.f32 %v3102, %v3102
    %v3119 = vmul.f32 %v3103, %v3103
    %v3120 = vmul.f32 %v3104, %v3104
    %v3121 = vmul.f32 %v3105, %v3105
    %v3122 = vmul.f32 %v3106, %v3106
    %v3123 = vmul.f32 %v3107, %v3107
    %v3124 = vmul.f32 %v3108, %v3108
    %v3125 = vmul.f32 %v3109, %v3109
    %v3126 = vadd.f32 %v3110, %v3111
    %v3127 = vadd.f32 %v3126, %v3112
    %v3128 = vadd.f32 %v3127, %v3113
    %v3129 = vadd.f32 %v3128, %v3114
    %v3130 = vadd.f32 %v3129, %v3115
    %v3131 = vadd.f32 %v3130, %v3116
    %v3132 = vadd.f32 %v3131, %v3117
    %3133 = vadd.xlane.f32.xlu0 %v3132
    %v3134 = vpop.xlane.xlu0 %3133
    %v3135 = vadd.f32 %v3118, %v3119
    %v3136 = vadd.f32 %v3135, %v3120
    %v3137 = vadd.f32 %v3136, %v3121
    %v3138 = vadd.f32 %v3137, %v3122
    %v3139 = vadd.f32 %v3138, %v3123
    %v3140 = vadd.f32 %v3139, %v3124
    %v3141 = vadd.f32 %v3140, %v3125
    %3142 = vadd.xlane.f32.xlu0 %v3141
    %v3143 = vpop.xlane.xlu0 %3142
    %v3144 = vmul.f32 %v3134, 0.001
    %v3145 = vmul.f32 %v3143, 0.001
    %v3146 = vadd.f32 %v3144, 1e-05
    %v3147 = vadd.f32 %v3145, 1e-05
    %v3148 = vrsqrt.pop %v3146
    %v3149 = vmul.f32 %v3148, %v3146
    %v3150 = vmul.f32 %v3149, %v3148
    %v3151 = vmul.f32 0.5, %v3150
    %v3152 = vsub.f32 1.5, %v3151
    %v3153 = vmul.f32 %v3148, %v3152
    %vm3154 = vweird.f32 %v3146
    %vm3155 = vweird.f32 %v3148
    %vm3156 = vmor %vm3154, %vm3155
    %v3157 = vsel %vm3156, %v3148, %v3153
    %v3158 = vrsqrt.pop %v3147
    %v3159 = vmul.f32 %v3158, %v3147
    %v3160 = vmul.f32 %v3159, %v3158
    %v3161 = vmul.f32 0.5, %v3160
    %v3162 = vsub.f32 1.5, %v3161
    %v3163 = vmul.f32 %v3158, %v3162
    %vm3164 = vweird.f32 %v3147
    %vm3165 = vweird.f32 %v3158
    %vm3166 = vmor %vm3164, %vm3165
    %v3167 = vsel %vm3166, %v3158, %v3163
    %v3168 = vmul.f32 %v3062, %v3157
    %v3169 = vmul.f32 %v3063, %v3157
    %v3170 = vmul.f32 %v3064, %v3157
    %v3171 = vmul.f32 %v3065, %v3157
    %v3172 = vmul.f32 %v3066, %v3157
    %v3173 = vmul.f32 %v3067, %v3157
    %v3174 = vmul.f32 %v3068, %v3157
    %v3175 = vmul.f32 %v3069, %v3157
    %v3176 = vmul.f32 %v3070, %v3167
    %v3177 = vmul.f32 %v3071, %v3167
    %v3178 = vmul.f32 %v3072, %v3167
    %v3179 = vmul.f32 %v3073, %v3167
    %v3180 = vmul.f32 %v3074, %v3167
    %v3181 = vmul.f32 %v3075, %v3167
    %v3182 = vmul.f32 %v3076, %v3167
    %v3183 = vmul.f32 %v3077, %v3167
    %v3185 = vperm.slane %v3028, 0
    %v3186 = vperm.slane %v3028, 1
    %v3187 = vperm.slane %v3028, 2
    %v3188 = vperm.slane %v3028, 3
    %v3189 = vperm.slane %v3028, 4
    %v3190 = vperm.slane %v3028, 5
    %v3191 = vperm.slane %v3028, 6
    %v3192 = vperm.slane %v3028, 7
    %v3201 = vmul.f32 %v3168, %v3185
    %v3202 = vmul.f32 %v3169, %v3186
    %v3203 = vmul.f32 %v3170, %v3187
    %v3204 = vmul.f32 %v3171, %v3188
    %v3205 = vmul.f32 %v3172, %v3189
    %v3206 = vmul.f32 %v3173, %v3190
    %v3207 = vmul.f32 %v3174, %v3191
    %v3208 = vmul.f32 %v3175, %v3192
    %v3209 = vmul.f32 %v3176, %v3185
    %v3210 = vmul.f32 %v3177, %v3186
    %v3211 = vmul.f32 %v3178, %v3187
    %v3212 = vmul.f32 %v3179, %v3188
    %v3213 = vmul.f32 %v3180, %v3189
    %v3214 = vmul.f32 %v3181, %v3190
    %v3215 = vmul.f32 %v3182, %v3191
    %v3216 = vmul.f32 %v3183, %v3192
    %v3218 = vperm.slane %v3029, 0
    %v3219 = vperm.slane %v3029, 1
    %v3220 = vperm.slane %v3029, 2
    %v3221 = vperm.slane %v3029, 3
    %v3222 = vperm.slane %v3029, 4
    %v3223 = vperm.slane %v3029, 5
    %v3224 = vperm.slane %v3029, 6
    %v3225 = vperm.slane %v3029, 7
    %v3234 = vadd.f32 %v3201, %v3218
    %v3235 = vadd.f32 %v3202, %v3219
    %v3236 = vadd.f32 %v3203, %v3220
    %v3237 = vadd.f32 %v3204, %v3221
    %v3238 = vadd.f32 %v3205, %v3222
    %v3239 = vadd.f32 %v3206, %v3223
    %v3240 = vadd.f32 %v3207, %v3224
    %v3241 = vadd.f32 %v3208, %v3225
    %v3242 = vadd.f32 %v3209, %v3218
    %v3243 = vadd.f32 %v3210, %v3219
    %v3244 = vadd.f32 %v3211, %v3220
    %v3245 = vadd.f32 %v3212, %v3221
    %v3246 = vadd.f32 %v3213, %v3222
    %v3247 = vadd.f32 %v3214, %v3223
    %v3248 = vadd.f32 %v3215, %v3224
    %v3249 = vadd.f32 %v3216, %v3225
    %v3250 = vpack.c.bf16 %v3242, %v3234
    %v3251 = vpack.c.bf16 %v3243, %v3235
    %v3252 = vpack.c.bf16 %v3244, %v3236
    %v3253 = vpack.c.bf16 %v3245, %v3237
    %v3254 = vpack.c.bf16 %v3246, %v3238
    %v3255 = vpack.c.bf16 %v3247, %v3239
    %v3256 = vpack.c.bf16 %v3248, %v3240
    %v3257 = vpack.c.bf16 %v3249, %v3241
    %v3258 = vld [vmem:[#allocation18] sm:$0xf]
    %v3259 = vld [vmem:[#allocation18 + $0x4] sm:$0xf]
    %v3260 = vld [vmem:[#allocation18 + $0x8] sm:$0xf]
    %v3261 = vld [vmem:[#allocation18 + $0xc] sm:$0xf]
    %v3262 = vld [vmem:[#allocation18 + $0x10] sm:$0xf]
    %v3263 = vld [vmem:[#allocation18 + $0x14] sm:$0xf]
    %v3264 = vld [vmem:[#allocation18 + $0x18] sm:$0xf]
    %v3265 = vld [vmem:[#allocation18 + $0x1c] sm:$0xf]
    %v3266 = vld [vmem:[#allocation18 + $0x20] sm:$0xf]
    %v3267 = vld [vmem:[#allocation18 + $0x24] sm:$0xf]
    %v3268 = vld [vmem:[#allocation18 + $0x28] sm:$0xf]
    %v3269 = vld [vmem:[#allocation18 + $0x2c] sm:$0xf]
    %v3270 = vld [vmem:[#allocation18 + $0x30] sm:$0xf]
    %v3271 = vld [vmem:[#allocation18 + $0x34] sm:$0xf]
    %v3272 = vld [vmem:[#allocation18 + $0x38] sm:$0xf]
    %v3273 = vld [vmem:[#allocation18 + $0x3c] sm:$0xf]
    %v3274 = vld [vmem:[#allocation18 + $0x40] sm:$0xf]
    %v3275 = vld [vmem:[#allocation18 + $0x44] sm:$0xf]
    %v3276 = vld [vmem:[#allocation18 + $0x48] sm:$0xf]
    %v3277 = vld [vmem:[#allocation18 + $0x4c] sm:$0xf]
    %v3278 = vld [vmem:[#allocation18 + $0x50] sm:$0xf]
    %v3279 = vld [vmem:[#allocation18 + $0x54] sm:$0xf]
    %v3280 = vld [vmem:[#allocation18 + $0x58] sm:$0xf]
    %v3281 = vld [vmem:[#allocation18 + $0x5c] sm:$0xf]
    %v3282 = vld [vmem:[#allocation18 + $0x60] sm:$0xf]
    %v3283 = vld [vmem:[#allocation18 + $0x64] sm:$0xf]
    %v3284 = vld [vmem:[#allocation18 + $0x68] sm:$0xf]
    %v3285 = vld [vmem:[#allocation18 + $0x6c] sm:$0xf]
    %v3286 = vld [vmem:[#allocation18 + $0x70] sm:$0xf]
    %v3287 = vld [vmem:[#allocation18 + $0x74] sm:$0xf]
    %v3288 = vld [vmem:[#allocation18 + $0x78] sm:$0xf]
    %v3289 = vld [vmem:[#allocation18 + $0x7c] sm:$0xf]
    %v3290 = vld [vmem:[#allocation18 + $0x80] sm:$0xf]
    %v3291 = vld [vmem:[#allocation18 + $0x84] sm:$0xf]
    %v3292 = vld [vmem:[#allocation18 + $0x88] sm:$0xf]
    %v3293 = vld [vmem:[#allocation18 + $0x8c] sm:$0xf]
    %v3294 = vld [vmem:[#allocation18 + $0x90] sm:$0xf]
    %v3295 = vld [vmem:[#allocation18 + $0x94] sm:$0xf]
    %v3296 = vld [vmem:[#allocation18 + $0x98] sm:$0xf]
    %v3297 = vld [vmem:[#allocation18 + $0x9c] sm:$0xf]
    %v3298 = vld [vmem:[#allocation18 + $0xa0] sm:$0xf]
    %v3299 = vld [vmem:[#allocation18 + $0xa4] sm:$0xf]
    %v3300 = vld [vmem:[#allocation18 + $0xa8] sm:$0xf]
    %v3301 = vld [vmem:[#allocation18 + $0xac] sm:$0xf]
    %v3302 = vld [vmem:[#allocation18 + $0xb0] sm:$0xf]
    %v3303 = vld [vmem:[#allocation18 + $0xb4] sm:$0xf]
    %v3304 = vld [vmem:[#allocation18 + $0xb8] sm:$0xf]
    %v3305 = vld [vmem:[#allocation18 + $0xbc] sm:$0xf]
    %v3306 = vld [vmem:[#allocation18 + $0xc0] sm:$0xf]
    %v3307 = vld [vmem:[#allocation18 + $0xc4] sm:$0xf]
    %v3308 = vld [vmem:[#allocation18 + $0xc8] sm:$0xf]
    %v3309 = vld [vmem:[#allocation18 + $0xcc] sm:$0xf]
    %v3310 = vld [vmem:[#allocation18 + $0xd0] sm:$0xf]
    %v3311 = vld [vmem:[#allocation18 + $0xd4] sm:$0xf]
    %v3312 = vld [vmem:[#allocation18 + $0xd8] sm:$0xf]
    %v3313 = vld [vmem:[#allocation18 + $0xdc] sm:$0xf]
    %v3314 = vld [vmem:[#allocation18 + $0xe0] sm:$0xf]
    %v3315 = vld [vmem:[#allocation18 + $0xe4] sm:$0xf]
    %v3316 = vld [vmem:[#allocation18 + $0xe8] sm:$0xf]
    %v3317 = vld [vmem:[#allocation18 + $0xec] sm:$0xf]
    %v3318 = vld [vmem:[#allocation18 + $0xf0] sm:$0xf]
    %v3319 = vld [vmem:[#allocation18 + $0xf4] sm:$0xf]
    %v3320 = vld [vmem:[#allocation18 + $0xf8] sm:$0xf]
    %v3321 = vld [vmem:[#allocation18 + $0xfc] sm:$0xf]
    %v3322 = vld [vmem:[#allocation18 + $0x100] sm:$0xf]
    %v3323 = vld [vmem:[#allocation18 + $0x104] sm:$0xf]
    %v3324 = vld [vmem:[#allocation18 + $0x108] sm:$0xf]
    %v3325 = vld [vmem:[#allocation18 + $0x10c] sm:$0xf]
    %v3326 = vld [vmem:[#allocation18 + $0x110] sm:$0xf]
    %v3327 = vld [vmem:[#allocation18 + $0x114] sm:$0xf]
    %v3328 = vld [vmem:[#allocation18 + $0x118] sm:$0xf]
    %v3329 = vld [vmem:[#allocation18 + $0x11c] sm:$0xf]
    %v3330 = vld [vmem:[#allocation18 + $0x120] sm:$0xf]
    %v3331 = vld [vmem:[#allocation18 + $0x124] sm:$0xf]
    %v3332 = vld [vmem:[#allocation18 + $0x128] sm:$0xf]
    %v3333 = vld [vmem:[#allocation18 + $0x12c] sm:$0xf]
    %v3334 = vld [vmem:[#allocation18 + $0x130] sm:$0xf]
    %v3335 = vld [vmem:[#allocation18 + $0x134] sm:$0xf]
    %v3336 = vld [vmem:[#allocation18 + $0x138] sm:$0xf]
    %v3337 = vld [vmem:[#allocation18 + $0x13c] sm:$0xf]
    %v3338 = vld [vmem:[#allocation18 + $0x140] sm:$0xf]
    %v3339 = vld [vmem:[#allocation18 + $0x144] sm:$0xf]
    %v3340 = vld [vmem:[#allocation18 + $0x148] sm:$0xf]
    %v3341 = vld [vmem:[#allocation18 + $0x14c] sm:$0xf]
    %v3342 = vld [vmem:[#allocation18 + $0x150] sm:$0xf]
    %v3343 = vld [vmem:[#allocation18 + $0x154] sm:$0xf]
    %v3344 = vld [vmem:[#allocation18 + $0x158] sm:$0xf]
    %v3345 = vld [vmem:[#allocation18 + $0x15c] sm:$0xf]
    %v3346 = vld [vmem:[#allocation18 + $0x160] sm:$0xf]
    %v3347 = vld [vmem:[#allocation18 + $0x164] sm:$0xf]
    %v3348 = vld [vmem:[#allocation18 + $0x168] sm:$0xf]
    %v3349 = vld [vmem:[#allocation18 + $0x16c] sm:$0xf]
    %v3350 = vld [vmem:[#allocation18 + $0x170] sm:$0xf]
    %v3351 = vld [vmem:[#allocation18 + $0x174] sm:$0xf]
    %v3352 = vld [vmem:[#allocation18 + $0x178] sm:$0xf]
    %v3353 = vld [vmem:[#allocation18 + $0x17c] sm:$0xf]
    %v3354 = vld [vmem:[#allocation18 + $0x180] sm:$0xf]
    %v3355 = vld [vmem:[#allocation18 + $0x184] sm:$0xf]
    %v3356 = vld [vmem:[#allocation18 + $0x188] sm:$0xf]
    %v3357 = vld [vmem:[#allocation18 + $0x18c] sm:$0xf]
    %v3358 = vld [vmem:[#allocation18 + $0x190] sm:$0xf]
    %v3359 = vld [vmem:[#allocation18 + $0x194] sm:$0xf]
    %v3360 = vld [vmem:[#allocation18 + $0x198] sm:$0xf]
    %v3361 = vld [vmem:[#allocation18 + $0x19c] sm:$0xf]
    %v3362 = vld [vmem:[#allocation18 + $0x1a0] sm:$0xf]
    %v3363 = vld [vmem:[#allocation18 + $0x1a4] sm:$0xf]
    %v3364 = vld [vmem:[#allocation18 + $0x1a8] sm:$0xf]
    %v3365 = vld [vmem:[#allocation18 + $0x1ac] sm:$0xf]
    %v3366 = vld [vmem:[#allocation18 + $0x1b0] sm:$0xf]
    %v3367 = vld [vmem:[#allocation18 + $0x1b4] sm:$0xf]
    %v3368 = vld [vmem:[#allocation18 + $0x1b8] sm:$0xf]
    %v3369 = vld [vmem:[#allocation18 + $0x1bc] sm:$0xf]
    %v3370 = vld [vmem:[#allocation18 + $0x1c0] sm:$0xf]
    %v3371 = vld [vmem:[#allocation18 + $0x1c4] sm:$0xf]
    %v3372 = vld [vmem:[#allocation18 + $0x1c8] sm:$0xf]
    %v3373 = vld [vmem:[#allocation18 + $0x1cc] sm:$0xf]
    %v3374 = vld [vmem:[#allocation18 + $0x1d0] sm:$0xf]
    %v3375 = vld [vmem:[#allocation18 + $0x1d4] sm:$0xf]
    %v3376 = vld [vmem:[#allocation18 + $0x1d8] sm:$0xf]
    %v3377 = vld [vmem:[#allocation18 + $0x1dc] sm:$0xf]
    %v3378 = vld [vmem:[#allocation18 + $0x1e0] sm:$0xf]
    %v3379 = vld [vmem:[#allocation18 + $0x1e4] sm:$0xf]
    %v3380 = vld [vmem:[#allocation18 + $0x1e8] sm:$0xf]
    %v3381 = vld [vmem:[#allocation18 + $0x1ec] sm:$0xf]
    %v3382 = vld [vmem:[#allocation18 + $0x1f0] sm:$0xf]
    %v3383 = vld [vmem:[#allocation18 + $0x1f4] sm:$0xf]
    %v3384 = vld [vmem:[#allocation18 + $0x1f8] sm:$0xf]
    %v3385 = vld [vmem:[#allocation18 + $0x1fc] sm:$0xf]
    %v3386 = vld [vmem:[%s12] sm:$0x1]
    %v3388 = vperm.slane %v3386, 0
    %v3518 = vunpack.c.l.b16 %v3258
    %v3519 = vunpack.c.l.b16 %v3259
    %v3520 = vunpack.c.l.b16 %v3260
    %v3521 = vunpack.c.l.b16 %v3261
    %v3522 = vunpack.c.l.b16 %v3262
    %v3523 = vunpack.c.l.b16 %v3263
    %v3524 = vunpack.c.l.b16 %v3264
    %v3525 = vunpack.c.l.b16 %v3265
    %v3526 = vunpack.c.l.b16 %v3266
    %v3527 = vunpack.c.l.b16 %v3267
    %v3528 = vunpack.c.l.b16 %v3268
    %v3529 = vunpack.c.l.b16 %v3269
    %v3530 = vunpack.c.l.b16 %v3270
    %v3531 = vunpack.c.l.b16 %v3271
    %v3532 = vunpack.c.l.b16 %v3272
    %v3533 = vunpack.c.l.b16 %v3273
    %v3534 = vunpack.c.l.b16 %v3274
    %v3535 = vunpack.c.l.b16 %v3275
    %v3536 = vunpack.c.l.b16 %v3276
    %v3537 = vunpack.c.l.b16 %v3277
    %v3538 = vunpack.c.l.b16 %v3278
    %v3539 = vunpack.c.l.b16 %v3279
    %v3540 = vunpack.c.l.b16 %v3280
    %v3541 = vunpack.c.l.b16 %v3281
    %v3542 = vunpack.c.l.b16 %v3282
    %v3543 = vunpack.c.l.b16 %v3283
    %v3544 = vunpack.c.l.b16 %v3284
    %v3545 = vunpack.c.l.b16 %v3285
    %v3546 = vunpack.c.l.b16 %v3286
    %v3547 = vunpack.c.l.b16 %v3287
    %v3548 = vunpack.c.l.b16 %v3288
    %v3549 = vunpack.c.l.b16 %v3289
    %v3550 = vunpack.c.l.b16 %v3290
    %v3551 = vunpack.c.l.b16 %v3291
    %v3552 = vunpack.c.l.b16 %v3292
    %v3553 = vunpack.c.l.b16 %v3293
    %v3554 = vunpack.c.l.b16 %v3294
    %v3555 = vunpack.c.l.b16 %v3295
    %v3556 = vunpack.c.l.b16 %v3296
    %v3557 = vunpack.c.l.b16 %v3297
    %v3558 = vunpack.c.l.b16 %v3298
    %v3559 = vunpack.c.l.b16 %v3299
    %v3560 = vunpack.c.l.b16 %v3300
    %v3561 = vunpack.c.l.b16 %v3301
    %v3562 = vunpack.c.l.b16 %v3302
    %v3563 = vunpack.c.l.b16 %v3303
    %v3564 = vunpack.c.l.b16 %v3304
    %v3565 = vunpack.c.l.b16 %v3305
    %v3566 = vunpack.c.l.b16 %v3306
    %v3567 = vunpack.c.l.b16 %v3307
    %v3568 = vunpack.c.l.b16 %v3308
    %v3569 = vunpack.c.l.b16 %v3309
    %v3570 = vunpack.c.l.b16 %v3310
    %v3571 = vunpack.c.l.b16 %v3311
    %v3572 = vunpack.c.l.b16 %v3312
    %v3573 = vunpack.c.l.b16 %v3313
    %v3574 = vunpack.c.l.b16 %v3314
    %v3575 = vunpack.c.l.b16 %v3315
    %v3576 = vunpack.c.l.b16 %v3316
    %v3577 = vunpack.c.l.b16 %v3317
    %v3578 = vunpack.c.l.b16 %v3318
    %v3579 = vunpack.c.l.b16 %v3319
    %v3580 = vunpack.c.l.b16 %v3320
    %v3581 = vunpack.c.l.b16 %v3321
    %v3582 = vunpack.c.l.b16 %v3322
    %v3583 = vunpack.c.l.b16 %v3323
    %v3584 = vunpack.c.l.b16 %v3324
    %v3585 = vunpack.c.l.b16 %v3325
    %v3586 = vunpack.c.l.b16 %v3326
    %v3587 = vunpack.c.l.b16 %v3327
    %v3588 = vunpack.c.l.b16 %v3328
    %v3589 = vunpack.c.l.b16 %v3329
    %v3590 = vunpack.c.l.b16 %v3330
    %v3591 = vunpack.c.l.b16 %v3331
    %v3592 = vunpack.c.l.b16 %v3332
    %v3593 = vunpack.c.l.b16 %v3333
    %v3594 = vunpack.c.l.b16 %v3334
    %v3595 = vunpack.c.l.b16 %v3335
    %v3596 = vunpack.c.l.b16 %v3336
    %v3597 = vunpack.c.l.b16 %v3337
    %v3598 = vunpack.c.l.b16 %v3338
    %v3599 = vunpack.c.l.b16 %v3339
    %v3600 = vunpack.c.l.b16 %v3340
    %v3601 = vunpack.c.l.b16 %v3341
    %v3602 = vunpack.c.l.b16 %v3342
    %v3603 = vunpack.c.l.b16 %v3343
    %v3604 = vunpack.c.l.b16 %v3344
    %v3605 = vunpack.c.l.b16 %v3345
    %v3606 = vunpack.c.l.b16 %v3346
    %v3607 = vunpack.c.l.b16 %v3347
    %v3608 = vunpack.c.l.b16 %v3348
    %v3609 = vunpack.c.l.b16 %v3349
    %v3610 = vunpack.c.l.b16 %v3350
    %v3611 = vunpack.c.l.b16 %v3351
    %v3612 = vunpack.c.l.b16 %v3352
    %v3613 = vunpack.c.l.b16 %v3353
    %v3614 = vunpack.c.l.b16 %v3354
    %v3615 = vunpack.c.l.b16 %v3355
    %v3616 = vunpack.c.l.b16 %v3356
    %v3617 = vunpack.c.l.b16 %v3357
    %v3618 = vunpack.c.l.b16 %v3358
    %v3619 = vunpack.c.l.b16 %v3359
    %v3620 = vunpack.c.l.b16 %v3360
    %v3621 = vunpack.c.l.b16 %v3361
    %v3622 = vunpack.c.l.b16 %v3362
    %v3623 = vunpack.c.l.b16 %v3363
    %v3624 = vunpack.c.l.b16 %v3364
    %v3625 = vunpack.c.l.b16 %v3365
    %v3626 = vunpack.c.l.b16 %v3366
    %v3627 = vunpack.c.l.b16 %v3367
    %v3628 = vunpack.c.l.b16 %v3368
    %v3629 = vunpack.c.l.b16 %v3369
    %v3630 = vunpack.c.l.b16 %v3370
    %v3631 = vunpack.c.l.b16 %v3371
    %v3632 = vunpack.c.l.b16 %v3372
    %v3633 = vunpack.c.l.b16 %v3373
    %v3634 = vunpack.c.l.b16 %v3374
    %v3635 = vunpack.c.l.b16 %v3375
    %v3636 = vunpack.c.l.b16 %v3376
    %v3637 = vunpack.c.l.b16 %v3377
    %v3638 = vunpack.c.l.b16 %v3378
    %v3639 = vunpack.c.l.b16 %v3379
    %v3640 = vunpack.c.l.b16 %v3380
    %v3641 = vunpack.c.l.b16 %v3381
    %v3642 = vunpack.c.l.b16 %v3382
    %v3643 = vunpack.c.l.b16 %v3383
    %v3644 = vunpack.c.l.b16 %v3384
    %v3645 = vunpack.c.l.b16 %v3385
    %v3646 = vpack.c.b16 %v3519, %v3518
    %v3647 = vpack.c.b16 %v3521, %v3520
    %v3648 = vpack.c.b16 %v3523, %v3522
    %v3649 = vpack.c.b16 %v3525, %v3524
    %v3650 = vpack.c.b16 %v3527, %v3526
    %v3651 = vpack.c.b16 %v3529, %v3528
    %v3652 = vpack.c.b16 %v3531, %v3530
    %v3653 = vpack.c.b16 %v3533, %v3532
    %v3654 = vpack.c.b16 %v3535, %v3534
    %v3655 = vpack.c.b16 %v3537, %v3536
    %v3656 = vpack.c.b16 %v3539, %v3538
    %v3657 = vpack.c.b16 %v3541, %v3540
    %v3658 = vpack.c.b16 %v3543, %v3542
    %v3659 = vpack.c.b16 %v3545, %v3544
    %v3660 = vpack.c.b16 %v3547, %v3546
    %v3661 = vpack.c.b16 %v3549, %v3548
    %v3662 = vpack.c.b16 %v3551, %v3550
    %v3663 = vpack.c.b16 %v3553, %v3552
    %v3664 = vpack.c.b16 %v3555, %v3554
    %v3665 = vpack.c.b16 %v3557, %v3556
    %v3666 = vpack.c.b16 %v3559, %v3558
    %v3667 = vpack.c.b16 %v3561, %v3560
    %v3668 = vpack.c.b16 %v3563, %v3562
    %v3669 = vpack.c.b16 %v3565, %v3564
    %v3670 = vpack.c.b16 %v3567, %v3566
    %v3671 = vpack.c.b16 %v3569, %v3568
    %v3672 = vpack.c.b16 %v3571, %v3570
    %v3673 = vpack.c.b16 %v3573, %v3572
    %v3674 = vpack.c.b16 %v3575, %v3574
    %v3675 = vpack.c.b16 %v3577, %v3576
    %v3676 = vpack.c.b16 %v3579, %v3578
    %v3677 = vpack.c.b16 %v3581, %v3580
    %v3678 = vpack.c.b16 %v3583, %v3582
    %v3679 = vpack.c.b16 %v3585, %v3584
    %v3680 = vpack.c.b16 %v3587, %v3586
    %v3681 = vpack.c.b16 %v3589, %v3588
    %v3682 = vpack.c.b16 %v3591, %v3590
    %v3683 = vpack.c.b16 %v3593, %v3592
    %v3684 = vpack.c.b16 %v3595, %v3594
    %v3685 = vpack.c.b16 %v3597, %v3596
    %v3686 = vpack.c.b16 %v3599, %v3598
    %v3687 = vpack.c.b16 %v3601, %v3600
    %v3688 = vpack.c.b16 %v3603, %v3602
    %v3689 = vpack.c.b16 %v3605, %v3604
    %v3690 = vpack.c.b16 %v3607, %v3606
    %v3691 = vpack.c.b16 %v3609, %v3608
    %v3692 = vpack.c.b16 %v3611, %v3610
    %v3693 = vpack.c.b16 %v3613, %v3612
    %v3694 = vpack.c.b16 %v3615, %v3614
    %v3695 = vpack.c.b16 %v3617, %v3616
    %v3696 = vpack.c.b16 %v3619, %v3618
    %v3697 = vpack.c.b16 %v3621, %v3620
    %v3698 = vpack.c.b16 %v3623, %v3622
    %v3699 = vpack.c.b16 %v3625, %v3624
    %v3700 = vpack.c.b16 %v3627, %v3626
    %v3701 = vpack.c.b16 %v3629, %v3628
    %v3702 = vpack.c.b16 %v3631, %v3630
    %v3703 = vpack.c.b16 %v3633, %v3632
    %v3704 = vpack.c.b16 %v3635, %v3634
    %v3705 = vpack.c.b16 %v3637, %v3636
    %v3706 = vpack.c.b16 %v3639, %v3638
    %v3707 = vpack.c.b16 %v3641, %v3640
    %v3708 = vpack.c.b16 %v3643, %v3642
    %v3709 = vpack.c.b16 %v3645, %v3644
    %3774 = vmatpush.bf16.msra.mxu0 %v3653
    %3775 = vmatpush.bf16.msra.mxu0 %v3652
    %3776 = vmatpush.bf16.msra.mxu0 %v3651
    %3777 = vmatpush.bf16.msra.mxu0 %v3650
    %3778 = vmatpush.bf16.msra.mxu0 %v3649
    %3779 = vmatpush.bf16.msra.mxu0 %v3648
    %3780 = vmatpush.bf16.msra.mxu0 %v3647
    %3781 = vmatpush.bf16.msra.mxu0 %v3646
    %3782 = vmatmul.bf16.gmra.mxu0 %v3250
    %v3783 = vpop.f32.mrf.mxu0
    %v3784 = vadd.f32 %v3388, %v3783
    %v3785 = vpop.f32.mrf.mxu0
    %v3786 = vadd.f32 %v3388, %v3785
    %3787 = vdwg.mxu0
    %3788 = vmatpush.bf16.msra.mxu0 %v3661
    %3789 = vmatpush.bf16.msra.mxu0 %v3660
    %3790 = vmatpush.bf16.msra.mxu0 %v3659
    %3791 = vmatpush.bf16.msra.mxu0 %v3658
    %3792 = vmatpush.bf16.msra.mxu0 %v3657
    %3793 = vmatpush.bf16.msra.mxu0 %v3656
    %3794 = vmatpush.bf16.msra.mxu0 %v3655
    %3795 = vmatpush.bf16.msra.mxu0 %v3654
    %3796 = vmatmul.bf16.gmra.mxu0 %v3251
    %v3797 = vpop.f32.mrf.mxu0
    %v3798 = vadd.f32 %v3784, %v3797
    %v3799 = vpop.f32.mrf.mxu0
    %v3800 = vadd.f32 %v3786, %v3799
    %3801 = vdwg.mxu0
    %3802 = vmatpush.bf16.msra.mxu0 %v3669
    %3803 = vmatpush.bf16.msra.mxu0 %v3668
    %3804 = vmatpush.bf16.msra.mxu0 %v3667
    %3805 = vmatpush.bf16.msra.mxu0 %v3666
    %3806 = vmatpush.bf16.msra.mxu0 %v3665
    %3807 = vmatpush.bf16.msra.mxu0 %v3664
    %3808 = vmatpush.bf16.msra.mxu0 %v3663
    %3809 = vmatpush.bf16.msra.mxu0 %v3662
    %3810 = vmatmul.bf16.gmra.mxu0 %v3252
    %v3811 = vpop.f32.mrf.mxu0
    %v3812 = vadd.f32 %v3798, %v3811
    %v3813 = vpop.f32.mrf.mxu0
    %v3814 = vadd.f32 %v3800, %v3813
    %3815 = vdwg.mxu0
    %3816 = vmatpush.bf16.msra.mxu0 %v3677
    %3817 = vmatpush.bf16.msra.mxu0 %v3676
    %3818 = vmatpush.bf16.msra.mxu0 %v3675
    %3819 = vmatpush.bf16.msra.mxu0 %v3674
    %3820 = vmatpush.bf16.msra.mxu0 %v3673
    %3821 = vmatpush.bf16.msra.mxu0 %v3672
    %3822 = vmatpush.bf16.msra.mxu0 %v3671
    %3823 = vmatpush.bf16.msra.mxu0 %v3670
    %3824 = vmatmul.bf16.gmra.mxu0 %v3253
    %v3825 = vpop.f32.mrf.mxu0
    %v3826 = vadd.f32 %v3812, %v3825
    %v3827 = vpop.f32.mrf.mxu0
    %v3828 = vadd.f32 %v3814, %v3827
    %3829 = vdwg.mxu0
    %3830 = vmatpush.bf16.msra.mxu0 %v3685
    %3831 = vmatpush.bf16.msra.mxu0 %v3684
    %3832 = vmatpush.bf16.msra.mxu0 %v3683
    %3833 = vmatpush.bf16.msra.mxu0 %v3682
    %3834 = vmatpush.bf16.msra.mxu0 %v3681
    %3835 = vmatpush.bf16.msra.mxu0 %v3680
    %3836 = vmatpush.bf16.msra.mxu0 %v3679
    %3837 = vmatpush.bf16.msra.mxu0 %v3678
    %3838 = vmatmul.bf16.gmra.mxu0 %v3254
    %v3839 = vpop.f32.mrf.mxu0
    %v3840 = vadd.f32 %v3826, %v3839
    %v3841 = vpop.f32.mrf.mxu0
    %v3842 = vadd.f32 %v3828, %v3841
    %3843 = vdwg.mxu0
    %3844 = vmatpush.bf16.msra.mxu0 %v3693
    %3845 = vmatpush.bf16.msra.mxu0 %v3692
    %3846 = vmatpush.bf16.msra.mxu0 %v3691
    %3847 = vmatpush.bf16.msra.mxu0 %v3690
    %3848 = vmatpush.bf16.msra.mxu0 %v3689
    %3849 = vmatpush.bf16.msra.mxu0 %v3688
    %3850 = vmatpush.bf16.msra.mxu0 %v3687
    %3851 = vmatpush.bf16.msra.mxu0 %v3686
    %3852 = vmatmul.bf16.gmra.mxu0 %v3255
    %v3853 = vpop.f32.mrf.mxu0
    %v3854 = vadd.f32 %v3840, %v3853
    %v3855 = vpop.f32.mrf.mxu0
    %v3856 = vadd.f32 %v3842, %v3855
    %3857 = vdwg.mxu0
    %3858 = vmatpush.bf16.msra.mxu0 %v3701
    %3859 = vmatpush.bf16.msra.mxu0 %v3700
    %3860 = vmatpush.bf16.msra.mxu0 %v3699
    %3861 = vmatpush.bf16.msra.mxu0 %v3698
    %3862 = vmatpush.bf16.msra.mxu0 %v3697
    %3863 = vmatpush.bf16.msra.mxu0 %v3696
    %3864 = vmatpush.bf16.msra.mxu0 %v3695
    %3865 = vmatpush.bf16.msra.mxu0 %v3694
    %3866 = vmatmul.bf16.gmra.mxu0 %v3256
    %v3867 = vpop.f32.mrf.mxu0
    %v3868 = vadd.f32 %v3854, %v3867
    %v3869 = vpop.f32.mrf.mxu0
    %v3870 = vadd.f32 %v3856, %v3869
    %3871 = vdwg.mxu0
    %3872 = vmatpush.bf16.msra.mxu0 %v3709
    %3873 = vmatpush.bf16.msra.mxu0 %v3708
    %3874 = vmatpush.bf16.msra.mxu0 %v3707
    %3875 = vmatpush.bf16.msra.mxu0 %v3706
    %3876 = vmatpush.bf16.msra.mxu0 %v3705
    %3877 = vmatpush.bf16.msra.mxu0 %v3704
    %3878 = vmatpush.bf16.msra.mxu0 %v3703
    %3879 = vmatpush.bf16.msra.mxu0 %v3702
    %3880 = vmatmul.bf16.gmra.mxu0 %v3257
    %v3881 = vpop.f32.mrf.mxu0
    %v3882 = vadd.f32 %v3868, %v3881
    %v3883 = vpop.f32.mrf.mxu0
    %v3884 = vadd.f32 %v3870, %v3883
    %3885 = vdwg.mxu0
    %v3886 = vxor.u32 %v3882, 2147483648
    %v3887 = vxor.u32 %v3884, 2147483648
    %v3888 = vmul.f32 %v3886, 1.442695
    %v3889 = vpow.pop %v3888
    %v3890 = vmul.f32 %v3887, 1.442695
    %v3891 = vpow.pop %v3890
    %v3892 = vadd.f32 %v3889, 1.0
    %v3893 = vadd.f32 %v3891, 1.0
    %v3894 = vrcp.pop %v3892
    %v3895 = vmul.f32 %v3892, %v3894
    %v3896 = vsub.f32 1.0, %v3895
    %v3897 = vmul.f32 %v3894, %v3896
    %v3898 = vadd.f32 %v3894, %v3897
    %vm3899 = vweird.f32 %v3892
    %vm3900 = vweird.f32 %v3894
    %vm3901 = vmor %vm3899, %vm3900
    %v3902 = vsel %vm3901, %v3894, %v3898
    %v3903 = vand.u32 2147483647, %v3892
    %vm3904 = vcmp.eq.f32.partialorder %v3903, 8.507059e+37
    %v3905 = vand.u32 %v3892, 2147483648
    %v3906 = vor.u32 1.1754944e-38, %v3905
    %v3907 = vsel %vm3904, %v3906, %v3902
    %v3908 = vmul.f32 1.0, %v3907
    %v3909 = vrcp.pop %v3893
    %v3910 = vmul.f32 %v3893, %v3909
    %v3911 = vsub.f32 1.0, %v3910
    %v3912 = vmul.f32 %v3909, %v3911
    %v3913 = vadd.f32 %v3909, %v3912
    %vm3914 = vweird.f32 %v3893
    %vm3915 = vweird.f32 %v3909
    %vm3916 = vmor %vm3914, %vm3915
    %v3917 = vsel %vm3916, %v3909, %v3913
    %v3918 = vand.u32 2147483647, %v3893
    %vm3919 = vcmp.eq.f32.partialorder %v3918, 8.507059e+37
    %v3920 = vand.u32 %v3893, 2147483648
    %v3921 = vor.u32 1.1754944e-38, %v3920
    %v3922 = vsel %vm3919, %v3921, %v3917
    %v3923 = vmul.f32 1.0, %v3922
    %3924 = vst [vmem:[%s13] sm:$0xff] %v3908
    %3925 = vst [vmem:[%s13 + $0x8] sm:$0xff] %v3923
    // Predicated region
    $region98: #{discriminator_forward.1} parent=1 // pred_check
      _
    $region99: #{discriminator_forward.1} parent=1 // pred_check_branch
      %3927 = sbr.rel (0) target = $region101
    $region100: #{discriminator_forward.1} parent=1 // pred_region
      _
    $region101: #{discriminator_forward.1} parent=1 // pred_fallthru
      _
    // Predicated region
    $region102: #{discriminator_forward.1} parent=1 // pred_check
      _
    $region103: #{discriminator_forward.1} parent=1 // pred_check_branch
      %3929 = sbr.rel (0) target = $region105
    $region104: #{discriminator_forward.1} parent=1 // pred_region
      _
    $region105: #{discriminator_forward.1} parent=1 // pred_fallthru
      _
    %3930 = vsyncpa [#allocation3], 1
    %3931 = vsyncpa [#allocation5], 1
    %3932 = vsyncpa [#allocation8], 1
    %3933 = vsyncpa [#allocation11], 1
    %3934 = vsyncpa [#allocation14], 1
    %3935 = vsyncpa [#allocation17], 1

</llo_original>
